<compile_context>
chip_gen: v7x
topology: tpu7x:2x2x1
jax: 0.10.0
libtpu: 0.0.40
codegen_flags: <defaults>
</compile_context>

<pallas_src>
import jax
import jax.numpy as jnp
from jax.experimental import pallas as pl
from jax.experimental.pallas import tpu as pltpu


def encoder_kernel(x_ref, w1_ref, b1_ref, w2_ref, b2_ref, w3_ref, b3_ref, o_ref):
    # x arrives as f32; cast to bf16 only at the MXU input boundary (in-kernel,
    # so the wrapper never materializes a bf16 copy of x in HBM).  All matmuls
    # accumulate in f32; all elementwise LeakyReLU math stays in f32.
    x = x_ref[...].astype(jnp.bfloat16)                          # (tm, in) bf16

    h1 = jnp.dot(x, w1_ref[...], preferred_element_type=jnp.float32) + b1_ref[...]
    h1 = jnp.maximum(h1, 0.2 * h1)                               # LeakyReLU(0.2), f32

    h2 = jnp.dot(h1.astype(jnp.bfloat16), w2_ref[...],
                 preferred_element_type=jnp.float32) + b2_ref[...]
    h2 = jnp.maximum(h2, 0.2 * h2)                               # LeakyReLU(0.2), f32

    h3 = jnp.dot(h2.astype(jnp.bfloat16), w3_ref[...],
                 preferred_element_type=jnp.float32) + b3_ref[...]
    o_ref[...] = h3.astype(o_ref.dtype)


def _round_up(v, m):
    return ((v + m - 1) // m) * m


def _max_batch_tile():
    """256-row tiles on 256x256-MXU chips (v6e/v7x), 128 on older generations."""
    try:
        kind = jax.devices()[0].device_kind.lower()
    except Exception:
        kind = ""
    if any(tag in kind for tag in ("v2", "v3", "v4", "v5")):
        return 128
    return 256


def simple_inn_forward(x_nchw, params):
    """Forward pass of SimpleINN (encoder). x_nchw: (N, C, H, W) float32.

    params: (w1, b1, w2, b2, w3, b3) with weights bf16, pre-transposed to
    (in_features, out_features), and biases f32 of shape (1, out_features).
    """
    w1, b1, w2, b2, w3, b3 = params
    n = x_nchw.shape[0]
    input_dim = w1.shape[0]
    latent_dim = w3.shape[1]

    # nn.Flatten (row-major over C,H,W); contiguous reshape is free, no cast here.
    x_flat = x_nchw.reshape(n, -1)

    # Batch tile: 256 (v6e/v7x) / 128 (v5-) once batch is large; at least one
    # 8-sublane group otherwise.  Remainder blocks are handled by Pallas.
    tm_max = _max_batch_tile()
    if n >= tm_max:
        tm = tm_max
    elif n >= 128:
        tm = 128
    else:
        tm = _round_up(max(n, 1), 8)

    grid = (pl.cdiv(n, tm),)

    out = pl.pallas_call(
        encoder_kernel,
        out_shape=jax.ShapeDtypeStruct((n, latent_dim), jnp.float32),
        grid=grid,
        in_specs=[
            # x streams over the batch axis (auto double-buffered).
            pl.BlockSpec((tm, input_dim), lambda i: (i, 0)),
            # Weights/biases: constant index_map -> DMA'd once, resident in VMEM.
            pl.BlockSpec(w1.shape, lambda i: (0, 0)),
            pl.BlockSpec(b1.shape, lambda i: (0, 0)),
            pl.BlockSpec(w2.shape, lambda i: (0, 0)),
            pl.BlockSpec(b2.shape, lambda i: (0, 0)),
            pl.BlockSpec(w3.shape, lambda i: (0, 0)),
            pl.BlockSpec(b3.shape, lambda i: (0, 0)),
        ],
        out_specs=pl.BlockSpec((tm, latent_dim), lambda i: (i, 0)),
        compiler_params=pltpu.CompilerParams(
            dimension_semantics=("parallel",),   # batch tiles are independent
            vmem_limit_bytes=32 << 20,           # ~8-10 MiB footprint at tm=256
        ),
    )(x_flat, w1, b1, w2, b2, w3, b3)

    return out


def init_params(key, input_dim, latent_dim):
    """Deterministic init mimicking nn.Linear defaults (uniform +-1/sqrt(fan_in)).
    Weights stored as bf16 (in_features, out_features); biases f32 (1, out)."""
    dims = [(input_dim, 1024), (1024, 512), (512, latent_dim)]
    params = []
    for (fan_in, fan_out) in dims:
        key, kw, kb = jax.random.split(key, 3)
        bound = 1.0 / jnp.sqrt(float(fan_in))
        w = jax.random.uniform(kw, (fan_in, fan_out), jnp.float32, -bound, bound)
        b = jax.random.uniform(kb, (1, fan_out), jnp.float32, -bound, bound)
        params += [w.astype(jnp.bfloat16), b]
    return tuple(params)


if __name__ == "__main__":
    # Small, module-consistent shapes: batch=2, channels=3, spatial=16.
    N, C, H, W = 2, 3, 16, 16
    input_dim = C * H * W          # 768
    latent_dim = 128

    key = jax.random.PRNGKey(0)
    key, kx = jax.random.split(key)
    x = jax.random.normal(kx, (N, C, H, W), dtype=jnp.float32)

    params = init_params(key, input_dim, latent_dim)

    latent = simple_inn_forward(x, params)
    jax.block_until_ready(latent)

    # Pure-JAX reference mirroring the kernel's bf16-weight quantization
    # (bf16 inputs to each matmul, f32 accumulation, f32 elementwise).
    w1, b1, w2, b2, w3, b3 = params
    xf = x.reshape(N, -1)

    def bf16_matmul(a_f32, w_bf16):
        return jnp.dot(a_f32.astype(jnp.bfloat16).astype(jnp.float32),
                       w_bf16.astype(jnp.float32))

    h = bf16_matmul(xf, w1) + b1
    h = jnp.maximum(h, 0.2 * h)
    h = bf16_matmul(h, w2) + b2
    h = jnp.maximum(h, 0.2 * h)
    ref = bf16_matmul(h, w3) + b3

    assert latent.shape == (N, latent_dim)
    assert jnp.allclose(latent, ref, atol=1e-2, rtol=1e-2), (
        float(jnp.max(jnp.abs(latent - ref))))

    print("KERNEL_OK")
</pallas_src>

<mosaic_0001>
module attributes {stable_mosaic.version = 11 : i64} {
  func.func @encoder_kernel(%arg0: i32, %arg1: memref<8x768xf32, #tpu.memory_space<vmem>>, %arg2: memref<768x1024xbf16, #tpu.memory_space<vmem>>, %arg3: memref<1x1024xf32, #tpu.memory_space<vmem>>, %arg4: memref<1024x512xbf16, #tpu.memory_space<vmem>>, %arg5: memref<1x512xf32, #tpu.memory_space<vmem>>, %arg6: memref<512x128xbf16, #tpu.memory_space<vmem>>, %arg7: memref<1x128xf32, #tpu.memory_space<vmem>>, %arg8: memref<8x128xf32, #tpu.memory_space<vmem>>) attributes {dimension_semantics = [#tpu.dimension_semantics<parallel>], iteration_bounds = array<i64: 1>, scalar_prefetch = 0 : i64, scratch_operands = 0 : i64, tpu.core_type = #tpu.core_type<tc>, window_params = [{transform_indices = @transform_0, window_bounds = array<i64: 8, 768>}, {pipeline_mode = #tpu.pipeline_mode<synchronous>, transform_indices = @transform_1, window_bounds = array<i64: 768, 1024>}, {pipeline_mode = #tpu.pipeline_mode<synchronous>, transform_indices = @transform_2, window_bounds = array<i64: 1, 1024>}, {pipeline_mode = #tpu.pipeline_mode<synchronous>, transform_indices = @transform_3, window_bounds = array<i64: 1024, 512>}, {pipeline_mode = #tpu.pipeline_mode<synchronous>, transform_indices = @transform_4, window_bounds = array<i64: 1, 512>}, {pipeline_mode = #tpu.pipeline_mode<synchronous>, transform_indices = @transform_5, window_bounds = array<i64: 512, 128>}, {pipeline_mode = #tpu.pipeline_mode<synchronous>, transform_indices = @transform_6, window_bounds = array<i64: 1, 128>}, {transform_indices = @transform_7, window_bounds = array<i64: 8, 128>}]} {
    %c0 = arith.constant 0 : index
    %c0_0 = arith.constant 0 : index
    %0 = vector.load %arg1[%c0, %c0_0] : memref<8x768xf32, #tpu.memory_space<vmem>>, vector<8x768xf32>
    %1 = arith.truncf %0 : vector<8x768xf32> to vector<8x768xbf16>
    %c0_1 = arith.constant 0 : index
    %c0_2 = arith.constant 0 : index
    %2 = vector.load %arg2[%c0_1, %c0_2] : memref<768x1024xbf16, #tpu.memory_space<vmem>>, vector<768x1024xbf16>
    %cst = arith.constant dense<0.000000e+00> : vector<8x1024xf32>
    %3 = tpu.matmul %1, %2, %cst {dimension_numbers = #tpu.dot_dimension_numbers<[1], [0], [0], [1], [0, 0, 1, 1], [], []>} : vector<8x768xbf16>, vector<768x1024xbf16>, vector<8x1024xf32> -> vector<8x1024xf32>
    %c0_3 = arith.constant 0 : index
    %c0_4 = arith.constant 0 : index
    %4 = vector.load %arg3[%c0_3, %c0_4] : memref<1x1024xf32, #tpu.memory_space<vmem>>, vector<1x1024xf32>
    %5 = vector.broadcast %4 : vector<1x1024xf32> to vector<8x1024xf32>
    %6 = arith.addf %3, %5 : vector<8x1024xf32>
    %cst_5 = arith.constant 2.000000e-01 : f32
    %7 = vector.broadcast %cst_5 : f32 to vector<8x1024xf32>
    %8 = arith.mulf %7, %6 : vector<8x1024xf32>
    %9 = arith.maximumf %6, %8 : vector<8x1024xf32>
    %10 = arith.truncf %9 : vector<8x1024xf32> to vector<8x1024xbf16>
    %c0_6 = arith.constant 0 : index
    %c0_7 = arith.constant 0 : index
    %11 = vector.load %arg4[%c0_6, %c0_7] : memref<1024x512xbf16, #tpu.memory_space<vmem>>, vector<1024x512xbf16>
    %cst_8 = arith.constant dense<0.000000e+00> : vector<8x512xf32>
    %12 = tpu.matmul %10, %11, %cst_8 {dimension_numbers = #tpu.dot_dimension_numbers<[1], [0], [0], [1], [0, 0, 1, 1], [], []>} : vector<8x1024xbf16>, vector<1024x512xbf16>, vector<8x512xf32> -> vector<8x512xf32>
    %c0_9 = arith.constant 0 : index
    %c0_10 = arith.constant 0 : index
    %13 = vector.load %arg5[%c0_9, %c0_10] : memref<1x512xf32, #tpu.memory_space<vmem>>, vector<1x512xf32>
    %14 = vector.broadcast %13 : vector<1x512xf32> to vector<8x512xf32>
    %15 = arith.addf %12, %14 : vector<8x512xf32>
    %cst_11 = arith.constant 2.000000e-01 : f32
    %16 = vector.broadcast %cst_11 : f32 to vector<8x512xf32>
    %17 = arith.mulf %16, %15 : vector<8x512xf32>
    %18 = arith.maximumf %15, %17 : vector<8x512xf32>
    %19 = arith.truncf %18 : vector<8x512xf32> to vector<8x512xbf16>
    %c0_12 = arith.constant 0 : index
    %c0_13 = arith.constant 0 : index
    %20 = vector.load %arg6[%c0_12, %c0_13] : memref<512x128xbf16, #tpu.memory_space<vmem>>, vector<512x128xbf16>
    %cst_14 = arith.constant dense<0.000000e+00> : vector<8x128xf32>
    %21 = tpu.matmul %19, %20, %cst_14 {dimension_numbers = #tpu.dot_dimension_numbers<[1], [0], [0], [1], [0, 0, 1, 1], [], []>} : vector<8x512xbf16>, vector<512x128xbf16>, vector<8x128xf32> -> vector<8x128xf32>
    %c0_15 = arith.constant 0 : index
    %c0_16 = arith.constant 0 : index
    %22 = vector.load %arg7[%c0_15, %c0_16] : memref<1x128xf32, #tpu.memory_space<vmem>>, vector<1x128xf32>
    %23 = vector.broadcast %22 : vector<1x128xf32> to vector<8x128xf32>
    %24 = arith.addf %21, %23 : vector<8x128xf32>
    %c0_17 = arith.constant 0 : index
    %c0_18 = arith.constant 0 : index
    %25 = vector.load %arg8[%c0_17, %c0_18] : memref<8x128xf32, #tpu.memory_space<vmem>>, vector<8x128xf32>
    tpu.vector_store %arg8[%c0_17, %c0_18], %24 {strides = array<i32>} : memref<8x128xf32, #tpu.memory_space<vmem>>, vector<8x128xf32>,
    return
  }
  func.func @transform_0(%arg0: i32) -> (i32, i32) {
    %c0_i32 = arith.constant 0 : i32
    %c0_i32_0 = arith.constant 0 : i32
    return %arg0, %c0_i32 : i32, i32
  }
  func.func @transform_1(%arg0: i32) -> (i32, i32) {
    %c0_i32 = arith.constant 0 : i32
    %c0_i32_0 = arith.constant 0 : i32
    %c0_i32_1 = arith.constant 0 : i32
    return %c0_i32, %c0_i32_0 : i32, i32
  }
  func.func @transform_2(%arg0: i32) -> (i32, i32) {
    %c0_i32 = arith.constant 0 : i32
    %c0_i32_0 = arith.constant 0 : i32
    %c0_i32_1 = arith.constant 0 : i32
    return %c0_i32, %c0_i32_0 : i32, i32
  }
  func.func @transform_3(%arg0: i32) -> (i32, i32) {
    %c0_i32 = arith.constant 0 : i32
    %c0_i32_0 = arith.constant 0 : i32
    %c0_i32_1 = arith.constant 0 : i32
    return %c0_i32, %c0_i32_0 : i32, i32
  }
  func.func @transform_4(%arg0: i32) -> (i32, i32) {
    %c0_i32 = arith.constant 0 : i32
    %c0_i32_0 = arith.constant 0 : i32
    %c0_i32_1 = arith.constant 0 : i32
    return %c0_i32, %c0_i32_0 : i32, i32
  }
  func.func @transform_5(%arg0: i32) -> (i32, i32) {
    %c0_i32 = arith.constant 0 : i32
    %c0_i32_0 = arith.constant 0 : i32
    %c0_i32_1 = arith.constant 0 : i32
    return %c0_i32, %c0_i32_0 : i32, i32
  }
  func.func @transform_6(%arg0: i32) -> (i32, i32) {
    %c0_i32 = arith.constant 0 : i32
    %c0_i32_0 = arith.constant 0 : i32
    %c0_i32_1 = arith.constant 0 : i32
    return %c0_i32, %c0_i32_0 : i32, i32
  }
  func.func @transform_7(%arg0: i32) -> (i32, i32) {
    %c0_i32 = arith.constant 0 : i32
    %c0_i32_0 = arith.constant 0 : i32
    return %arg0, %c0_i32 : i32, i32
  }
}

</mosaic_0001>

<llo_original>
// kernel: tpu_custom_call.1
$region0: #{tpu_custom_call.1}
  #allocation0 [shape = 'u32[]', space=smem, size = 0x4, offset = 0x4, fixed_abs, tag = 'smem constant byte address 0x4 - core index']
  #allocation1 [shape = 'u32[144,128]{1,0:T(1,128)}', space=vmem, size = 0x12000, scoped, tag = 'internal scratch']
  %s0 = inlined_call_operand.hbm [shape: f32[2,768], index: 0, kind: input, shape index: {}]
  %s1 = inlined_call_operand.hbm [shape: bf16[768,1024], index: 1, kind: input, shape index: {}]
  %s2 = inlined_call_operand.hbm [shape: f32[1,1024], index: 2, kind: input, shape index: {}]
  %s3 = inlined_call_operand.hbm [shape: bf16[1024,512], index: 3, kind: input, shape index: {}]
  %s4 = inlined_call_operand.hbm [shape: f32[1,512], index: 4, kind: input, shape index: {}]
  %s5 = inlined_call_operand.hbm [shape: bf16[512,128], index: 5, kind: input, shape index: {}]
  %s6 = inlined_call_operand.hbm [shape: f32[1,128], index: 6, kind: input, shape index: {}]
  %s7 = inlined_call_operand.hbm [shape: f32[2,128], index: 7, kind: output, shape index: {}]
  %s8 = sld [smem:[#allocation0]]
  $region66: #{tpu_custom_call.1} parent=0
    _
  %s10 = ssub.s32 1, %s8
  %s11 = scalar_select 0, %s10, %s8
  $region1: #{tpu_custom_call.1} parent=0
    #allocation2 [shape = 'u8[24576]{0}', space=vmem, size = 0x6000, scoped, tag = 'input window, operand 0, single buffered']
    #allocation3 [shape = 's32[1]{0}', space=sflag, size = 0x4, scoped, tag = 'scoped memory for tpu_custom_call.1']
    #allocation4 [shape = 's32[1]{0}', space=sflag, size = 0x4, scoped, tag = 'scoped memory for tpu_custom_call.1']
    #allocation5 [shape = 'u8[1572864]{0}', space=vmem, size = 0x180000, scoped, tag = 'input window, operand 1, single buffered']
    #allocation6 [shape = 's32[1]{0}', space=sflag, size = 0x4, scoped, tag = 'scoped memory for tpu_custom_call.1']
    #allocation7 [shape = 'u8[4096]{0}', space=vmem, size = 0x1000, scoped, tag = 'input window, operand 2, single buffered']
    #allocation8 [shape = 'u8[1048576]{0}', space=vmem, size = 0x100000, scoped, tag = 'input window, operand 3, single buffered']
    #allocation9 [shape = 's32[1]{0}', space=sflag, size = 0x4, scoped, tag = 'scoped memory for tpu_custom_call.1']
    #allocation10 [shape = 'u8[2048]{0}', space=vmem, size = 0x800, scoped, tag = 'input window, operand 4, single buffered']
    #allocation11 [shape = 'u8[131072]{0}', space=vmem, size = 0x20000, scoped, tag = 'input window, operand 5, single buffered']
    #allocation12 [shape = 's32[1]{0}', space=sflag, size = 0x4, scoped, tag = 'scoped memory for tpu_custom_call.1']
    #allocation13 [shape = 'u8[512]{0}', space=vmem, size = 0x400, scoped, tag = 'input window, operand 6, single buffered']
    #allocation14 [shape = 'u8[4096]{0}', space=vmem, size = 0x1000, scoped, tag = 'output window, operand 0, single buffered']
    %12 = vsyncpa [#allocation3], 0
    %13 = vsyncpa [#allocation6], 0
    %14 = vsyncpa [#allocation9], 0
    %15 = vsyncpa [#allocation12], 0
    %16 = vsyncpa [#allocation4], 0
    // Predicated region
    $region2: #{tpu_custom_call.1} parent=1 // pred_check
      _
    $region3: #{tpu_custom_call.1} parent=1 // pred_check_branch
      %18 = sbr.rel (0) target = $region5
    $region4: #{tpu_custom_call.1} parent=1 // pred_region
      %s20 = ssub.s32 768, 192
      %21 = vsyncadd [#allocation3], %s20
      %s22 = sshll.u32 [#allocation2], 4
      %s23 = int_to_ptr.vmem [resolvable:$true] %s22
      %28 = dma.hbm_to_vmem [thread:$0]  %s0, 192, %s23, [#allocation3], 192, 192, 12
    $region5: #{tpu_custom_call.1} parent=1 // pred_fallthru
      _
    // Predicated region
    $region6: #{tpu_custom_call.1} parent=1 // pred_check
      _
    $region7: #{tpu_custom_call.1} parent=1 // pred_check_branch
      %30 = sbr.rel (0) target = $region9
    $region8: #{tpu_custom_call.1} parent=1 // pred_region
      %s32 = ssub.s32 49152, 49152
      %33 = vsyncadd [#allocation6], %s32
      %s34 = sshll.u32 [#allocation5], 4
      %s35 = int_to_ptr.vmem [resolvable:$true] %s34
      %40 = dma.hbm_to_vmem [thread:$0]  %s1, 49152, %s35, [#allocation6], 512, 512, 32
    $region9: #{tpu_custom_call.1} parent=1 // pred_fallthru
      _
    // Predicated region
    $region10: #{tpu_custom_call.1} parent=1 // pred_check
      _
    $region11: #{tpu_custom_call.1} parent=1 // pred_check_branch
      %42 = sbr.rel (0) target = $region13
    $region12: #{tpu_custom_call.1} parent=1 // pred_region
      %s44 = ssub.s32 128, 128
      %45 = vsyncadd [#allocation6], %s44
      %s47 = sshll.u32 [#allocation7], 4
      %s48 = int_to_ptr.vmem [resolvable:$true] %s47
      %50 = dma.hbm_to_vmem [thread:$0]  %s2, 128, %s48, [#allocation6]
    $region13: #{tpu_custom_call.1} parent=1 // pred_fallthru
      _
    // Predicated region
    $region14: #{tpu_custom_call.1} parent=1 // pred_check
      _
    $region15: #{tpu_custom_call.1} parent=1 // pred_check_branch
      %52 = sbr.rel (0) target = $region17
    $region16: #{tpu_custom_call.1} parent=1 // pred_region
      %s54 = ssub.s32 32768, 32768
      %55 = vsyncadd [#allocation9], %s54
      %s56 = sshll.u32 [#allocation8], 4
      %s57 = int_to_ptr.vmem [resolvable:$true] %s56
      %62 = dma.hbm_to_vmem [thread:$0]  %s3, 32768, %s57, [#allocation9], 256, 256, 16
    $region17: #{tpu_custom_call.1} parent=1 // pred_fallthru
      _
    // Predicated region
    $region18: #{tpu_custom_call.1} parent=1 // pred_check
      _
    $region19: #{tpu_custom_call.1} parent=1 // pred_check_branch
      %64 = sbr.rel (0) target = $region21
    $region20: #{tpu_custom_call.1} parent=1 // pred_region
      %s66 = ssub.s32 64, 64
      %67 = vsyncadd [#allocation9], %s66
      %s69 = sshll.u32 [#allocation10], 4
      %s70 = int_to_ptr.vmem [resolvable:$true] %s69
      %72 = dma.hbm_to_vmem [thread:$0]  %s4, 64, %s70, [#allocation9]
    $region21: #{tpu_custom_call.1} parent=1 // pred_fallthru
      _
    // Predicated region
    $region22: #{tpu_custom_call.1} parent=1 // pred_check
      _
    $region23: #{tpu_custom_call.1} parent=1 // pred_check_branch
      %74 = sbr.rel (0) target = $region25
    $region24: #{tpu_custom_call.1} parent=1 // pred_region
      %s76 = ssub.s32 4096, 4096
      %77 = vsyncadd [#allocation12], %s76
      %s78 = sshll.u32 [#allocation11], 4
      %s79 = int_to_ptr.vmem [resolvable:$true] %s78
      %84 = dma.hbm_to_vmem [thread:$0]  %s5, 4096, %s79, [#allocation12], 64, 64, 4
    $region25: #{tpu_custom_call.1} parent=1 // pred_fallthru
      _
    // Predicated region
    $region26: #{tpu_custom_call.1} parent=1 // pred_check
      _
    $region27: #{tpu_custom_call.1} parent=1 // pred_check_branch
      %86 = sbr.rel (0) target = $region29
    $region28: #{tpu_custom_call.1} parent=1 // pred_region
      %s88 = ssub.s32 16, 16
      %89 = vsyncadd [#allocation12], %s88
      %s91 = sshll.u32 [#allocation13], 4
      %s92 = int_to_ptr.vmem [resolvable:$true] %s91
      %94 = dma.hbm_to_vmem [thread:$0]  %s6, 16, %s92, [#allocation12]
    $region29: #{tpu_custom_call.1} parent=1 // pred_fallthru
      _
    // Predicated region
    $region30: #{tpu_custom_call.1} parent=1 // pred_check
      _
    $region31: #{tpu_custom_call.1} parent=1 // pred_check_branch
      %96 = sbr.rel (0) target = $region33
    $region32: #{tpu_custom_call.1} parent=1 // pred_region
      %97 = dma.done [#allocation3], 768
    $region33: #{tpu_custom_call.1} parent=1 // pred_fallthru
      _
    // Predicated region
    $region34: #{tpu_custom_call.1} parent=1 // pred_check
      _
    $region35: #{tpu_custom_call.1} parent=1 // pred_check_branch
      %99 = sbr.rel (0) target = $region37
    $region36: #{tpu_custom_call.1} parent=1 // pred_region
      %100 = dma.done [#allocation6], 49152
    $region37: #{tpu_custom_call.1} parent=1 // pred_fallthru
      _
    // Predicated region
    $region38: #{tpu_custom_call.1} parent=1 // pred_check
      _
    $region39: #{tpu_custom_call.1} parent=1 // pred_check_branch
      %102 = sbr.rel (0) target = $region41
    $region40: #{tpu_custom_call.1} parent=1 // pred_region
      %103 = dma.done [#allocation6], 128
    $region41: #{tpu_custom_call.1} parent=1 // pred_fallthru
      _
    // Predicated region
    $region42: #{tpu_custom_call.1} parent=1 // pred_check
      _
    $region43: #{tpu_custom_call.1} parent=1 // pred_check_branch
      %105 = sbr.rel (0) target = $region45
    $region44: #{tpu_custom_call.1} parent=1 // pred_region
      %106 = dma.done [#allocation9], 32768
    $region45: #{tpu_custom_call.1} parent=1 // pred_fallthru
      _
    // Predicated region
    $region46: #{tpu_custom_call.1} parent=1 // pred_check
      _
    $region47: #{tpu_custom_call.1} parent=1 // pred_check_branch
      %108 = sbr.rel (0) target = $region49
    $region48: #{tpu_custom_call.1} parent=1 // pred_region
      %109 = dma.done [#allocation9], 64
    $region49: #{tpu_custom_call.1} parent=1 // pred_fallthru
      _
    // Predicated region
    $region50: #{tpu_custom_call.1} parent=1 // pred_check
      _
    $region51: #{tpu_custom_call.1} parent=1 // pred_check_branch
      %111 = sbr.rel (0) target = $region53
    $region52: #{tpu_custom_call.1} parent=1 // pred_region
      %112 = dma.done [#allocation12], 4096
    $region53: #{tpu_custom_call.1} parent=1 // pred_fallthru
      _
    // Predicated region
    $region54: #{tpu_custom_call.1} parent=1 // pred_check
      _
    $region55: #{tpu_custom_call.1} parent=1 // pred_check_branch
      %114 = sbr.rel (0) target = $region57
    $region56: #{tpu_custom_call.1} parent=1 // pred_region
      %115 = dma.done [#allocation12], 16
    $region57: #{tpu_custom_call.1} parent=1 // pred_fallthru
      _
    %v117 = vld [vmem:[#allocation2] sm:$0xff]
    %v118 = vld [vmem:[#allocation2 + $0x8] sm:$0xf]
    %v119 = vld [vmem:[#allocation2 + $0xc] sm:$0xff]
    %v120 = vld [vmem:[#allocation2 + $0x14] sm:$0xf]
    %v121 = vld [vmem:[#allocation2 + $0x18] sm:$0xff]
    %v122 = vld [vmem:[#allocation2 + $0x20] sm:$0xf]
    %v123 = vld [vmem:[#allocation2 + $0x24] sm:$0xff]
    %v124 = vld [vmem:[#allocation2 + $0x2c] sm:$0xf]
    %v133 = vcombine.low %v117, %v119
    %v134 = vcombine.high %v117, %v119
    %v135 = vcombine.low %v121, %v123
    %v136 = vcombine.high %v121, %v123
    %v138 = vunpack.c.l.s4 1983009808
    %v139 = vunpack.c.0.s8 %v138
    %v140 = vlaneseq
    %v141 = vshrl.u32 %v140, 7
    %v142 = vsub.s32 %v139, %v141
    %v143 = vrot.slane %v133, %v142
    %v145 = vunpack.c.l.s4 1983009808
    %v146 = vunpack.c.0.s8 %v145
    %v147 = vlaneseq
    %v148 = vshrl.u32 %v147, 7
    %v149 = vsub.s32 %v146, %v148
    %v150 = vrot.slane %v134, %v149
    %v152 = vunpack.c.l.s4 1983009808
    %v153 = vunpack.c.0.s8 %v152
    %v154 = vlaneseq
    %v155 = vshrl.u32 %v154, 7
    %v156 = vsub.s32 %v153, %v155
    %v157 = vrot.slane %v135, %v156
    %v159 = vunpack.c.l.s4 1983009808
    %v160 = vunpack.c.0.s8 %v159
    %v161 = vlaneseq
    %v162 = vshrl.u32 %v161, 7
    %v163 = vsub.s32 %v160, %v162
    %v164 = vrot.slane %v136, %v163
    %v165 = vcombine.low %v143, %v157
    %v166 = vcombine.high %v143, %v157
    %v167 = vcombine.low %v150, %v164
    %v168 = vcombine.high %v150, %v164
    %v169 = vcombine.low %v118, %v120
    %v170 = vcombine.low %v122, %v124
    %v172 = vunpack.c.l.s4 1983009808
    %v173 = vunpack.c.0.s8 %v172
    %v174 = vlaneseq
    %v175 = vshrl.u32 %v174, 7
    %v176 = vsub.s32 %v173, %v175
    %v177 = vrot.slane %v169, %v176
    %v179 = vunpack.c.l.s4 1983009808
    %v180 = vunpack.c.0.s8 %v179
    %v181 = vlaneseq
    %v182 = vshrl.u32 %v181, 7
    %v183 = vsub.s32 %v180, %v182
    %v184 = vrot.slane %v170, %v183
    %v185 = vcombine.low %v177, %v184
    %v186 = vcombine.high %v177, %v184
    %v193 = vpack.c.bf16 %v165, %v165
    %v194 = vpack.c.bf16 %v166, %v166
    %v195 = vpack.c.bf16 %v167, %v167
    %v196 = vpack.c.bf16 %v168, %v168
    %v197 = vpack.c.bf16 %v185, %v185
    %v198 = vpack.c.bf16 %v186, %v186
    %v199 = vld [vmem:[#allocation5] sm:$0xff]
    %v200 = vld [vmem:[#allocation5 + $0x8] sm:$0xff]
    %v201 = vld [vmem:[#allocation5 + $0x10] sm:$0xff]
    %v202 = vld [vmem:[#allocation5 + $0x18] sm:$0xff]
    %v203 = vld [vmem:[#allocation5 + $0x20] sm:$0xff]
    %v204 = vld [vmem:[#allocation5 + $0x28] sm:$0xff]
    %v205 = vld [vmem:[#allocation5 + $0x30] sm:$0xff]
    %v206 = vld [vmem:[#allocation5 + $0x38] sm:$0xff]
    %v207 = vld [vmem:[#allocation5 + $0x40] sm:$0xff]
    %v208 = vld [vmem:[#allocation5 + $0x48] sm:$0xff]
    %v209 = vld [vmem:[#allocation5 + $0x50] sm:$0xff]
    %v210 = vld [vmem:[#allocation5 + $0x58] sm:$0xff]
    %v211 = vld [vmem:[#allocation5 + $0x60] sm:$0xff]
    %v212 = vld [vmem:[#allocation5 + $0x68] sm:$0xff]
    %v213 = vld [vmem:[#allocation5 + $0x70] sm:$0xff]
    %v214 = vld [vmem:[#allocation5 + $0x78] sm:$0xff]
    %v215 = vld [vmem:[#allocation5 + $0x80] sm:$0xff]
    %v216 = vld [vmem:[#allocation5 + $0x88] sm:$0xff]
    %v217 = vld [vmem:[#allocation5 + $0x90] sm:$0xff]
    %v218 = vld [vmem:[#allocation5 + $0x98] sm:$0xff]
    %v219 = vld [vmem:[#allocation5 + $0xa0] sm:$0xff]
    %v220 = vld [vmem:[#allocation5 + $0xa8] sm:$0xff]
    %v221 = vld [vmem:[#allocation5 + $0xb0] sm:$0xff]
    %v222 = vld [vmem:[#allocation5 + $0xb8] sm:$0xff]
    %v223 = vld [vmem:[#allocation5 + $0xc0] sm:$0xff]
    %v224 = vld [vmem:[#allocation5 + $0xc8] sm:$0xff]
    %v225 = vld [vmem:[#allocation5 + $0xd0] sm:$0xff]
    %v226 = vld [vmem:[#allocation5 + $0xd8] sm:$0xff]
    %v227 = vld [vmem:[#allocation5 + $0xe0] sm:$0xff]
    %v228 = vld [vmem:[#allocation5 + $0xe8] sm:$0xff]
    %v229 = vld [vmem:[#allocation5 + $0xf0] sm:$0xff]
    %v230 = vld [vmem:[#allocation5 + $0xf8] sm:$0xff]
    %v231 = vld [vmem:[#allocation5 + $0x100] sm:$0xff]
    %v232 = vld [vmem:[#allocation5 + $0x108] sm:$0xff]
    %v233 = vld [vmem:[#allocation5 + $0x110] sm:$0xff]
    %v234 = vld [vmem:[#allocation5 + $0x118] sm:$0xff]
    %v235 = vld [vmem:[#allocation5 + $0x120] sm:$0xff]
    %v236 = vld [vmem:[#allocation5 + $0x128] sm:$0xff]
    %v237 = vld [vmem:[#allocation5 + $0x130] sm:$0xff]
    %v238 = vld [vmem:[#allocation5 + $0x138] sm:$0xff]
    %v239 = vld [vmem:[#allocation5 + $0x140] sm:$0xff]
    %v240 = vld [vmem:[#allocation5 + $0x148] sm:$0xff]
    %v241 = vld [vmem:[#allocation5 + $0x150] sm:$0xff]
    %v242 = vld [vmem:[#allocation5 + $0x158] sm:$0xff]
    %v243 = vld [vmem:[#allocation5 + $0x160] sm:$0xff]
    %v244 = vld [vmem:[#allocation5 + $0x168] sm:$0xff]
    %v245 = vld [vmem:[#allocation5 + $0x170] sm:$0xff]
    %v246 = vld [vmem:[#allocation5 + $0x178] sm:$0xff]
    %v247 = vld [vmem:[#allocation5 + $0x180] sm:$0xff]
    %v248 = vld [vmem:[#allocation5 + $0x188] sm:$0xff]
    %v249 = vld [vmem:[#allocation5 + $0x190] sm:$0xff]
    %v250 = vld [vmem:[#allocation5 + $0x198] sm:$0xff]
    %v251 = vld [vmem:[#allocation5 + $0x1a0] sm:$0xff]
    %v252 = vld [vmem:[#allocation5 + $0x1a8] sm:$0xff]
    %v253 = vld [vmem:[#allocation5 + $0x1b0] sm:$0xff]
    %v254 = vld [vmem:[#allocation5 + $0x1b8] sm:$0xff]
    %v255 = vld [vmem:[#allocation5 + $0x1c0] sm:$0xff]
    %v256 = vld [vmem:[#allocation5 + $0x1c8] sm:$0xff]
    %v257 = vld [vmem:[#allocation5 + $0x1d0] sm:$0xff]
    %v258 = vld [vmem:[#allocation5 + $0x1d8] sm:$0xff]
    %v259 = vld [vmem:[#allocation5 + $0x1e0] sm:$0xff]
    %v260 = vld [vmem:[#allocation5 + $0x1e8] sm:$0xff]
    %v261 = vld [vmem:[#allocation5 + $0x1f0] sm:$0xff]
    %v262 = vld [vmem:[#allocation5 + $0x1f8] sm:$0xff]
    %v263 = vld [vmem:[#allocation5 + $0x200] sm:$0xff]
    %v264 = vld [vmem:[#allocation5 + $0x208] sm:$0xff]
    %v265 = vld [vmem:[#allocation5 + $0x210] sm:$0xff]
    %v266 = vld [vmem:[#allocation5 + $0x218] sm:$0xff]
    %v267 = vld [vmem:[#allocation5 + $0x220] sm:$0xff]
    %v268 = vld [vmem:[#allocation5 + $0x228] sm:$0xff]
    %v269 = vld [vmem:[#allocation5 + $0x230] sm:$0xff]
    %v270 = vld [vmem:[#allocation5 + $0x238] sm:$0xff]
    %v271 = vld [vmem:[#allocation5 + $0x240] sm:$0xff]
    %v272 = vld [vmem:[#allocation5 + $0x248] sm:$0xff]
    %v273 = vld [vmem:[#allocation5 + $0x250] sm:$0xff]
    %v274 = vld [vmem:[#allocation5 + $0x258] sm:$0xff]
    %v275 = vld [vmem:[#allocation5 + $0x260] sm:$0xff]
    %v276 = vld [vmem:[#allocation5 + $0x268] sm:$0xff]
    %v277 = vld [vmem:[#allocation5 + $0x270] sm:$0xff]
    %v278 = vld [vmem:[#allocation5 + $0x278] sm:$0xff]
    %v279 = vld [vmem:[#allocation5 + $0x280] sm:$0xff]
    %v280 = vld [vmem:[#allocation5 + $0x288] sm:$0xff]
    %v281 = vld [vmem:[#allocation5 + $0x290] sm:$0xff]
    %v282 = vld [vmem:[#allocation5 + $0x298] sm:$0xff]
    %v283 = vld [vmem:[#allocation5 + $0x2a0] sm:$0xff]
    %v284 = vld [vmem:[#allocation5 + $0x2a8] sm:$0xff]
    %v285 = vld [vmem:[#allocation5 + $0x2b0] sm:$0xff]
    %v286 = vld [vmem:[#allocation5 + $0x2b8] sm:$0xff]
    %v287 = vld [vmem:[#allocation5 + $0x2c0] sm:$0xff]
    %v288 = vld [vmem:[#allocation5 + $0x2c8] sm:$0xff]
    %v289 = vld [vmem:[#allocation5 + $0x2d0] sm:$0xff]
    %v290 = vld [vmem:[#allocation5 + $0x2d8] sm:$0xff]
    %v291 = vld [vmem:[#allocation5 + $0x2e0] sm:$0xff]
    %v292 = vld [vmem:[#allocation5 + $0x2e8] sm:$0xff]
    %v293 = vld [vmem:[#allocation5 + $0x2f0] sm:$0xff]
    %v294 = vld [vmem:[#allocation5 + $0x2f8] sm:$0xff]
    %v295 = vld [vmem:[#allocation5 + $0x300] sm:$0xff]
    %v296 = vld [vmem:[#allocation5 + $0x308] sm:$0xff]
    %v297 = vld [vmem:[#allocation5 + $0x310] sm:$0xff]
    %v298 = vld [vmem:[#allocation5 + $0x318] sm:$0xff]
    %v299 = vld [vmem:[#allocation5 + $0x320] sm:$0xff]
    %v300 = vld [vmem:[#allocation5 + $0x328] sm:$0xff]
    %v301 = vld [vmem:[#allocation5 + $0x330] sm:$0xff]
    %v302 = vld [vmem:[#allocation5 + $0x338] sm:$0xff]
    %v303 = vld [vmem:[#allocation5 + $0x340] sm:$0xff]
    %v304 = vld [vmem:[#allocation5 + $0x348] sm:$0xff]
    %v305 = vld [vmem:[#allocation5 + $0x350] sm:$0xff]
    %v306 = vld [vmem:[#allocation5 + $0x358] sm:$0xff]
    %v307 = vld [vmem:[#allocation5 + $0x360] sm:$0xff]
    %v308 = vld [vmem:[#allocation5 + $0x368] sm:$0xff]
    %v309 = vld [vmem:[#allocation5 + $0x370] sm:$0xff]
    %v310 = vld [vmem:[#allocation5 + $0x378] sm:$0xff]
    %v311 = vld [vmem:[#allocation5 + $0x380] sm:$0xff]
    %v312 = vld [vmem:[#allocation5 + $0x388] sm:$0xff]
    %v313 = vld [vmem:[#allocation5 + $0x390] sm:$0xff]
    %v314 = vld [vmem:[#allocation5 + $0x398] sm:$0xff]
    %v315 = vld [vmem:[#allocation5 + $0x3a0] sm:$0xff]
    %v316 = vld [vmem:[#allocation5 + $0x3a8] sm:$0xff]
    %v317 = vld [vmem:[#allocation5 + $0x3b0] sm:$0xff]
    %v318 = vld [vmem:[#allocation5 + $0x3b8] sm:$0xff]
    %v319 = vld [vmem:[#allocation5 + $0x3c0] sm:$0xff]
    %v320 = vld [vmem:[#allocation5 + $0x3c8] sm:$0xff]
    %v321 = vld [vmem:[#allocation5 + $0x3d0] sm:$0xff]
    %v322 = vld [vmem:[#allocation5 + $0x3d8] sm:$0xff]
    %v323 = vld [vmem:[#allocation5 + $0x3e0] sm:$0xff]
    %v324 = vld [vmem:[#allocation5 + $0x3e8] sm:$0xff]
    %v325 = vld [vmem:[#allocation5 + $0x3f0] sm:$0xff]
    %v326 = vld [vmem:[#allocation5 + $0x3f8] sm:$0xff]
    %v327 = vld [vmem:[#allocation5 + $0x400] sm:$0xff]
    %v328 = vld [vmem:[#allocation5 + $0x408] sm:$0xff]
    %v329 = vld [vmem:[#allocation5 + $0x410] sm:$0xff]
    %v330 = vld [vmem:[#allocation5 + $0x418] sm:$0xff]
    %v331 = vld [vmem:[#allocation5 + $0x420] sm:$0xff]
    %v332 = vld [vmem:[#allocation5 + $0x428] sm:$0xff]
    %v333 = vld [vmem:[#allocation5 + $0x430] sm:$0xff]
    %v334 = vld [vmem:[#allocation5 + $0x438] sm:$0xff]
    %v335 = vld [vmem:[#allocation5 + $0x440] sm:$0xff]
    %v336 = vld [vmem:[#allocation5 + $0x448] sm:$0xff]
    %v337 = vld [vmem:[#allocation5 + $0x450] sm:$0xff]
    %v338 = vld [vmem:[#allocation5 + $0x458] sm:$0xff]
    %v339 = vld [vmem:[#allocation5 + $0x460] sm:$0xff]
    %v340 = vld [vmem:[#allocation5 + $0x468] sm:$0xff]
    %v341 = vld [vmem:[#allocation5 + $0x470] sm:$0xff]
    %v342 = vld [vmem:[#allocation5 + $0x478] sm:$0xff]
    %v343 = vld [vmem:[#allocation5 + $0x480] sm:$0xff]
    %v344 = vld [vmem:[#allocation5 + $0x488] sm:$0xff]
    %v345 = vld [vmem:[#allocation5 + $0x490] sm:$0xff]
    %v346 = vld [vmem:[#allocation5 + $0x498] sm:$0xff]
    %v347 = vld [vmem:[#allocation5 + $0x4a0] sm:$0xff]
    %v348 = vld [vmem:[#allocation5 + $0x4a8] sm:$0xff]
    %v349 = vld [vmem:[#allocation5 + $0x4b0] sm:$0xff]
    %v350 = vld [vmem:[#allocation5 + $0x4b8] sm:$0xff]
    %v351 = vld [vmem:[#allocation5 + $0x4c0] sm:$0xff]
    %v352 = vld [vmem:[#allocation5 + $0x4c8] sm:$0xff]
    %v353 = vld [vmem:[#allocation5 + $0x4d0] sm:$0xff]
    %v354 = vld [vmem:[#allocation5 + $0x4d8] sm:$0xff]
    %v355 = vld [vmem:[#allocation5 + $0x4e0] sm:$0xff]
    %v356 = vld [vmem:[#allocation5 + $0x4e8] sm:$0xff]
    %v357 = vld [vmem:[#allocation5 + $0x4f0] sm:$0xff]
    %v358 = vld [vmem:[#allocation5 + $0x4f8] sm:$0xff]
    %v359 = vld [vmem:[#allocation5 + $0x500] sm:$0xff]
    %v360 = vld [vmem:[#allocation5 + $0x508] sm:$0xff]
    %v361 = vld [vmem:[#allocation5 + $0x510] sm:$0xff]
    %v362 = vld [vmem:[#allocation5 + $0x518] sm:$0xff]
    %v363 = vld [vmem:[#allocation5 + $0x520] sm:$0xff]
    %v364 = vld [vmem:[#allocation5 + $0x528] sm:$0xff]
    %v365 = vld [vmem:[#allocation5 + $0x530] sm:$0xff]
    %v366 = vld [vmem:[#allocation5 + $0x538] sm:$0xff]
    %v367 = vld [vmem:[#allocation5 + $0x540] sm:$0xff]
    %v368 = vld [vmem:[#allocation5 + $0x548] sm:$0xff]
    %v369 = vld [vmem:[#allocation5 + $0x550] sm:$0xff]
    %v370 = vld [vmem:[#allocation5 + $0x558] sm:$0xff]
    %v371 = vld [vmem:[#allocation5 + $0x560] sm:$0xff]
    %v372 = vld [vmem:[#allocation5 + $0x568] sm:$0xff]
    %v373 = vld [vmem:[#allocation5 + $0x570] sm:$0xff]
    %v374 = vld [vmem:[#allocation5 + $0x578] sm:$0xff]
    %v375 = vld [vmem:[#allocation5 + $0x580] sm:$0xff]
    %v376 = vld [vmem:[#allocation5 + $0x588] sm:$0xff]
    %v377 = vld [vmem:[#allocation5 + $0x590] sm:$0xff]
    %v378 = vld [vmem:[#allocation5 + $0x598] sm:$0xff]
    %v379 = vld [vmem:[#allocation5 + $0x5a0] sm:$0xff]
    %v380 = vld [vmem:[#allocation5 + $0x5a8] sm:$0xff]
    %v381 = vld [vmem:[#allocation5 + $0x5b0] sm:$0xff]
    %v382 = vld [vmem:[#allocation5 + $0x5b8] sm:$0xff]
    %v383 = vld [vmem:[#allocation5 + $0x5c0] sm:$0xff]
    %v384 = vld [vmem:[#allocation5 + $0x5c8] sm:$0xff]
    %v385 = vld [vmem:[#allocation5 + $0x5d0] sm:$0xff]
    %v386 = vld [vmem:[#allocation5 + $0x5d8] sm:$0xff]
    %v387 = vld [vmem:[#allocation5 + $0x5e0] sm:$0xff]
    %v388 = vld [vmem:[#allocation5 + $0x5e8] sm:$0xff]
    %v389 = vld [vmem:[#allocation5 + $0x5f0] sm:$0xff]
    %v390 = vld [vmem:[#allocation5 + $0x5f8] sm:$0xff]
    %v391 = vld [vmem:[#allocation5 + $0x600] sm:$0xff]
    %v392 = vld [vmem:[#allocation5 + $0x608] sm:$0xff]
    %v393 = vld [vmem:[#allocation5 + $0x610] sm:$0xff]
    %v394 = vld [vmem:[#allocation5 + $0x618] sm:$0xff]
    %v395 = vld [vmem:[#allocation5 + $0x620] sm:$0xff]
    %v396 = vld [vmem:[#allocation5 + $0x628] sm:$0xff]
    %v397 = vld [vmem:[#allocation5 + $0x630] sm:$0xff]
    %v398 = vld [vmem:[#allocation5 + $0x638] sm:$0xff]
    %v399 = vld [vmem:[#allocation5 + $0x640] sm:$0xff]
    %v400 = vld [vmem:[#allocation5 + $0x648] sm:$0xff]
    %v401 = vld [vmem:[#allocation5 + $0x650] sm:$0xff]
    %v402 = vld [vmem:[#allocation5 + $0x658] sm:$0xff]
    %v403 = vld [vmem:[#allocation5 + $0x660] sm:$0xff]
    %v404 = vld [vmem:[#allocation5 + $0x668] sm:$0xff]
    %v405 = vld [vmem:[#allocation5 + $0x670] sm:$0xff]
    %v406 = vld [vmem:[#allocation5 + $0x678] sm:$0xff]
    %v407 = vld [vmem:[#allocation5 + $0x680] sm:$0xff]
    %v408 = vld [vmem:[#allocation5 + $0x688] sm:$0xff]
    %v409 = vld [vmem:[#allocation5 + $0x690] sm:$0xff]
    %v410 = vld [vmem:[#allocation5 + $0x698] sm:$0xff]
    %v411 = vld [vmem:[#allocation5 + $0x6a0] sm:$0xff]
    %v412 = vld [vmem:[#allocation5 + $0x6a8] sm:$0xff]
    %v413 = vld [vmem:[#allocation5 + $0x6b0] sm:$0xff]
    %v414 = vld [vmem:[#allocation5 + $0x6b8] sm:$0xff]
    %v415 = vld [vmem:[#allocation5 + $0x6c0] sm:$0xff]
    %v416 = vld [vmem:[#allocation5 + $0x6c8] sm:$0xff]
    %v417 = vld [vmem:[#allocation5 + $0x6d0] sm:$0xff]
    %v418 = vld [vmem:[#allocation5 + $0x6d8] sm:$0xff]
    %v419 = vld [vmem:[#allocation5 + $0x6e0] sm:$0xff]
    %v420 = vld [vmem:[#allocation5 + $0x6e8] sm:$0xff]
    %v421 = vld [vmem:[#allocation5 + $0x6f0] sm:$0xff]
    %v422 = vld [vmem:[#allocation5 + $0x6f8] sm:$0xff]
    %v423 = vld [vmem:[#allocation5 + $0x700] sm:$0xff]
    %v424 = vld [vmem:[#allocation5 + $0x708] sm:$0xff]
    %v425 = vld [vmem:[#allocation5 + $0x710] sm:$0xff]
    %v426 = vld [vmem:[#allocation5 + $0x718] sm:$0xff]
    %v427 = vld [vmem:[#allocation5 + $0x720] sm:$0xff]
    %v428 = vld [vmem:[#allocation5 + $0x728] sm:$0xff]
    %v429 = vld [vmem:[#allocation5 + $0x730] sm:$0xff]
    %v430 = vld [vmem:[#allocation5 + $0x738] sm:$0xff]
    %v431 = vld [vmem:[#allocation5 + $0x740] sm:$0xff]
    %v432 = vld [vmem:[#allocation5 + $0x748] sm:$0xff]
    %v433 = vld [vmem:[#allocation5 + $0x750] sm:$0xff]
    %v434 = vld [vmem:[#allocation5 + $0x758] sm:$0xff]
    %v435 = vld [vmem:[#allocation5 + $0x760] sm:$0xff]
    %v436 = vld [vmem:[#allocation5 + $0x768] sm:$0xff]
    %v437 = vld [vmem:[#allocation5 + $0x770] sm:$0xff]
    %v438 = vld [vmem:[#allocation5 + $0x778] sm:$0xff]
    %v439 = vld [vmem:[#allocation5 + $0x780] sm:$0xff]
    %v440 = vld [vmem:[#allocation5 + $0x788] sm:$0xff]
    %v441 = vld [vmem:[#allocation5 + $0x790] sm:$0xff]
    %v442 = vld [vmem:[#allocation5 + $0x798] sm:$0xff]
    %v443 = vld [vmem:[#allocation5 + $0x7a0] sm:$0xff]
    %v444 = vld [vmem:[#allocation5 + $0x7a8] sm:$0xff]
    %v445 = vld [vmem:[#allocation5 + $0x7b0] sm:$0xff]
    %v446 = vld [vmem:[#allocation5 + $0x7b8] sm:$0xff]
    %v447 = vld [vmem:[#allocation5 + $0x7c0] sm:$0xff]
    %v448 = vld [vmem:[#allocation5 + $0x7c8] sm:$0xff]
    %v449 = vld [vmem:[#allocation5 + $0x7d0] sm:$0xff]
    %v450 = vld [vmem:[#allocation5 + $0x7d8] sm:$0xff]
    %v451 = vld [vmem:[#allocation5 + $0x7e0] sm:$0xff]
    %v452 = vld [vmem:[#allocation5 + $0x7e8] sm:$0xff]
    %v453 = vld [vmem:[#allocation5 + $0x7f0] sm:$0xff]
    %v454 = vld [vmem:[#allocation5 + $0x7f8] sm:$0xff]
    %v455 = vld [vmem:[#allocation5 + $0x800] sm:$0xff]
    %v456 = vld [vmem:[#allocation5 + $0x808] sm:$0xff]
    %v457 = vld [vmem:[#allocation5 + $0x810] sm:$0xff]
    %v458 = vld [vmem:[#allocation5 + $0x818] sm:$0xff]
    %v459 = vld [vmem:[#allocation5 + $0x820] sm:$0xff]
    %v460 = vld [vmem:[#allocation5 + $0x828] sm:$0xff]
    %v461 = vld [vmem:[#allocation5 + $0x830] sm:$0xff]
    %v462 = vld [vmem:[#allocation5 + $0x838] sm:$0xff]
    %v463 = vld [vmem:[#allocation5 + $0x840] sm:$0xff]
    %v464 = vld [vmem:[#allocation5 + $0x848] sm:$0xff]
    %v465 = vld [vmem:[#allocation5 + $0x850] sm:$0xff]
    %v466 = vld [vmem:[#allocation5 + $0x858] sm:$0xff]
    %v467 = vld [vmem:[#allocation5 + $0x860] sm:$0xff]
    %v468 = vld [vmem:[#allocation5 + $0x868] sm:$0xff]
    %v469 = vld [vmem:[#allocation5 + $0x870] sm:$0xff]
    %v470 = vld [vmem:[#allocation5 + $0x878] sm:$0xff]
    %v471 = vld [vmem:[#allocation5 + $0x880] sm:$0xff]
    %v472 = vld [vmem:[#allocation5 + $0x888] sm:$0xff]
    %v473 = vld [vmem:[#allocation5 + $0x890] sm:$0xff]
    %v474 = vld [vmem:[#allocation5 + $0x898] sm:$0xff]
    %v475 = vld [vmem:[#allocation5 + $0x8a0] sm:$0xff]
    %v476 = vld [vmem:[#allocation5 + $0x8a8] sm:$0xff]
    %v477 = vld [vmem:[#allocation5 + $0x8b0] sm:$0xff]
    %v478 = vld [vmem:[#allocation5 + $0x8b8] sm:$0xff]
    %v479 = vld [vmem:[#allocation5 + $0x8c0] sm:$0xff]
    %v480 = vld [vmem:[#allocation5 + $0x8c8] sm:$0xff]
    %v481 = vld [vmem:[#allocation5 + $0x8d0] sm:$0xff]
    %v482 = vld [vmem:[#allocation5 + $0x8d8] sm:$0xff]
    %v483 = vld [vmem:[#allocation5 + $0x8e0] sm:$0xff]
    %v484 = vld [vmem:[#allocation5 + $0x8e8] sm:$0xff]
    %v485 = vld [vmem:[#allocation5 + $0x8f0] sm:$0xff]
    %v486 = vld [vmem:[#allocation5 + $0x8f8] sm:$0xff]
    %v487 = vld [vmem:[#allocation5 + $0x900] sm:$0xff]
    %v488 = vld [vmem:[#allocation5 + $0x908] sm:$0xff]
    %v489 = vld [vmem:[#allocation5 + $0x910] sm:$0xff]
    %v490 = vld [vmem:[#allocation5 + $0x918] sm:$0xff]
    %v491 = vld [vmem:[#allocation5 + $0x920] sm:$0xff]
    %v492 = vld [vmem:[#allocation5 + $0x928] sm:$0xff]
    %v493 = vld [vmem:[#allocation5 + $0x930] sm:$0xff]
    %v494 = vld [vmem:[#allocation5 + $0x938] sm:$0xff]
    %v495 = vld [vmem:[#allocation5 + $0x940] sm:$0xff]
    %v496 = vld [vmem:[#allocation5 + $0x948] sm:$0xff]
    %v497 = vld [vmem:[#allocation5 + $0x950] sm:$0xff]
    %v498 = vld [vmem:[#allocation5 + $0x958] sm:$0xff]
    %v499 = vld [vmem:[#allocation5 + $0x960] sm:$0xff]
    %v500 = vld [vmem:[#allocation5 + $0x968] sm:$0xff]
    %v501 = vld [vmem:[#allocation5 + $0x970] sm:$0xff]
    %v502 = vld [vmem:[#allocation5 + $0x978] sm:$0xff]
    %v503 = vld [vmem:[#allocation5 + $0x980] sm:$0xff]
    %v504 = vld [vmem:[#allocation5 + $0x988] sm:$0xff]
    %v505 = vld [vmem:[#allocation5 + $0x990] sm:$0xff]
    %v506 = vld [vmem:[#allocation5 + $0x998] sm:$0xff]
    %v507 = vld [vmem:[#allocation5 + $0x9a0] sm:$0xff]
    %v508 = vld [vmem:[#allocation5 + $0x9a8] sm:$0xff]
    %v509 = vld [vmem:[#allocation5 + $0x9b0] sm:$0xff]
    %v510 = vld [vmem:[#allocation5 + $0x9b8] sm:$0xff]
    %v511 = vld [vmem:[#allocation5 + $0x9c0] sm:$0xff]
    %v512 = vld [vmem:[#allocation5 + $0x9c8] sm:$0xff]
    %v513 = vld [vmem:[#allocation5 + $0x9d0] sm:$0xff]
    %v514 = vld [vmem:[#allocation5 + $0x9d8] sm:$0xff]
    %v515 = vld [vmem:[#allocation5 + $0x9e0] sm:$0xff]
    %v516 = vld [vmem:[#allocation5 + $0x9e8] sm:$0xff]
    %v517 = vld [vmem:[#allocation5 + $0x9f0] sm:$0xff]
    %v518 = vld [vmem:[#allocation5 + $0x9f8] sm:$0xff]
    %v519 = vld [vmem:[#allocation5 + $0xa00] sm:$0xff]
    %v520 = vld [vmem:[#allocation5 + $0xa08] sm:$0xff]
    %v521 = vld [vmem:[#allocation5 + $0xa10] sm:$0xff]
    %v522 = vld [vmem:[#allocation5 + $0xa18] sm:$0xff]
    %v523 = vld [vmem:[#allocation5 + $0xa20] sm:$0xff]
    %v524 = vld [vmem:[#allocation5 + $0xa28] sm:$0xff]
    %v525 = vld [vmem:[#allocation5 + $0xa30] sm:$0xff]
    %v526 = vld [vmem:[#allocation5 + $0xa38] sm:$0xff]
    %v527 = vld [vmem:[#allocation5 + $0xa40] sm:$0xff]
    %v528 = vld [vmem:[#allocation5 + $0xa48] sm:$0xff]
    %v529 = vld [vmem:[#allocation5 + $0xa50] sm:$0xff]
    %v530 = vld [vmem:[#allocation5 + $0xa58] sm:$0xff]
    %v531 = vld [vmem:[#allocation5 + $0xa60] sm:$0xff]
    %v532 = vld [vmem:[#allocation5 + $0xa68] sm:$0xff]
    %v533 = vld [vmem:[#allocation5 + $0xa70] sm:$0xff]
    %v534 = vld [vmem:[#allocation5 + $0xa78] sm:$0xff]
    %v535 = vld [vmem:[#allocation5 + $0xa80] sm:$0xff]
    %v536 = vld [vmem:[#allocation5 + $0xa88] sm:$0xff]
    %v537 = vld [vmem:[#allocation5 + $0xa90] sm:$0xff]
    %v538 = vld [vmem:[#allocation5 + $0xa98] sm:$0xff]
    %v539 = vld [vmem:[#allocation5 + $0xaa0] sm:$0xff]
    %v540 = vld [vmem:[#allocation5 + $0xaa8] sm:$0xff]
    %v541 = vld [vmem:[#allocation5 + $0xab0] sm:$0xff]
    %v542 = vld [vmem:[#allocation5 + $0xab8] sm:$0xff]
    %v543 = vld [vmem:[#allocation5 + $0xac0] sm:$0xff]
    %v544 = vld [vmem:[#allocation5 + $0xac8] sm:$0xff]
    %v545 = vld [vmem:[#allocation5 + $0xad0] sm:$0xff]
    %v546 = vld [vmem:[#allocation5 + $0xad8] sm:$0xff]
    %v547 = vld [vmem:[#allocation5 + $0xae0] sm:$0xff]
    %v548 = vld [vmem:[#allocation5 + $0xae8] sm:$0xff]
    %v549 = vld [vmem:[#allocation5 + $0xaf0] sm:$0xff]
    %v550 = vld [vmem:[#allocation5 + $0xaf8] sm:$0xff]
    %v551 = vld [vmem:[#allocation5 + $0xb00] sm:$0xff]
    %v552 = vld [vmem:[#allocation5 + $0xb08] sm:$0xff]
    %v553 = vld [vmem:[#allocation5 + $0xb10] sm:$0xff]
    %v554 = vld [vmem:[#allocation5 + $0xb18] sm:$0xff]
    %v555 = vld [vmem:[#allocation5 + $0xb20] sm:$0xff]
    %v556 = vld [vmem:[#allocation5 + $0xb28] sm:$0xff]
    %v557 = vld [vmem:[#allocation5 + $0xb30] sm:$0xff]
    %v558 = vld [vmem:[#allocation5 + $0xb38] sm:$0xff]
    %v559 = vld [vmem:[#allocation5 + $0xb40] sm:$0xff]
    %v560 = vld [vmem:[#allocation5 + $0xb48] sm:$0xff]
    %v561 = vld [vmem:[#allocation5 + $0xb50] sm:$0xff]
    %v562 = vld [vmem:[#allocation5 + $0xb58] sm:$0xff]
    %v563 = vld [vmem:[#allocation5 + $0xb60] sm:$0xff]
    %v564 = vld [vmem:[#allocation5 + $0xb68] sm:$0xff]
    %v565 = vld [vmem:[#allocation5 + $0xb70] sm:$0xff]
    %v566 = vld [vmem:[#allocation5 + $0xb78] sm:$0xff]
    %v567 = vld [vmem:[#allocation5 + $0xb80] sm:$0xff]
    %v568 = vld [vmem:[#allocation5 + $0xb88] sm:$0xff]
    %v569 = vld [vmem:[#allocation5 + $0xb90] sm:$0xff]
    %v570 = vld [vmem:[#allocation5 + $0xb98] sm:$0xff]
    %v571 = vld [vmem:[#allocation5 + $0xba0] sm:$0xff]
    %v572 = vld [vmem:[#allocation5 + $0xba8] sm:$0xff]
    %v573 = vld [vmem:[#allocation5 + $0xbb0] sm:$0xff]
    %v574 = vld [vmem:[#allocation5 + $0xbb8] sm:$0xff]
    %v575 = vld [vmem:[#allocation5 + $0xbc0] sm:$0xff]
    %v576 = vld [vmem:[#allocation5 + $0xbc8] sm:$0xff]
    %v577 = vld [vmem:[#allocation5 + $0xbd0] sm:$0xff]
    %v578 = vld [vmem:[#allocation5 + $0xbd8] sm:$0xff]
    %v579 = vld [vmem:[#allocation5 + $0xbe0] sm:$0xff]
    %v580 = vld [vmem:[#allocation5 + $0xbe8] sm:$0xff]
    %v581 = vld [vmem:[#allocation5 + $0xbf0] sm:$0xff]
    %v582 = vld [vmem:[#allocation5 + $0xbf8] sm:$0xff]
    %v583 = vld [vmem:[#allocation7] sm:$0xff]
    %v585 = vlaneseq
    %v586 = vshrl.u32 %v585, 7
    %v587 = vsub.s32 0, %v586
    %v588 = vrot.slane %v583, %v587
    %v589 = vlaneseq
    %v590 = vshrl.u32 %v589, 7
    %v591 = vsub.s32 1, %v590
    %v592 = vrot.slane %v583, %v591
    %v593 = vlaneseq
    %v594 = vshrl.u32 %v593, 7
    %v595 = vsub.s32 2, %v594
    %v596 = vrot.slane %v583, %v595
    %v597 = vlaneseq
    %v598 = vshrl.u32 %v597, 7
    %v599 = vsub.s32 3, %v598
    %v600 = vrot.slane %v583, %v599
    %v601 = vlaneseq
    %v602 = vshrl.u32 %v601, 7
    %v603 = vsub.s32 4, %v602
    %v604 = vrot.slane %v583, %v603
    %v605 = vlaneseq
    %v606 = vshrl.u32 %v605, 7
    %v607 = vsub.s32 5, %v606
    %v608 = vrot.slane %v583, %v607
    %v609 = vlaneseq
    %v610 = vshrl.u32 %v609, 7
    %v611 = vsub.s32 6, %v610
    %v612 = vrot.slane %v583, %v611
    %v613 = vlaneseq
    %v614 = vshrl.u32 %v613, 7
    %v615 = vsub.s32 7, %v614
    %v616 = vrot.slane %v583, %v615
    %v1009 = vunpack.c.l.b16 %v199
    %v1010 = vunpack.c.h.b16 %v199
    %v1011 = vunpack.c.l.b16 %v200
    %v1012 = vunpack.c.h.b16 %v200
    %v1013 = vunpack.c.l.b16 %v201
    %v1014 = vunpack.c.h.b16 %v201
    %v1015 = vunpack.c.l.b16 %v202
    %v1016 = vunpack.c.h.b16 %v202
    %v1017 = vunpack.c.l.b16 %v203
    %v1018 = vunpack.c.h.b16 %v203
    %v1019 = vunpack.c.l.b16 %v204
    %v1020 = vunpack.c.h.b16 %v204
    %v1021 = vunpack.c.l.b16 %v205
    %v1022 = vunpack.c.h.b16 %v205
    %v1023 = vunpack.c.l.b16 %v206
    %v1024 = vunpack.c.h.b16 %v206
    %v1025 = vunpack.c.l.b16 %v207
    %v1026 = vunpack.c.h.b16 %v207
    %v1027 = vunpack.c.l.b16 %v208
    %v1028 = vunpack.c.h.b16 %v208
    %v1029 = vunpack.c.l.b16 %v209
    %v1030 = vunpack.c.h.b16 %v209
    %v1031 = vunpack.c.l.b16 %v210
    %v1032 = vunpack.c.h.b16 %v210
    %v1033 = vunpack.c.l.b16 %v211
    %v1034 = vunpack.c.h.b16 %v211
    %v1035 = vunpack.c.l.b16 %v212
    %v1036 = vunpack.c.h.b16 %v212
    %v1037 = vunpack.c.l.b16 %v213
    %v1038 = vunpack.c.h.b16 %v213
    %v1039 = vunpack.c.l.b16 %v214
    %v1040 = vunpack.c.h.b16 %v214
    %v1041 = vunpack.c.l.b16 %v215
    %v1042 = vunpack.c.h.b16 %v215
    %v1043 = vunpack.c.l.b16 %v216
    %v1044 = vunpack.c.h.b16 %v216
    %v1045 = vunpack.c.l.b16 %v217
    %v1046 = vunpack.c.h.b16 %v217
    %v1047 = vunpack.c.l.b16 %v218
    %v1048 = vunpack.c.h.b16 %v218
    %v1049 = vunpack.c.l.b16 %v219
    %v1050 = vunpack.c.h.b16 %v219
    %v1051 = vunpack.c.l.b16 %v220
    %v1052 = vunpack.c.h.b16 %v220
    %v1053 = vunpack.c.l.b16 %v221
    %v1054 = vunpack.c.h.b16 %v221
    %v1055 = vunpack.c.l.b16 %v222
    %v1056 = vunpack.c.h.b16 %v222
    %v1057 = vunpack.c.l.b16 %v223
    %v1058 = vunpack.c.h.b16 %v223
    %v1059 = vunpack.c.l.b16 %v224
    %v1060 = vunpack.c.h.b16 %v224
    %v1061 = vunpack.c.l.b16 %v225
    %v1062 = vunpack.c.h.b16 %v225
    %v1063 = vunpack.c.l.b16 %v226
    %v1064 = vunpack.c.h.b16 %v226
    %v1065 = vunpack.c.l.b16 %v227
    %v1066 = vunpack.c.h.b16 %v227
    %v1067 = vunpack.c.l.b16 %v228
    %v1068 = vunpack.c.h.b16 %v228
    %v1069 = vunpack.c.l.b16 %v229
    %v1070 = vunpack.c.h.b16 %v229
    %v1071 = vunpack.c.l.b16 %v230
    %v1072 = vunpack.c.h.b16 %v230
    %v1073 = vunpack.c.l.b16 %v231
    %v1074 = vunpack.c.h.b16 %v231
    %v1075 = vunpack.c.l.b16 %v232
    %v1076 = vunpack.c.h.b16 %v232
    %v1077 = vunpack.c.l.b16 %v233
    %v1078 = vunpack.c.h.b16 %v233
    %v1079 = vunpack.c.l.b16 %v234
    %v1080 = vunpack.c.h.b16 %v234
    %v1081 = vunpack.c.l.b16 %v235
    %v1082 = vunpack.c.h.b16 %v235
    %v1083 = vunpack.c.l.b16 %v236
    %v1084 = vunpack.c.h.b16 %v236
    %v1085 = vunpack.c.l.b16 %v237
    %v1086 = vunpack.c.h.b16 %v237
    %v1087 = vunpack.c.l.b16 %v238
    %v1088 = vunpack.c.h.b16 %v238
    %v1089 = vunpack.c.l.b16 %v239
    %v1090 = vunpack.c.h.b16 %v239
    %v1091 = vunpack.c.l.b16 %v240
    %v1092 = vunpack.c.h.b16 %v240
    %v1093 = vunpack.c.l.b16 %v241
    %v1094 = vunpack.c.h.b16 %v241
    %v1095 = vunpack.c.l.b16 %v242
    %v1096 = vunpack.c.h.b16 %v242
    %v1097 = vunpack.c.l.b16 %v243
    %v1098 = vunpack.c.h.b16 %v243
    %v1099 = vunpack.c.l.b16 %v244
    %v1100 = vunpack.c.h.b16 %v244
    %v1101 = vunpack.c.l.b16 %v245
    %v1102 = vunpack.c.h.b16 %v245
    %v1103 = vunpack.c.l.b16 %v246
    %v1104 = vunpack.c.h.b16 %v246
    %v1105 = vunpack.c.l.b16 %v247
    %v1106 = vunpack.c.h.b16 %v247
    %v1107 = vunpack.c.l.b16 %v248
    %v1108 = vunpack.c.h.b16 %v248
    %v1109 = vunpack.c.l.b16 %v249
    %v1110 = vunpack.c.h.b16 %v249
    %v1111 = vunpack.c.l.b16 %v250
    %v1112 = vunpack.c.h.b16 %v250
    %v1113 = vunpack.c.l.b16 %v251
    %v1114 = vunpack.c.h.b16 %v251
    %v1115 = vunpack.c.l.b16 %v252
    %v1116 = vunpack.c.h.b16 %v252
    %v1117 = vunpack.c.l.b16 %v253
    %v1118 = vunpack.c.h.b16 %v253
    %v1119 = vunpack.c.l.b16 %v254
    %v1120 = vunpack.c.h.b16 %v254
    %v1121 = vunpack.c.l.b16 %v255
    %v1122 = vunpack.c.h.b16 %v255
    %v1123 = vunpack.c.l.b16 %v256
    %v1124 = vunpack.c.h.b16 %v256
    %v1125 = vunpack.c.l.b16 %v257
    %v1126 = vunpack.c.h.b16 %v257
    %v1127 = vunpack.c.l.b16 %v258
    %v1128 = vunpack.c.h.b16 %v258
    %v1129 = vunpack.c.l.b16 %v259
    %v1130 = vunpack.c.h.b16 %v259
    %v1131 = vunpack.c.l.b16 %v260
    %v1132 = vunpack.c.h.b16 %v260
    %v1133 = vunpack.c.l.b16 %v261
    %v1134 = vunpack.c.h.b16 %v261
    %v1135 = vunpack.c.l.b16 %v262
    %v1136 = vunpack.c.h.b16 %v262
    %v1137 = vunpack.c.l.b16 %v263
    %v1138 = vunpack.c.h.b16 %v263
    %v1139 = vunpack.c.l.b16 %v264
    %v1140 = vunpack.c.h.b16 %v264
    %v1141 = vunpack.c.l.b16 %v265
    %v1142 = vunpack.c.h.b16 %v265
    %v1143 = vunpack.c.l.b16 %v266
    %v1144 = vunpack.c.h.b16 %v266
    %v1145 = vunpack.c.l.b16 %v267
    %v1146 = vunpack.c.h.b16 %v267
    %v1147 = vunpack.c.l.b16 %v268
    %v1148 = vunpack.c.h.b16 %v268
    %v1149 = vunpack.c.l.b16 %v269
    %v1150 = vunpack.c.h.b16 %v269
    %v1151 = vunpack.c.l.b16 %v270
    %v1152 = vunpack.c.h.b16 %v270
    %v1153 = vunpack.c.l.b16 %v271
    %v1154 = vunpack.c.h.b16 %v271
    %v1155 = vunpack.c.l.b16 %v272
    %v1156 = vunpack.c.h.b16 %v272
    %v1157 = vunpack.c.l.b16 %v273
    %v1158 = vunpack.c.h.b16 %v273
    %v1159 = vunpack.c.l.b16 %v274
    %v1160 = vunpack.c.h.b16 %v274
    %v1161 = vunpack.c.l.b16 %v275
    %v1162 = vunpack.c.h.b16 %v275
    %v1163 = vunpack.c.l.b16 %v276
    %v1164 = vunpack.c.h.b16 %v276
    %v1165 = vunpack.c.l.b16 %v277
    %v1166 = vunpack.c.h.b16 %v277
    %v1167 = vunpack.c.l.b16 %v278
    %v1168 = vunpack.c.h.b16 %v278
    %v1169 = vunpack.c.l.b16 %v279
    %v1170 = vunpack.c.h.b16 %v279
    %v1171 = vunpack.c.l.b16 %v280
    %v1172 = vunpack.c.h.b16 %v280
    %v1173 = vunpack.c.l.b16 %v281
    %v1174 = vunpack.c.h.b16 %v281
    %v1175 = vunpack.c.l.b16 %v282
    %v1176 = vunpack.c.h.b16 %v282
    %v1177 = vunpack.c.l.b16 %v283
    %v1178 = vunpack.c.h.b16 %v283
    %v1179 = vunpack.c.l.b16 %v284
    %v1180 = vunpack.c.h.b16 %v284
    %v1181 = vunpack.c.l.b16 %v285
    %v1182 = vunpack.c.h.b16 %v285
    %v1183 = vunpack.c.l.b16 %v286
    %v1184 = vunpack.c.h.b16 %v286
    %v1185 = vunpack.c.l.b16 %v287
    %v1186 = vunpack.c.h.b16 %v287
    %v1187 = vunpack.c.l.b16 %v288
    %v1188 = vunpack.c.h.b16 %v288
    %v1189 = vunpack.c.l.b16 %v289
    %v1190 = vunpack.c.h.b16 %v289
    %v1191 = vunpack.c.l.b16 %v290
    %v1192 = vunpack.c.h.b16 %v290
    %v1193 = vunpack.c.l.b16 %v291
    %v1194 = vunpack.c.h.b16 %v291
    %v1195 = vunpack.c.l.b16 %v292
    %v1196 = vunpack.c.h.b16 %v292
    %v1197 = vunpack.c.l.b16 %v293
    %v1198 = vunpack.c.h.b16 %v293
    %v1199 = vunpack.c.l.b16 %v294
    %v1200 = vunpack.c.h.b16 %v294
    %v1201 = vunpack.c.l.b16 %v295
    %v1202 = vunpack.c.h.b16 %v295
    %v1203 = vunpack.c.l.b16 %v296
    %v1204 = vunpack.c.h.b16 %v296
    %v1205 = vunpack.c.l.b16 %v297
    %v1206 = vunpack.c.h.b16 %v297
    %v1207 = vunpack.c.l.b16 %v298
    %v1208 = vunpack.c.h.b16 %v298
    %v1209 = vunpack.c.l.b16 %v299
    %v1210 = vunpack.c.h.b16 %v299
    %v1211 = vunpack.c.l.b16 %v300
    %v1212 = vunpack.c.h.b16 %v300
    %v1213 = vunpack.c.l.b16 %v301
    %v1214 = vunpack.c.h.b16 %v301
    %v1215 = vunpack.c.l.b16 %v302
    %v1216 = vunpack.c.h.b16 %v302
    %v1217 = vunpack.c.l.b16 %v303
    %v1218 = vunpack.c.h.b16 %v303
    %v1219 = vunpack.c.l.b16 %v304
    %v1220 = vunpack.c.h.b16 %v304
    %v1221 = vunpack.c.l.b16 %v305
    %v1222 = vunpack.c.h.b16 %v305
    %v1223 = vunpack.c.l.b16 %v306
    %v1224 = vunpack.c.h.b16 %v306
    %v1225 = vunpack.c.l.b16 %v307
    %v1226 = vunpack.c.h.b16 %v307
    %v1227 = vunpack.c.l.b16 %v308
    %v1228 = vunpack.c.h.b16 %v308
    %v1229 = vunpack.c.l.b16 %v309
    %v1230 = vunpack.c.h.b16 %v309
    %v1231 = vunpack.c.l.b16 %v310
    %v1232 = vunpack.c.h.b16 %v310
    %v1233 = vunpack.c.l.b16 %v311
    %v1234 = vunpack.c.h.b16 %v311
    %v1235 = vunpack.c.l.b16 %v312
    %v1236 = vunpack.c.h.b16 %v312
    %v1237 = vunpack.c.l.b16 %v313
    %v1238 = vunpack.c.h.b16 %v313
    %v1239 = vunpack.c.l.b16 %v314
    %v1240 = vunpack.c.h.b16 %v314
    %v1241 = vunpack.c.l.b16 %v315
    %v1242 = vunpack.c.h.b16 %v315
    %v1243 = vunpack.c.l.b16 %v316
    %v1244 = vunpack.c.h.b16 %v316
    %v1245 = vunpack.c.l.b16 %v317
    %v1246 = vunpack.c.h.b16 %v317
    %v1247 = vunpack.c.l.b16 %v318
    %v1248 = vunpack.c.h.b16 %v318
    %v1249 = vunpack.c.l.b16 %v319
    %v1250 = vunpack.c.h.b16 %v319
    %v1251 = vunpack.c.l.b16 %v320
    %v1252 = vunpack.c.h.b16 %v320
    %v1253 = vunpack.c.l.b16 %v321
    %v1254 = vunpack.c.h.b16 %v321
    %v1255 = vunpack.c.l.b16 %v322
    %v1256 = vunpack.c.h.b16 %v322
    %v1257 = vunpack.c.l.b16 %v323
    %v1258 = vunpack.c.h.b16 %v323
    %v1259 = vunpack.c.l.b16 %v324
    %v1260 = vunpack.c.h.b16 %v324
    %v1261 = vunpack.c.l.b16 %v325
    %v1262 = vunpack.c.h.b16 %v325
    %v1263 = vunpack.c.l.b16 %v326
    %v1264 = vunpack.c.h.b16 %v326
    %v1265 = vunpack.c.l.b16 %v327
    %v1266 = vunpack.c.h.b16 %v327
    %v1267 = vunpack.c.l.b16 %v328
    %v1268 = vunpack.c.h.b16 %v328
    %v1269 = vunpack.c.l.b16 %v329
    %v1270 = vunpack.c.h.b16 %v329
    %v1271 = vunpack.c.l.b16 %v330
    %v1272 = vunpack.c.h.b16 %v330
    %v1273 = vunpack.c.l.b16 %v331
    %v1274 = vunpack.c.h.b16 %v331
    %v1275 = vunpack.c.l.b16 %v332
    %v1276 = vunpack.c.h.b16 %v332
    %v1277 = vunpack.c.l.b16 %v333
    %v1278 = vunpack.c.h.b16 %v333
    %v1279 = vunpack.c.l.b16 %v334
    %v1280 = vunpack.c.h.b16 %v334
    %v1281 = vunpack.c.l.b16 %v335
    %v1282 = vunpack.c.h.b16 %v335
    %v1283 = vunpack.c.l.b16 %v336
    %v1284 = vunpack.c.h.b16 %v336
    %v1285 = vunpack.c.l.b16 %v337
    %v1286 = vunpack.c.h.b16 %v337
    %v1287 = vunpack.c.l.b16 %v338
    %v1288 = vunpack.c.h.b16 %v338
    %v1289 = vunpack.c.l.b16 %v339
    %v1290 = vunpack.c.h.b16 %v339
    %v1291 = vunpack.c.l.b16 %v340
    %v1292 = vunpack.c.h.b16 %v340
    %v1293 = vunpack.c.l.b16 %v341
    %v1294 = vunpack.c.h.b16 %v341
    %v1295 = vunpack.c.l.b16 %v342
    %v1296 = vunpack.c.h.b16 %v342
    %v1297 = vunpack.c.l.b16 %v343
    %v1298 = vunpack.c.h.b16 %v343
    %v1299 = vunpack.c.l.b16 %v344
    %v1300 = vunpack.c.h.b16 %v344
    %v1301 = vunpack.c.l.b16 %v345
    %v1302 = vunpack.c.h.b16 %v345
    %v1303 = vunpack.c.l.b16 %v346
    %v1304 = vunpack.c.h.b16 %v346
    %v1305 = vunpack.c.l.b16 %v347
    %v1306 = vunpack.c.h.b16 %v347
    %v1307 = vunpack.c.l.b16 %v348
    %v1308 = vunpack.c.h.b16 %v348
    %v1309 = vunpack.c.l.b16 %v349
    %v1310 = vunpack.c.h.b16 %v349
    %v1311 = vunpack.c.l.b16 %v350
    %v1312 = vunpack.c.h.b16 %v350
    %v1313 = vunpack.c.l.b16 %v351
    %v1314 = vunpack.c.h.b16 %v351
    %v1315 = vunpack.c.l.b16 %v352
    %v1316 = vunpack.c.h.b16 %v352
    %v1317 = vunpack.c.l.b16 %v353
    %v1318 = vunpack.c.h.b16 %v353
    %v1319 = vunpack.c.l.b16 %v354
    %v1320 = vunpack.c.h.b16 %v354
    %v1321 = vunpack.c.l.b16 %v355
    %v1322 = vunpack.c.h.b16 %v355
    %v1323 = vunpack.c.l.b16 %v356
    %v1324 = vunpack.c.h.b16 %v356
    %v1325 = vunpack.c.l.b16 %v357
    %v1326 = vunpack.c.h.b16 %v357
    %v1327 = vunpack.c.l.b16 %v358
    %v1328 = vunpack.c.h.b16 %v358
    %v1329 = vunpack.c.l.b16 %v359
    %v1330 = vunpack.c.h.b16 %v359
    %v1331 = vunpack.c.l.b16 %v360
    %v1332 = vunpack.c.h.b16 %v360
    %v1333 = vunpack.c.l.b16 %v361
    %v1334 = vunpack.c.h.b16 %v361
    %v1335 = vunpack.c.l.b16 %v362
    %v1336 = vunpack.c.h.b16 %v362
    %v1337 = vunpack.c.l.b16 %v363
    %v1338 = vunpack.c.h.b16 %v363
    %v1339 = vunpack.c.l.b16 %v364
    %v1340 = vunpack.c.h.b16 %v364
    %v1341 = vunpack.c.l.b16 %v365
    %v1342 = vunpack.c.h.b16 %v365
    %v1343 = vunpack.c.l.b16 %v366
    %v1344 = vunpack.c.h.b16 %v366
    %v1345 = vunpack.c.l.b16 %v367
    %v1346 = vunpack.c.h.b16 %v367
    %v1347 = vunpack.c.l.b16 %v368
    %v1348 = vunpack.c.h.b16 %v368
    %v1349 = vunpack.c.l.b16 %v369
    %v1350 = vunpack.c.h.b16 %v369
    %v1351 = vunpack.c.l.b16 %v370
    %v1352 = vunpack.c.h.b16 %v370
    %v1353 = vunpack.c.l.b16 %v371
    %v1354 = vunpack.c.h.b16 %v371
    %v1355 = vunpack.c.l.b16 %v372
    %v1356 = vunpack.c.h.b16 %v372
    %v1357 = vunpack.c.l.b16 %v373
    %v1358 = vunpack.c.h.b16 %v373
    %v1359 = vunpack.c.l.b16 %v374
    %v1360 = vunpack.c.h.b16 %v374
    %v1361 = vunpack.c.l.b16 %v375
    %v1362 = vunpack.c.h.b16 %v375
    %v1363 = vunpack.c.l.b16 %v376
    %v1364 = vunpack.c.h.b16 %v376
    %v1365 = vunpack.c.l.b16 %v377
    %v1366 = vunpack.c.h.b16 %v377
    %v1367 = vunpack.c.l.b16 %v378
    %v1368 = vunpack.c.h.b16 %v378
    %v1369 = vunpack.c.l.b16 %v379
    %v1370 = vunpack.c.h.b16 %v379
    %v1371 = vunpack.c.l.b16 %v380
    %v1372 = vunpack.c.h.b16 %v380
    %v1373 = vunpack.c.l.b16 %v381
    %v1374 = vunpack.c.h.b16 %v381
    %v1375 = vunpack.c.l.b16 %v382
    %v1376 = vunpack.c.h.b16 %v382
    %v1377 = vunpack.c.l.b16 %v383
    %v1378 = vunpack.c.h.b16 %v383
    %v1379 = vunpack.c.l.b16 %v384
    %v1380 = vunpack.c.h.b16 %v384
    %v1381 = vunpack.c.l.b16 %v385
    %v1382 = vunpack.c.h.b16 %v385
    %v1383 = vunpack.c.l.b16 %v386
    %v1384 = vunpack.c.h.b16 %v386
    %v1385 = vunpack.c.l.b16 %v387
    %v1386 = vunpack.c.h.b16 %v387
    %v1387 = vunpack.c.l.b16 %v388
    %v1388 = vunpack.c.h.b16 %v388
    %v1389 = vunpack.c.l.b16 %v389
    %v1390 = vunpack.c.h.b16 %v389
    %v1391 = vunpack.c.l.b16 %v390
    %v1392 = vunpack.c.h.b16 %v390
    %v1393 = vunpack.c.l.b16 %v391
    %v1394 = vunpack.c.h.b16 %v391
    %v1395 = vunpack.c.l.b16 %v392
    %v1396 = vunpack.c.h.b16 %v392
    %v1397 = vunpack.c.l.b16 %v393
    %v1398 = vunpack.c.h.b16 %v393
    %v1399 = vunpack.c.l.b16 %v394
    %v1400 = vunpack.c.h.b16 %v394
    %v1401 = vunpack.c.l.b16 %v395
    %v1402 = vunpack.c.h.b16 %v395
    %v1403 = vunpack.c.l.b16 %v396
    %v1404 = vunpack.c.h.b16 %v396
    %v1405 = vunpack.c.l.b16 %v397
    %v1406 = vunpack.c.h.b16 %v397
    %v1407 = vunpack.c.l.b16 %v398
    %v1408 = vunpack.c.h.b16 %v398
    %v1409 = vunpack.c.l.b16 %v399
    %v1410 = vunpack.c.h.b16 %v399
    %v1411 = vunpack.c.l.b16 %v400
    %v1412 = vunpack.c.h.b16 %v400
    %v1413 = vunpack.c.l.b16 %v401
    %v1414 = vunpack.c.h.b16 %v401
    %v1415 = vunpack.c.l.b16 %v402
    %v1416 = vunpack.c.h.b16 %v402
    %v1417 = vunpack.c.l.b16 %v403
    %v1418 = vunpack.c.h.b16 %v403
    %v1419 = vunpack.c.l.b16 %v404
    %v1420 = vunpack.c.h.b16 %v404
    %v1421 = vunpack.c.l.b16 %v405
    %v1422 = vunpack.c.h.b16 %v405
    %v1423 = vunpack.c.l.b16 %v406
    %v1424 = vunpack.c.h.b16 %v406
    %v1425 = vunpack.c.l.b16 %v407
    %v1426 = vunpack.c.h.b16 %v407
    %v1427 = vunpack.c.l.b16 %v408
    %v1428 = vunpack.c.h.b16 %v408
    %v1429 = vunpack.c.l.b16 %v409
    %v1430 = vunpack.c.h.b16 %v409
    %v1431 = vunpack.c.l.b16 %v410
    %v1432 = vunpack.c.h.b16 %v410
    %v1433 = vunpack.c.l.b16 %v411
    %v1434 = vunpack.c.h.b16 %v411
    %v1435 = vunpack.c.l.b16 %v412
    %v1436 = vunpack.c.h.b16 %v412
    %v1437 = vunpack.c.l.b16 %v413
    %v1438 = vunpack.c.h.b16 %v413
    %v1439 = vunpack.c.l.b16 %v414
    %v1440 = vunpack.c.h.b16 %v414
    %v1441 = vunpack.c.l.b16 %v415
    %v1442 = vunpack.c.h.b16 %v415
    %v1443 = vunpack.c.l.b16 %v416
    %v1444 = vunpack.c.h.b16 %v416
    %v1445 = vunpack.c.l.b16 %v417
    %v1446 = vunpack.c.h.b16 %v417
    %v1447 = vunpack.c.l.b16 %v418
    %v1448 = vunpack.c.h.b16 %v418
    %v1449 = vunpack.c.l.b16 %v419
    %v1450 = vunpack.c.h.b16 %v419
    %v1451 = vunpack.c.l.b16 %v420
    %v1452 = vunpack.c.h.b16 %v420
    %v1453 = vunpack.c.l.b16 %v421
    %v1454 = vunpack.c.h.b16 %v421
    %v1455 = vunpack.c.l.b16 %v422
    %v1456 = vunpack.c.h.b16 %v422
    %v1457 = vunpack.c.l.b16 %v423
    %v1458 = vunpack.c.h.b16 %v423
    %v1459 = vunpack.c.l.b16 %v424
    %v1460 = vunpack.c.h.b16 %v424
    %v1461 = vunpack.c.l.b16 %v425
    %v1462 = vunpack.c.h.b16 %v425
    %v1463 = vunpack.c.l.b16 %v426
    %v1464 = vunpack.c.h.b16 %v426
    %v1465 = vunpack.c.l.b16 %v427
    %v1466 = vunpack.c.h.b16 %v427
    %v1467 = vunpack.c.l.b16 %v428
    %v1468 = vunpack.c.h.b16 %v428
    %v1469 = vunpack.c.l.b16 %v429
    %v1470 = vunpack.c.h.b16 %v429
    %v1471 = vunpack.c.l.b16 %v430
    %v1472 = vunpack.c.h.b16 %v430
    %v1473 = vunpack.c.l.b16 %v431
    %v1474 = vunpack.c.h.b16 %v431
    %v1475 = vunpack.c.l.b16 %v432
    %v1476 = vunpack.c.h.b16 %v432
    %v1477 = vunpack.c.l.b16 %v433
    %v1478 = vunpack.c.h.b16 %v433
    %v1479 = vunpack.c.l.b16 %v434
    %v1480 = vunpack.c.h.b16 %v434
    %v1481 = vunpack.c.l.b16 %v435
    %v1482 = vunpack.c.h.b16 %v435
    %v1483 = vunpack.c.l.b16 %v436
    %v1484 = vunpack.c.h.b16 %v436
    %v1485 = vunpack.c.l.b16 %v437
    %v1486 = vunpack.c.h.b16 %v437
    %v1487 = vunpack.c.l.b16 %v438
    %v1488 = vunpack.c.h.b16 %v438
    %v1489 = vunpack.c.l.b16 %v439
    %v1490 = vunpack.c.h.b16 %v439
    %v1491 = vunpack.c.l.b16 %v440
    %v1492 = vunpack.c.h.b16 %v440
    %v1493 = vunpack.c.l.b16 %v441
    %v1494 = vunpack.c.h.b16 %v441
    %v1495 = vunpack.c.l.b16 %v442
    %v1496 = vunpack.c.h.b16 %v442
    %v1497 = vunpack.c.l.b16 %v443
    %v1498 = vunpack.c.h.b16 %v443
    %v1499 = vunpack.c.l.b16 %v444
    %v1500 = vunpack.c.h.b16 %v444
    %v1501 = vunpack.c.l.b16 %v445
    %v1502 = vunpack.c.h.b16 %v445
    %v1503 = vunpack.c.l.b16 %v446
    %v1504 = vunpack.c.h.b16 %v446
    %v1505 = vunpack.c.l.b16 %v447
    %v1506 = vunpack.c.h.b16 %v447
    %v1507 = vunpack.c.l.b16 %v448
    %v1508 = vunpack.c.h.b16 %v448
    %v1509 = vunpack.c.l.b16 %v449
    %v1510 = vunpack.c.h.b16 %v449
    %v1511 = vunpack.c.l.b16 %v450
    %v1512 = vunpack.c.h.b16 %v450
    %v1513 = vunpack.c.l.b16 %v451
    %v1514 = vunpack.c.h.b16 %v451
    %v1515 = vunpack.c.l.b16 %v452
    %v1516 = vunpack.c.h.b16 %v452
    %v1517 = vunpack.c.l.b16 %v453
    %v1518 = vunpack.c.h.b16 %v453
    %v1519 = vunpack.c.l.b16 %v454
    %v1520 = vunpack.c.h.b16 %v454
    %v1521 = vunpack.c.l.b16 %v455
    %v1522 = vunpack.c.h.b16 %v455
    %v1523 = vunpack.c.l.b16 %v456
    %v1524 = vunpack.c.h.b16 %v456
    %v1525 = vunpack.c.l.b16 %v457
    %v1526 = vunpack.c.h.b16 %v457
    %v1527 = vunpack.c.l.b16 %v458
    %v1528 = vunpack.c.h.b16 %v458
    %v1529 = vunpack.c.l.b16 %v459
    %v1530 = vunpack.c.h.b16 %v459
    %v1531 = vunpack.c.l.b16 %v460
    %v1532 = vunpack.c.h.b16 %v460
    %v1533 = vunpack.c.l.b16 %v461
    %v1534 = vunpack.c.h.b16 %v461
    %v1535 = vunpack.c.l.b16 %v462
    %v1536 = vunpack.c.h.b16 %v462
    %v1537 = vunpack.c.l.b16 %v463
    %v1538 = vunpack.c.h.b16 %v463
    %v1539 = vunpack.c.l.b16 %v464
    %v1540 = vunpack.c.h.b16 %v464
    %v1541 = vunpack.c.l.b16 %v465
    %v1542 = vunpack.c.h.b16 %v465
    %v1543 = vunpack.c.l.b16 %v466
    %v1544 = vunpack.c.h.b16 %v466
    %v1545 = vunpack.c.l.b16 %v467
    %v1546 = vunpack.c.h.b16 %v467
    %v1547 = vunpack.c.l.b16 %v468
    %v1548 = vunpack.c.h.b16 %v468
    %v1549 = vunpack.c.l.b16 %v469
    %v1550 = vunpack.c.h.b16 %v469
    %v1551 = vunpack.c.l.b16 %v470
    %v1552 = vunpack.c.h.b16 %v470
    %v1553 = vunpack.c.l.b16 %v471
    %v1554 = vunpack.c.h.b16 %v471
    %v1555 = vunpack.c.l.b16 %v472
    %v1556 = vunpack.c.h.b16 %v472
    %v1557 = vunpack.c.l.b16 %v473
    %v1558 = vunpack.c.h.b16 %v473
    %v1559 = vunpack.c.l.b16 %v474
    %v1560 = vunpack.c.h.b16 %v474
    %v1561 = vunpack.c.l.b16 %v475
    %v1562 = vunpack.c.h.b16 %v475
    %v1563 = vunpack.c.l.b16 %v476
    %v1564 = vunpack.c.h.b16 %v476
    %v1565 = vunpack.c.l.b16 %v477
    %v1566 = vunpack.c.h.b16 %v477
    %v1567 = vunpack.c.l.b16 %v478
    %v1568 = vunpack.c.h.b16 %v478
    %v1569 = vunpack.c.l.b16 %v479
    %v1570 = vunpack.c.h.b16 %v479
    %v1571 = vunpack.c.l.b16 %v480
    %v1572 = vunpack.c.h.b16 %v480
    %v1573 = vunpack.c.l.b16 %v481
    %v1574 = vunpack.c.h.b16 %v481
    %v1575 = vunpack.c.l.b16 %v482
    %v1576 = vunpack.c.h.b16 %v482
    %v1577 = vunpack.c.l.b16 %v483
    %v1578 = vunpack.c.h.b16 %v483
    %v1579 = vunpack.c.l.b16 %v484
    %v1580 = vunpack.c.h.b16 %v484
    %v1581 = vunpack.c.l.b16 %v485
    %v1582 = vunpack.c.h.b16 %v485
    %v1583 = vunpack.c.l.b16 %v486
    %v1584 = vunpack.c.h.b16 %v486
    %v1585 = vunpack.c.l.b16 %v487
    %v1586 = vunpack.c.h.b16 %v487
    %v1587 = vunpack.c.l.b16 %v488
    %v1588 = vunpack.c.h.b16 %v488
    %v1589 = vunpack.c.l.b16 %v489
    %v1590 = vunpack.c.h.b16 %v489
    %v1591 = vunpack.c.l.b16 %v490
    %v1592 = vunpack.c.h.b16 %v490
    %v1593 = vunpack.c.l.b16 %v491
    %v1594 = vunpack.c.h.b16 %v491
    %v1595 = vunpack.c.l.b16 %v492
    %v1596 = vunpack.c.h.b16 %v492
    %v1597 = vunpack.c.l.b16 %v493
    %v1598 = vunpack.c.h.b16 %v493
    %v1599 = vunpack.c.l.b16 %v494
    %v1600 = vunpack.c.h.b16 %v494
    %v1601 = vunpack.c.l.b16 %v495
    %v1602 = vunpack.c.h.b16 %v495
    %v1603 = vunpack.c.l.b16 %v496
    %v1604 = vunpack.c.h.b16 %v496
    %v1605 = vunpack.c.l.b16 %v497
    %v1606 = vunpack.c.h.b16 %v497
    %v1607 = vunpack.c.l.b16 %v498
    %v1608 = vunpack.c.h.b16 %v498
    %v1609 = vunpack.c.l.b16 %v499
    %v1610 = vunpack.c.h.b16 %v499
    %v1611 = vunpack.c.l.b16 %v500
    %v1612 = vunpack.c.h.b16 %v500
    %v1613 = vunpack.c.l.b16 %v501
    %v1614 = vunpack.c.h.b16 %v501
    %v1615 = vunpack.c.l.b16 %v502
    %v1616 = vunpack.c.h.b16 %v502
    %v1617 = vunpack.c.l.b16 %v503
    %v1618 = vunpack.c.h.b16 %v503
    %v1619 = vunpack.c.l.b16 %v504
    %v1620 = vunpack.c.h.b16 %v504
    %v1621 = vunpack.c.l.b16 %v505
    %v1622 = vunpack.c.h.b16 %v505
    %v1623 = vunpack.c.l.b16 %v506
    %v1624 = vunpack.c.h.b16 %v506
    %v1625 = vunpack.c.l.b16 %v507
    %v1626 = vunpack.c.h.b16 %v507
    %v1627 = vunpack.c.l.b16 %v508
    %v1628 = vunpack.c.h.b16 %v508
    %v1629 = vunpack.c.l.b16 %v509
    %v1630 = vunpack.c.h.b16 %v509
    %v1631 = vunpack.c.l.b16 %v510
    %v1632 = vunpack.c.h.b16 %v510
    %v1633 = vunpack.c.l.b16 %v511
    %v1634 = vunpack.c.h.b16 %v511
    %v1635 = vunpack.c.l.b16 %v512
    %v1636 = vunpack.c.h.b16 %v512
    %v1637 = vunpack.c.l.b16 %v513
    %v1638 = vunpack.c.h.b16 %v513
    %v1639 = vunpack.c.l.b16 %v514
    %v1640 = vunpack.c.h.b16 %v514
    %v1641 = vunpack.c.l.b16 %v515
    %v1642 = vunpack.c.h.b16 %v515
    %v1643 = vunpack.c.l.b16 %v516
    %v1644 = vunpack.c.h.b16 %v516
    %v1645 = vunpack.c.l.b16 %v517
    %v1646 = vunpack.c.h.b16 %v517
    %v1647 = vunpack.c.l.b16 %v518
    %v1648 = vunpack.c.h.b16 %v518
    %v1649 = vunpack.c.l.b16 %v519
    %v1650 = vunpack.c.h.b16 %v519
    %v1651 = vunpack.c.l.b16 %v520
    %v1652 = vunpack.c.h.b16 %v520
    %v1653 = vunpack.c.l.b16 %v521
    %v1654 = vunpack.c.h.b16 %v521
    %v1655 = vunpack.c.l.b16 %v522
    %v1656 = vunpack.c.h.b16 %v522
    %v1657 = vunpack.c.l.b16 %v523
    %v1658 = vunpack.c.h.b16 %v523
    %v1659 = vunpack.c.l.b16 %v524
    %v1660 = vunpack.c.h.b16 %v524
    %v1661 = vunpack.c.l.b16 %v525
    %v1662 = vunpack.c.h.b16 %v525
    %v1663 = vunpack.c.l.b16 %v526
    %v1664 = vunpack.c.h.b16 %v526
    %v1665 = vunpack.c.l.b16 %v527
    %v1666 = vunpack.c.h.b16 %v527
    %v1667 = vunpack.c.l.b16 %v528
    %v1668 = vunpack.c.h.b16 %v528
    %v1669 = vunpack.c.l.b16 %v529
    %v1670 = vunpack.c.h.b16 %v529
    %v1671 = vunpack.c.l.b16 %v530
    %v1672 = vunpack.c.h.b16 %v530
    %v1673 = vunpack.c.l.b16 %v531
    %v1674 = vunpack.c.h.b16 %v531
    %v1675 = vunpack.c.l.b16 %v532
    %v1676 = vunpack.c.h.b16 %v532
    %v1677 = vunpack.c.l.b16 %v533
    %v1678 = vunpack.c.h.b16 %v533
    %v1679 = vunpack.c.l.b16 %v534
    %v1680 = vunpack.c.h.b16 %v534
    %v1681 = vunpack.c.l.b16 %v535
    %v1682 = vunpack.c.h.b16 %v535
    %v1683 = vunpack.c.l.b16 %v536
    %v1684 = vunpack.c.h.b16 %v536
    %v1685 = vunpack.c.l.b16 %v537
    %v1686 = vunpack.c.h.b16 %v537
    %v1687 = vunpack.c.l.b16 %v538
    %v1688 = vunpack.c.h.b16 %v538
    %v1689 = vunpack.c.l.b16 %v539
    %v1690 = vunpack.c.h.b16 %v539
    %v1691 = vunpack.c.l.b16 %v540
    %v1692 = vunpack.c.h.b16 %v540
    %v1693 = vunpack.c.l.b16 %v541
    %v1694 = vunpack.c.h.b16 %v541
    %v1695 = vunpack.c.l.b16 %v542
    %v1696 = vunpack.c.h.b16 %v542
    %v1697 = vunpack.c.l.b16 %v543
    %v1698 = vunpack.c.h.b16 %v543
    %v1699 = vunpack.c.l.b16 %v544
    %v1700 = vunpack.c.h.b16 %v544
    %v1701 = vunpack.c.l.b16 %v545
    %v1702 = vunpack.c.h.b16 %v545
    %v1703 = vunpack.c.l.b16 %v546
    %v1704 = vunpack.c.h.b16 %v546
    %v1705 = vunpack.c.l.b16 %v547
    %v1706 = vunpack.c.h.b16 %v547
    %v1707 = vunpack.c.l.b16 %v548
    %v1708 = vunpack.c.h.b16 %v548
    %v1709 = vunpack.c.l.b16 %v549
    %v1710 = vunpack.c.h.b16 %v549
    %v1711 = vunpack.c.l.b16 %v550
    %v1712 = vunpack.c.h.b16 %v550
    %v1713 = vunpack.c.l.b16 %v551
    %v1714 = vunpack.c.h.b16 %v551
    %v1715 = vunpack.c.l.b16 %v552
    %v1716 = vunpack.c.h.b16 %v552
    %v1717 = vunpack.c.l.b16 %v553
    %v1718 = vunpack.c.h.b16 %v553
    %v1719 = vunpack.c.l.b16 %v554
    %v1720 = vunpack.c.h.b16 %v554
    %v1721 = vunpack.c.l.b16 %v555
    %v1722 = vunpack.c.h.b16 %v555
    %v1723 = vunpack.c.l.b16 %v556
    %v1724 = vunpack.c.h.b16 %v556
    %v1725 = vunpack.c.l.b16 %v557
    %v1726 = vunpack.c.h.b16 %v557
    %v1727 = vunpack.c.l.b16 %v558
    %v1728 = vunpack.c.h.b16 %v558
    %v1729 = vunpack.c.l.b16 %v559
    %v1730 = vunpack.c.h.b16 %v559
    %v1731 = vunpack.c.l.b16 %v560
    %v1732 = vunpack.c.h.b16 %v560
    %v1733 = vunpack.c.l.b16 %v561
    %v1734 = vunpack.c.h.b16 %v561
    %v1735 = vunpack.c.l.b16 %v562
    %v1736 = vunpack.c.h.b16 %v562
    %v1737 = vunpack.c.l.b16 %v563
    %v1738 = vunpack.c.h.b16 %v563
    %v1739 = vunpack.c.l.b16 %v564
    %v1740 = vunpack.c.h.b16 %v564
    %v1741 = vunpack.c.l.b16 %v565
    %v1742 = vunpack.c.h.b16 %v565
    %v1743 = vunpack.c.l.b16 %v566
    %v1744 = vunpack.c.h.b16 %v566
    %v1745 = vunpack.c.l.b16 %v567
    %v1746 = vunpack.c.h.b16 %v567
    %v1747 = vunpack.c.l.b16 %v568
    %v1748 = vunpack.c.h.b16 %v568
    %v1749 = vunpack.c.l.b16 %v569
    %v1750 = vunpack.c.h.b16 %v569
    %v1751 = vunpack.c.l.b16 %v570
    %v1752 = vunpack.c.h.b16 %v570
    %v1753 = vunpack.c.l.b16 %v571
    %v1754 = vunpack.c.h.b16 %v571
    %v1755 = vunpack.c.l.b16 %v572
    %v1756 = vunpack.c.h.b16 %v572
    %v1757 = vunpack.c.l.b16 %v573
    %v1758 = vunpack.c.h.b16 %v573
    %v1759 = vunpack.c.l.b16 %v574
    %v1760 = vunpack.c.h.b16 %v574
    %v1761 = vunpack.c.l.b16 %v575
    %v1762 = vunpack.c.h.b16 %v575
    %v1763 = vunpack.c.l.b16 %v576
    %v1764 = vunpack.c.h.b16 %v576
    %v1765 = vunpack.c.l.b16 %v577
    %v1766 = vunpack.c.h.b16 %v577
    %v1767 = vunpack.c.l.b16 %v578
    %v1768 = vunpack.c.h.b16 %v578
    %v1769 = vunpack.c.l.b16 %v579
    %v1770 = vunpack.c.h.b16 %v579
    %v1771 = vunpack.c.l.b16 %v580
    %v1772 = vunpack.c.h.b16 %v580
    %v1773 = vunpack.c.l.b16 %v581
    %v1774 = vunpack.c.h.b16 %v581
    %v1775 = vunpack.c.l.b16 %v582
    %v1776 = vunpack.c.h.b16 %v582
    %v1777 = vpack.c.b16 %v1017, %v1009
    %v1778 = vpack.c.b16 %v1018, %v1010
    %v1779 = vpack.c.b16 %v1019, %v1011
    %v1780 = vpack.c.b16 %v1020, %v1012
    %v1781 = vpack.c.b16 %v1021, %v1013
    %v1782 = vpack.c.b16 %v1022, %v1014
    %v1783 = vpack.c.b16 %v1023, %v1015
    %v1784 = vpack.c.b16 %v1024, %v1016
    %v1785 = vpack.c.b16 %v1033, %v1025
    %v1786 = vpack.c.b16 %v1034, %v1026
    %v1787 = vpack.c.b16 %v1035, %v1027
    %v1788 = vpack.c.b16 %v1036, %v1028
    %v1789 = vpack.c.b16 %v1037, %v1029
    %v1790 = vpack.c.b16 %v1038, %v1030
    %v1791 = vpack.c.b16 %v1039, %v1031
    %v1792 = vpack.c.b16 %v1040, %v1032
    %v1793 = vpack.c.b16 %v1049, %v1041
    %v1794 = vpack.c.b16 %v1050, %v1042
    %v1795 = vpack.c.b16 %v1051, %v1043
    %v1796 = vpack.c.b16 %v1052, %v1044
    %v1797 = vpack.c.b16 %v1053, %v1045
    %v1798 = vpack.c.b16 %v1054, %v1046
    %v1799 = vpack.c.b16 %v1055, %v1047
    %v1800 = vpack.c.b16 %v1056, %v1048
    %v1801 = vpack.c.b16 %v1065, %v1057
    %v1802 = vpack.c.b16 %v1066, %v1058
    %v1803 = vpack.c.b16 %v1067, %v1059
    %v1804 = vpack.c.b16 %v1068, %v1060
    %v1805 = vpack.c.b16 %v1069, %v1061
    %v1806 = vpack.c.b16 %v1070, %v1062
    %v1807 = vpack.c.b16 %v1071, %v1063
    %v1808 = vpack.c.b16 %v1072, %v1064
    %v1809 = vpack.c.b16 %v1081, %v1073
    %v1810 = vpack.c.b16 %v1082, %v1074
    %v1811 = vpack.c.b16 %v1083, %v1075
    %v1812 = vpack.c.b16 %v1084, %v1076
    %v1813 = vpack.c.b16 %v1085, %v1077
    %v1814 = vpack.c.b16 %v1086, %v1078
    %v1815 = vpack.c.b16 %v1087, %v1079
    %v1816 = vpack.c.b16 %v1088, %v1080
    %v1817 = vpack.c.b16 %v1097, %v1089
    %v1818 = vpack.c.b16 %v1098, %v1090
    %v1819 = vpack.c.b16 %v1099, %v1091
    %v1820 = vpack.c.b16 %v1100, %v1092
    %v1821 = vpack.c.b16 %v1101, %v1093
    %v1822 = vpack.c.b16 %v1102, %v1094
    %v1823 = vpack.c.b16 %v1103, %v1095
    %v1824 = vpack.c.b16 %v1104, %v1096
    %v1825 = vpack.c.b16 %v1113, %v1105
    %v1826 = vpack.c.b16 %v1114, %v1106
    %v1827 = vpack.c.b16 %v1115, %v1107
    %v1828 = vpack.c.b16 %v1116, %v1108
    %v1829 = vpack.c.b16 %v1117, %v1109
    %v1830 = vpack.c.b16 %v1118, %v1110
    %v1831 = vpack.c.b16 %v1119, %v1111
    %v1832 = vpack.c.b16 %v1120, %v1112
    %v1833 = vpack.c.b16 %v1129, %v1121
    %v1834 = vpack.c.b16 %v1130, %v1122
    %v1835 = vpack.c.b16 %v1131, %v1123
    %v1836 = vpack.c.b16 %v1132, %v1124
    %v1837 = vpack.c.b16 %v1133, %v1125
    %v1838 = vpack.c.b16 %v1134, %v1126
    %v1839 = vpack.c.b16 %v1135, %v1127
    %v1840 = vpack.c.b16 %v1136, %v1128
    %v1841 = vpack.c.b16 %v1145, %v1137
    %v1842 = vpack.c.b16 %v1146, %v1138
    %v1843 = vpack.c.b16 %v1147, %v1139
    %v1844 = vpack.c.b16 %v1148, %v1140
    %v1845 = vpack.c.b16 %v1149, %v1141
    %v1846 = vpack.c.b16 %v1150, %v1142
    %v1847 = vpack.c.b16 %v1151, %v1143
    %v1848 = vpack.c.b16 %v1152, %v1144
    %v1849 = vpack.c.b16 %v1161, %v1153
    %v1850 = vpack.c.b16 %v1162, %v1154
    %v1851 = vpack.c.b16 %v1163, %v1155
    %v1852 = vpack.c.b16 %v1164, %v1156
    %v1853 = vpack.c.b16 %v1165, %v1157
    %v1854 = vpack.c.b16 %v1166, %v1158
    %v1855 = vpack.c.b16 %v1167, %v1159
    %v1856 = vpack.c.b16 %v1168, %v1160
    %v1857 = vpack.c.b16 %v1177, %v1169
    %v1858 = vpack.c.b16 %v1178, %v1170
    %v1859 = vpack.c.b16 %v1179, %v1171
    %v1860 = vpack.c.b16 %v1180, %v1172
    %v1861 = vpack.c.b16 %v1181, %v1173
    %v1862 = vpack.c.b16 %v1182, %v1174
    %v1863 = vpack.c.b16 %v1183, %v1175
    %v1864 = vpack.c.b16 %v1184, %v1176
    %v1865 = vpack.c.b16 %v1193, %v1185
    %v1866 = vpack.c.b16 %v1194, %v1186
    %v1867 = vpack.c.b16 %v1195, %v1187
    %v1868 = vpack.c.b16 %v1196, %v1188
    %v1869 = vpack.c.b16 %v1197, %v1189
    %v1870 = vpack.c.b16 %v1198, %v1190
    %v1871 = vpack.c.b16 %v1199, %v1191
    %v1872 = vpack.c.b16 %v1200, %v1192
    %v1873 = vpack.c.b16 %v1209, %v1201
    %v1874 = vpack.c.b16 %v1210, %v1202
    %v1875 = vpack.c.b16 %v1211, %v1203
    %v1876 = vpack.c.b16 %v1212, %v1204
    %v1877 = vpack.c.b16 %v1213, %v1205
    %v1878 = vpack.c.b16 %v1214, %v1206
    %v1879 = vpack.c.b16 %v1215, %v1207
    %v1880 = vpack.c.b16 %v1216, %v1208
    %v1881 = vpack.c.b16 %v1225, %v1217
    %v1882 = vpack.c.b16 %v1226, %v1218
    %v1883 = vpack.c.b16 %v1227, %v1219
    %v1884 = vpack.c.b16 %v1228, %v1220
    %v1885 = vpack.c.b16 %v1229, %v1221
    %v1886 = vpack.c.b16 %v1230, %v1222
    %v1887 = vpack.c.b16 %v1231, %v1223
    %v1888 = vpack.c.b16 %v1232, %v1224
    %v1889 = vpack.c.b16 %v1241, %v1233
    %v1890 = vpack.c.b16 %v1242, %v1234
    %v1891 = vpack.c.b16 %v1243, %v1235
    %v1892 = vpack.c.b16 %v1244, %v1236
    %v1893 = vpack.c.b16 %v1245, %v1237
    %v1894 = vpack.c.b16 %v1246, %v1238
    %v1895 = vpack.c.b16 %v1247, %v1239
    %v1896 = vpack.c.b16 %v1248, %v1240
    %v1897 = vpack.c.b16 %v1257, %v1249
    %v1898 = vpack.c.b16 %v1258, %v1250
    %v1899 = vpack.c.b16 %v1259, %v1251
    %v1900 = vpack.c.b16 %v1260, %v1252
    %v1901 = vpack.c.b16 %v1261, %v1253
    %v1902 = vpack.c.b16 %v1262, %v1254
    %v1903 = vpack.c.b16 %v1263, %v1255
    %v1904 = vpack.c.b16 %v1264, %v1256
    %v1905 = vpack.c.b16 %v1273, %v1265
    %v1906 = vpack.c.b16 %v1274, %v1266
    %v1907 = vpack.c.b16 %v1275, %v1267
    %v1908 = vpack.c.b16 %v1276, %v1268
    %v1909 = vpack.c.b16 %v1277, %v1269
    %v1910 = vpack.c.b16 %v1278, %v1270
    %v1911 = vpack.c.b16 %v1279, %v1271
    %v1912 = vpack.c.b16 %v1280, %v1272
    %v1913 = vpack.c.b16 %v1289, %v1281
    %v1914 = vpack.c.b16 %v1290, %v1282
    %v1915 = vpack.c.b16 %v1291, %v1283
    %v1916 = vpack.c.b16 %v1292, %v1284
    %v1917 = vpack.c.b16 %v1293, %v1285
    %v1918 = vpack.c.b16 %v1294, %v1286
    %v1919 = vpack.c.b16 %v1295, %v1287
    %v1920 = vpack.c.b16 %v1296, %v1288
    %v1921 = vpack.c.b16 %v1305, %v1297
    %v1922 = vpack.c.b16 %v1306, %v1298
    %v1923 = vpack.c.b16 %v1307, %v1299
    %v1924 = vpack.c.b16 %v1308, %v1300
    %v1925 = vpack.c.b16 %v1309, %v1301
    %v1926 = vpack.c.b16 %v1310, %v1302
    %v1927 = vpack.c.b16 %v1311, %v1303
    %v1928 = vpack.c.b16 %v1312, %v1304
    %v1929 = vpack.c.b16 %v1321, %v1313
    %v1930 = vpack.c.b16 %v1322, %v1314
    %v1931 = vpack.c.b16 %v1323, %v1315
    %v1932 = vpack.c.b16 %v1324, %v1316
    %v1933 = vpack.c.b16 %v1325, %v1317
    %v1934 = vpack.c.b16 %v1326, %v1318
    %v1935 = vpack.c.b16 %v1327, %v1319
    %v1936 = vpack.c.b16 %v1328, %v1320
    %v1937 = vpack.c.b16 %v1337, %v1329
    %v1938 = vpack.c.b16 %v1338, %v1330
    %v1939 = vpack.c.b16 %v1339, %v1331
    %v1940 = vpack.c.b16 %v1340, %v1332
    %v1941 = vpack.c.b16 %v1341, %v1333
    %v1942 = vpack.c.b16 %v1342, %v1334
    %v1943 = vpack.c.b16 %v1343, %v1335
    %v1944 = vpack.c.b16 %v1344, %v1336
    %v1945 = vpack.c.b16 %v1353, %v1345
    %v1946 = vpack.c.b16 %v1354, %v1346
    %v1947 = vpack.c.b16 %v1355, %v1347
    %v1948 = vpack.c.b16 %v1356, %v1348
    %v1949 = vpack.c.b16 %v1357, %v1349
    %v1950 = vpack.c.b16 %v1358, %v1350
    %v1951 = vpack.c.b16 %v1359, %v1351
    %v1952 = vpack.c.b16 %v1360, %v1352
    %v1953 = vpack.c.b16 %v1369, %v1361
    %v1954 = vpack.c.b16 %v1370, %v1362
    %v1955 = vpack.c.b16 %v1371, %v1363
    %v1956 = vpack.c.b16 %v1372, %v1364
    %v1957 = vpack.c.b16 %v1373, %v1365
    %v1958 = vpack.c.b16 %v1374, %v1366
    %v1959 = vpack.c.b16 %v1375, %v1367
    %v1960 = vpack.c.b16 %v1376, %v1368
    %v1961 = vpack.c.b16 %v1385, %v1377
    %v1962 = vpack.c.b16 %v1386, %v1378
    %v1963 = vpack.c.b16 %v1387, %v1379
    %v1964 = vpack.c.b16 %v1388, %v1380
    %v1965 = vpack.c.b16 %v1389, %v1381
    %v1966 = vpack.c.b16 %v1390, %v1382
    %v1967 = vpack.c.b16 %v1391, %v1383
    %v1968 = vpack.c.b16 %v1392, %v1384
    %v1969 = vpack.c.b16 %v1401, %v1393
    %v1970 = vpack.c.b16 %v1402, %v1394
    %v1971 = vpack.c.b16 %v1403, %v1395
    %v1972 = vpack.c.b16 %v1404, %v1396
    %v1973 = vpack.c.b16 %v1405, %v1397
    %v1974 = vpack.c.b16 %v1406, %v1398
    %v1975 = vpack.c.b16 %v1407, %v1399
    %v1976 = vpack.c.b16 %v1408, %v1400
    %v1977 = vpack.c.b16 %v1417, %v1409
    %v1978 = vpack.c.b16 %v1418, %v1410
    %v1979 = vpack.c.b16 %v1419, %v1411
    %v1980 = vpack.c.b16 %v1420, %v1412
    %v1981 = vpack.c.b16 %v1421, %v1413
    %v1982 = vpack.c.b16 %v1422, %v1414
    %v1983 = vpack.c.b16 %v1423, %v1415
    %v1984 = vpack.c.b16 %v1424, %v1416
    %v1985 = vpack.c.b16 %v1433, %v1425
    %v1986 = vpack.c.b16 %v1434, %v1426
    %v1987 = vpack.c.b16 %v1435, %v1427
    %v1988 = vpack.c.b16 %v1436, %v1428
    %v1989 = vpack.c.b16 %v1437, %v1429
    %v1990 = vpack.c.b16 %v1438, %v1430
    %v1991 = vpack.c.b16 %v1439, %v1431
    %v1992 = vpack.c.b16 %v1440, %v1432
    %v1993 = vpack.c.b16 %v1449, %v1441
    %v1994 = vpack.c.b16 %v1450, %v1442
    %v1995 = vpack.c.b16 %v1451, %v1443
    %v1996 = vpack.c.b16 %v1452, %v1444
    %v1997 = vpack.c.b16 %v1453, %v1445
    %v1998 = vpack.c.b16 %v1454, %v1446
    %v1999 = vpack.c.b16 %v1455, %v1447
    %v2000 = vpack.c.b16 %v1456, %v1448
    %v2001 = vpack.c.b16 %v1465, %v1457
    %v2002 = vpack.c.b16 %v1466, %v1458
    %v2003 = vpack.c.b16 %v1467, %v1459
    %v2004 = vpack.c.b16 %v1468, %v1460
    %v2005 = vpack.c.b16 %v1469, %v1461
    %v2006 = vpack.c.b16 %v1470, %v1462
    %v2007 = vpack.c.b16 %v1471, %v1463
    %v2008 = vpack.c.b16 %v1472, %v1464
    %v2009 = vpack.c.b16 %v1481, %v1473
    %v2010 = vpack.c.b16 %v1482, %v1474
    %v2011 = vpack.c.b16 %v1483, %v1475
    %v2012 = vpack.c.b16 %v1484, %v1476
    %v2013 = vpack.c.b16 %v1485, %v1477
    %v2014 = vpack.c.b16 %v1486, %v1478
    %v2015 = vpack.c.b16 %v1487, %v1479
    %v2016 = vpack.c.b16 %v1488, %v1480
    %v2017 = vpack.c.b16 %v1497, %v1489
    %v2018 = vpack.c.b16 %v1498, %v1490
    %v2019 = vpack.c.b16 %v1499, %v1491
    %v2020 = vpack.c.b16 %v1500, %v1492
    %v2021 = vpack.c.b16 %v1501, %v1493
    %v2022 = vpack.c.b16 %v1502, %v1494
    %v2023 = vpack.c.b16 %v1503, %v1495
    %v2024 = vpack.c.b16 %v1504, %v1496
    %v2025 = vpack.c.b16 %v1513, %v1505
    %v2026 = vpack.c.b16 %v1514, %v1506
    %v2027 = vpack.c.b16 %v1515, %v1507
    %v2028 = vpack.c.b16 %v1516, %v1508
    %v2029 = vpack.c.b16 %v1517, %v1509
    %v2030 = vpack.c.b16 %v1518, %v1510
    %v2031 = vpack.c.b16 %v1519, %v1511
    %v2032 = vpack.c.b16 %v1520, %v1512
    %v2033 = vpack.c.b16 %v1529, %v1521
    %v2034 = vpack.c.b16 %v1530, %v1522
    %v2035 = vpack.c.b16 %v1531, %v1523
    %v2036 = vpack.c.b16 %v1532, %v1524
    %v2037 = vpack.c.b16 %v1533, %v1525
    %v2038 = vpack.c.b16 %v1534, %v1526
    %v2039 = vpack.c.b16 %v1535, %v1527
    %v2040 = vpack.c.b16 %v1536, %v1528
    %v2041 = vpack.c.b16 %v1545, %v1537
    %v2042 = vpack.c.b16 %v1546, %v1538
    %v2043 = vpack.c.b16 %v1547, %v1539
    %v2044 = vpack.c.b16 %v1548, %v1540
    %v2045 = vpack.c.b16 %v1549, %v1541
    %v2046 = vpack.c.b16 %v1550, %v1542
    %v2047 = vpack.c.b16 %v1551, %v1543
    %v2048 = vpack.c.b16 %v1552, %v1544
    %v2049 = vpack.c.b16 %v1561, %v1553
    %v2050 = vpack.c.b16 %v1562, %v1554
    %v2051 = vpack.c.b16 %v1563, %v1555
    %v2052 = vpack.c.b16 %v1564, %v1556
    %v2053 = vpack.c.b16 %v1565, %v1557
    %v2054 = vpack.c.b16 %v1566, %v1558
    %v2055 = vpack.c.b16 %v1567, %v1559
    %v2056 = vpack.c.b16 %v1568, %v1560
    %v2057 = vpack.c.b16 %v1577, %v1569
    %v2058 = vpack.c.b16 %v1578, %v1570
    %v2059 = vpack.c.b16 %v1579, %v1571
    %v2060 = vpack.c.b16 %v1580, %v1572
    %v2061 = vpack.c.b16 %v1581, %v1573
    %v2062 = vpack.c.b16 %v1582, %v1574
    %v2063 = vpack.c.b16 %v1583, %v1575
    %v2064 = vpack.c.b16 %v1584, %v1576
    %v2065 = vpack.c.b16 %v1593, %v1585
    %v2066 = vpack.c.b16 %v1594, %v1586
    %v2067 = vpack.c.b16 %v1595, %v1587
    %v2068 = vpack.c.b16 %v1596, %v1588
    %v2069 = vpack.c.b16 %v1597, %v1589
    %v2070 = vpack.c.b16 %v1598, %v1590
    %v2071 = vpack.c.b16 %v1599, %v1591
    %v2072 = vpack.c.b16 %v1600, %v1592
    %v2073 = vpack.c.b16 %v1609, %v1601
    %v2074 = vpack.c.b16 %v1610, %v1602
    %v2075 = vpack.c.b16 %v1611, %v1603
    %v2076 = vpack.c.b16 %v1612, %v1604
    %v2077 = vpack.c.b16 %v1613, %v1605
    %v2078 = vpack.c.b16 %v1614, %v1606
    %v2079 = vpack.c.b16 %v1615, %v1607
    %v2080 = vpack.c.b16 %v1616, %v1608
    %v2081 = vpack.c.b16 %v1625, %v1617
    %v2082 = vpack.c.b16 %v1626, %v1618
    %v2083 = vpack.c.b16 %v1627, %v1619
    %v2084 = vpack.c.b16 %v1628, %v1620
    %v2085 = vpack.c.b16 %v1629, %v1621
    %v2086 = vpack.c.b16 %v1630, %v1622
    %v2087 = vpack.c.b16 %v1631, %v1623
    %v2088 = vpack.c.b16 %v1632, %v1624
    %v2089 = vpack.c.b16 %v1641, %v1633
    %v2090 = vpack.c.b16 %v1642, %v1634
    %v2091 = vpack.c.b16 %v1643, %v1635
    %v2092 = vpack.c.b16 %v1644, %v1636
    %v2093 = vpack.c.b16 %v1645, %v1637
    %v2094 = vpack.c.b16 %v1646, %v1638
    %v2095 = vpack.c.b16 %v1647, %v1639
    %v2096 = vpack.c.b16 %v1648, %v1640
    %v2097 = vpack.c.b16 %v1657, %v1649
    %v2098 = vpack.c.b16 %v1658, %v1650
    %v2099 = vpack.c.b16 %v1659, %v1651
    %v2100 = vpack.c.b16 %v1660, %v1652
    %v2101 = vpack.c.b16 %v1661, %v1653
    %v2102 = vpack.c.b16 %v1662, %v1654
    %v2103 = vpack.c.b16 %v1663, %v1655
    %v2104 = vpack.c.b16 %v1664, %v1656
    %v2105 = vpack.c.b16 %v1673, %v1665
    %v2106 = vpack.c.b16 %v1674, %v1666
    %v2107 = vpack.c.b16 %v1675, %v1667
    %v2108 = vpack.c.b16 %v1676, %v1668
    %v2109 = vpack.c.b16 %v1677, %v1669
    %v2110 = vpack.c.b16 %v1678, %v1670
    %v2111 = vpack.c.b16 %v1679, %v1671
    %v2112 = vpack.c.b16 %v1680, %v1672
    %v2113 = vpack.c.b16 %v1689, %v1681
    %v2114 = vpack.c.b16 %v1690, %v1682
    %v2115 = vpack.c.b16 %v1691, %v1683
    %v2116 = vpack.c.b16 %v1692, %v1684
    %v2117 = vpack.c.b16 %v1693, %v1685
    %v2118 = vpack.c.b16 %v1694, %v1686
    %v2119 = vpack.c.b16 %v1695, %v1687
    %v2120 = vpack.c.b16 %v1696, %v1688
    %v2121 = vpack.c.b16 %v1705, %v1697
    %v2122 = vpack.c.b16 %v1706, %v1698
    %v2123 = vpack.c.b16 %v1707, %v1699
    %v2124 = vpack.c.b16 %v1708, %v1700
    %v2125 = vpack.c.b16 %v1709, %v1701
    %v2126 = vpack.c.b16 %v1710, %v1702
    %v2127 = vpack.c.b16 %v1711, %v1703
    %v2128 = vpack.c.b16 %v1712, %v1704
    %v2129 = vpack.c.b16 %v1721, %v1713
    %v2130 = vpack.c.b16 %v1722, %v1714
    %v2131 = vpack.c.b16 %v1723, %v1715
    %v2132 = vpack.c.b16 %v1724, %v1716
    %v2133 = vpack.c.b16 %v1725, %v1717
    %v2134 = vpack.c.b16 %v1726, %v1718
    %v2135 = vpack.c.b16 %v1727, %v1719
    %v2136 = vpack.c.b16 %v1728, %v1720
    %v2137 = vpack.c.b16 %v1737, %v1729
    %v2138 = vpack.c.b16 %v1738, %v1730
    %v2139 = vpack.c.b16 %v1739, %v1731
    %v2140 = vpack.c.b16 %v1740, %v1732
    %v2141 = vpack.c.b16 %v1741, %v1733
    %v2142 = vpack.c.b16 %v1742, %v1734
    %v2143 = vpack.c.b16 %v1743, %v1735
    %v2144 = vpack.c.b16 %v1744, %v1736
    %v2145 = vpack.c.b16 %v1753, %v1745
    %v2146 = vpack.c.b16 %v1754, %v1746
    %v2147 = vpack.c.b16 %v1755, %v1747
    %v2148 = vpack.c.b16 %v1756, %v1748
    %v2149 = vpack.c.b16 %v1757, %v1749
    %v2150 = vpack.c.b16 %v1758, %v1750
    %v2151 = vpack.c.b16 %v1759, %v1751
    %v2152 = vpack.c.b16 %v1760, %v1752
    %v2153 = vpack.c.b16 %v1769, %v1761
    %v2154 = vpack.c.b16 %v1770, %v1762
    %v2155 = vpack.c.b16 %v1771, %v1763
    %v2156 = vpack.c.b16 %v1772, %v1764
    %v2157 = vpack.c.b16 %v1773, %v1765
    %v2158 = vpack.c.b16 %v1774, %v1766
    %v2159 = vpack.c.b16 %v1775, %v1767
    %v2160 = vpack.c.b16 %v1776, %v1768
    %2545 = vmatprep.subr.bf16.mxu0 %v1778
    %2546 = vmatpush1.bf16.msra.mxu0 %v1777
    %2547 = vmatprep.subr.bf16.mxu0 %v1786
    %2548 = vmatpush1.bf16.msra.mxu0 %v1785
    %2549 = vmatprep.subr.bf16.mxu0 %v1794
    %2550 = vmatpush1.bf16.msra.mxu0 %v1793
    %2551 = vmatprep.subr.bf16.mxu0 %v1802
    %2552 = vmatpush1.bf16.msra.mxu0 %v1801
    %2553 = vmatprep.subr.bf16.mxu0 %v1810
    %2554 = vmatpush1.bf16.msra.mxu0 %v1809
    %2555 = vmatprep.subr.bf16.mxu0 %v1818
    %2556 = vmatpush1.bf16.msra.mxu0 %v1817
    %2557 = vmatprep.subr.bf16.mxu0 %v1826
    %2558 = vmatpush1.bf16.msra.mxu0 %v1825
    %2559 = vmatprep.subr.bf16.mxu0 %v1834
    %2560 = vmatpush1.bf16.msra.mxu0 %v1833
    %2561 = vmatprep.subr.bf16.mxu0 %v1842
    %2562 = vmatpush1.bf16.msra.mxu0 %v1841
    %2563 = vmatprep.subr.bf16.mxu0 %v1850
    %2564 = vmatpush1.bf16.msra.mxu0 %v1849
    %2565 = vmatprep.subr.bf16.mxu0 %v1858
    %2566 = vmatpush1.bf16.msra.mxu0 %v1857
    %2567 = vmatprep.subr.bf16.mxu0 %v1866
    %2568 = vmatpush1.bf16.msra.mxu0 %v1865
    %2569 = vmatprep.subr.bf16.mxu0 %v1874
    %2570 = vmatpush1.bf16.msra.mxu0 %v1873
    %2571 = vmatprep.subr.bf16.mxu0 %v1882
    %2572 = vmatpush1.bf16.msra.mxu0 %v1881
    %2573 = vmatprep.subr.bf16.mxu0 %v1890
    %2574 = vmatpush1.bf16.msra.mxu0 %v1889
    %2575 = vmatprep.subr.bf16.mxu0 %v1898
    %2576 = vmatpush1.bf16.msra.mxu0 %v1897
    %2577 = vmatprep.mubr.bf16.mxu0 %v194
    %2578 = vmatmul.mubr.bf16.gmra.mrb[0].mxu0 %v193
    %v2579 = vpop.f32.mrb[0].mxu0
    %v2580 = vadd.f32 %v588, %v2579
    %v2581 = vpop.f32.mrb[0].mxu0
    %v2582 = vadd.f32 %v592, %v2581
    %v2583 = vpop.f32.mrb[0].mxu0
    %v2584 = vpop.f32.mrb[0].mxu0
    %2585 = vdwg.mxu0
    %2586 = vmatprep.subr.bf16.mxu0 %v1906
    %2587 = vmatpush1.bf16.msra.mxu0 %v1905
    %2588 = vmatprep.subr.bf16.mxu0 %v1914
    %2589 = vmatpush1.bf16.msra.mxu0 %v1913
    %2590 = vmatprep.subr.bf16.mxu0 %v1922
    %2591 = vmatpush1.bf16.msra.mxu0 %v1921
    %2592 = vmatprep.subr.bf16.mxu0 %v1930
    %2593 = vmatpush1.bf16.msra.mxu0 %v1929
    %2594 = vmatprep.subr.bf16.mxu0 %v1938
    %2595 = vmatpush1.bf16.msra.mxu0 %v1937
    %2596 = vmatprep.subr.bf16.mxu0 %v1946
    %2597 = vmatpush1.bf16.msra.mxu0 %v1945
    %2598 = vmatprep.subr.bf16.mxu0 %v1954
    %2599 = vmatpush1.bf16.msra.mxu0 %v1953
    %2600 = vmatprep.subr.bf16.mxu0 %v1962
    %2601 = vmatpush1.bf16.msra.mxu0 %v1961
    %2602 = vmatprep.subr.bf16.mxu0 %v1970
    %2603 = vmatpush1.bf16.msra.mxu0 %v1969
    %2604 = vmatprep.subr.bf16.mxu0 %v1978
    %2605 = vmatpush1.bf16.msra.mxu0 %v1977
    %2606 = vmatprep.subr.bf16.mxu0 %v1986
    %2607 = vmatpush1.bf16.msra.mxu0 %v1985
    %2608 = vmatprep.subr.bf16.mxu0 %v1994
    %2609 = vmatpush1.bf16.msra.mxu0 %v1993
    %2610 = vmatprep.subr.bf16.mxu0 %v2002
    %2611 = vmatpush1.bf16.msra.mxu0 %v2001
    %2612 = vmatprep.subr.bf16.mxu0 %v2010
    %2613 = vmatpush1.bf16.msra.mxu0 %v2009
    %2614 = vmatprep.subr.bf16.mxu0 %v2018
    %2615 = vmatpush1.bf16.msra.mxu0 %v2017
    %2616 = vmatprep.subr.bf16.mxu0 %v2026
    %2617 = vmatpush1.bf16.msra.mxu0 %v2025
    %2618 = vmatprep.mubr.bf16.mxu0 %v196
    %2619 = vmatmul.mubr.bf16.gmra.mrb[0].mxu0 %v195
    %v2620 = vpop.f32.mrb[0].mxu0
    %v2621 = vadd.f32 %v2580, %v2620
    %v2622 = vpop.f32.mrb[0].mxu0
    %v2623 = vadd.f32 %v2582, %v2622
    %v2624 = vpop.f32.mrb[0].mxu0
    %v2625 = vpop.f32.mrb[0].mxu0
    %2626 = vdwg.mxu0
    %2627 = vmatprep.subr.bf16.mxu0 %v2034
    %2628 = vmatpush1.bf16.msra.mxu0 %v2033
    %2629 = vmatprep.subr.bf16.mxu0 %v2042
    %2630 = vmatpush1.bf16.msra.mxu0 %v2041
    %2631 = vmatprep.subr.bf16.mxu0 %v2050
    %2632 = vmatpush1.bf16.msra.mxu0 %v2049
    %2633 = vmatprep.subr.bf16.mxu0 %v2058
    %2634 = vmatpush1.bf16.msra.mxu0 %v2057
    %2635 = vmatprep.subr.bf16.mxu0 %v2066
    %2636 = vmatpush1.bf16.msra.mxu0 %v2065
    %2637 = vmatprep.subr.bf16.mxu0 %v2074
    %2638 = vmatpush1.bf16.msra.mxu0 %v2073
    %2639 = vmatprep.subr.bf16.mxu0 %v2082
    %2640 = vmatpush1.bf16.msra.mxu0 %v2081
    %2641 = vmatprep.subr.bf16.mxu0 %v2090
    %2642 = vmatpush1.bf16.msra.mxu0 %v2089
    %2643 = vmatprep.subr.bf16.mxu0 %v2098
    %2644 = vmatpush1.bf16.msra.mxu0 %v2097
    %2645 = vmatprep.subr.bf16.mxu0 %v2106
    %2646 = vmatpush1.bf16.msra.mxu0 %v2105
    %2647 = vmatprep.subr.bf16.mxu0 %v2114
    %2648 = vmatpush1.bf16.msra.mxu0 %v2113
    %2649 = vmatprep.subr.bf16.mxu0 %v2122
    %2650 = vmatpush1.bf16.msra.mxu0 %v2121
    %2651 = vmatprep.subr.bf16.mxu0 %v2130
    %2652 = vmatpush1.bf16.msra.mxu0 %v2129
    %2653 = vmatprep.subr.bf16.mxu0 %v2138
    %2654 = vmatpush1.bf16.msra.mxu0 %v2137
    %2655 = vmatprep.subr.bf16.mxu0 %v2146
    %2656 = vmatpush1.bf16.msra.mxu0 %v2145
    %2657 = vmatprep.subr.bf16.mxu0 %v2154
    %2658 = vmatpush1.bf16.msra.mxu0 %v2153
    %2659 = vmatprep.mubr.bf16.mxu0 %v198
    %2660 = vmatmul.mubr.bf16.gmra.mrb[0].mxu0 %v197
    %v2661 = vpop.f32.mrb[0].mxu0
    %v2662 = vadd.f32 %v2621, %v2661
    %v2663 = vpop.f32.mrb[0].mxu0
    %v2664 = vadd.f32 %v2623, %v2663
    %v2665 = vpop.f32.mrb[0].mxu0
    %v2666 = vpop.f32.mrb[0].mxu0
    %2667 = vdwg.mxu0
    %2668 = vmatprep.subr.bf16.mxu0 %v1780
    %2669 = vmatpush1.bf16.msra.mxu0 %v1779
    %2670 = vmatprep.subr.bf16.mxu0 %v1788
    %2671 = vmatpush1.bf16.msra.mxu0 %v1787
    %2672 = vmatprep.subr.bf16.mxu0 %v1796
    %2673 = vmatpush1.bf16.msra.mxu0 %v1795
    %2674 = vmatprep.subr.bf16.mxu0 %v1804
    %2675 = vmatpush1.bf16.msra.mxu0 %v1803
    %2676 = vmatprep.subr.bf16.mxu0 %v1812
    %2677 = vmatpush1.bf16.msra.mxu0 %v1811
    %2678 = vmatprep.subr.bf16.mxu0 %v1820
    %2679 = vmatpush1.bf16.msra.mxu0 %v1819
    %2680 = vmatprep.subr.bf16.mxu0 %v1828
    %2681 = vmatpush1.bf16.msra.mxu0 %v1827
    %2682 = vmatprep.subr.bf16.mxu0 %v1836
    %2683 = vmatpush1.bf16.msra.mxu0 %v1835
    %2684 = vmatprep.subr.bf16.mxu0 %v1844
    %2685 = vmatpush1.bf16.msra.mxu0 %v1843
    %2686 = vmatprep.subr.bf16.mxu0 %v1852
    %2687 = vmatpush1.bf16.msra.mxu0 %v1851
    %2688 = vmatprep.subr.bf16.mxu0 %v1860
    %2689 = vmatpush1.bf16.msra.mxu0 %v1859
    %2690 = vmatprep.subr.bf16.mxu0 %v1868
    %2691 = vmatpush1.bf16.msra.mxu0 %v1867
    %2692 = vmatprep.subr.bf16.mxu0 %v1876
    %2693 = vmatpush1.bf16.msra.mxu0 %v1875
    %2694 = vmatprep.subr.bf16.mxu0 %v1884
    %2695 = vmatpush1.bf16.msra.mxu0 %v1883
    %2696 = vmatprep.subr.bf16.mxu0 %v1892
    %2697 = vmatpush1.bf16.msra.mxu0 %v1891
    %2698 = vmatprep.subr.bf16.mxu0 %v1900
    %2699 = vmatpush1.bf16.msra.mxu0 %v1899
    %2700 = vmatprep.mubr.bf16.mxu0 %v194
    %2701 = vmatmul.mubr.bf16.gmra.mrb[0].mxu0 %v193
    %v2702 = vpop.f32.mrb[0].mxu0
    %v2703 = vadd.f32 %v596, %v2702
    %v2704 = vpop.f32.mrb[0].mxu0
    %v2705 = vadd.f32 %v600, %v2704
    %v2706 = vpop.f32.mrb[0].mxu0
    %v2707 = vpop.f32.mrb[0].mxu0
    %2708 = vdwg.mxu0
    %2709 = vmatprep.subr.bf16.mxu0 %v1908
    %2710 = vmatpush1.bf16.msra.mxu0 %v1907
    %2711 = vmatprep.subr.bf16.mxu0 %v1916
    %2712 = vmatpush1.bf16.msra.mxu0 %v1915
    %2713 = vmatprep.subr.bf16.mxu0 %v1924
    %2714 = vmatpush1.bf16.msra.mxu0 %v1923
    %2715 = vmatprep.subr.bf16.mxu0 %v1932
    %2716 = vmatpush1.bf16.msra.mxu0 %v1931
    %2717 = vmatprep.subr.bf16.mxu0 %v1940
    %2718 = vmatpush1.bf16.msra.mxu0 %v1939
    %2719 = vmatprep.subr.bf16.mxu0 %v1948
    %2720 = vmatpush1.bf16.msra.mxu0 %v1947
    %2721 = vmatprep.subr.bf16.mxu0 %v1956
    %2722 = vmatpush1.bf16.msra.mxu0 %v1955
    %2723 = vmatprep.subr.bf16.mxu0 %v1964
    %2724 = vmatpush1.bf16.msra.mxu0 %v1963
    %2725 = vmatprep.subr.bf16.mxu0 %v1972
    %2726 = vmatpush1.bf16.msra.mxu0 %v1971
    %2727 = vmatprep.subr.bf16.mxu0 %v1980
    %2728 = vmatpush1.bf16.msra.mxu0 %v1979
    %2729 = vmatprep.subr.bf16.mxu0 %v1988
    %2730 = vmatpush1.bf16.msra.mxu0 %v1987
    %2731 = vmatprep.subr.bf16.mxu0 %v1996
    %2732 = vmatpush1.bf16.msra.mxu0 %v1995
    %2733 = vmatprep.subr.bf16.mxu0 %v2004
    %2734 = vmatpush1.bf16.msra.mxu0 %v2003
    %2735 = vmatprep.subr.bf16.mxu0 %v2012
    %2736 = vmatpush1.bf16.msra.mxu0 %v2011
    %2737 = vmatprep.subr.bf16.mxu0 %v2020
    %2738 = vmatpush1.bf16.msra.mxu0 %v2019
    %2739 = vmatprep.subr.bf16.mxu0 %v2028
    %2740 = vmatpush1.bf16.msra.mxu0 %v2027
    %2741 = vmatprep.mubr.bf16.mxu0 %v196
    %2742 = vmatmul.mubr.bf16.gmra.mrb[0].mxu0 %v195
    %v2743 = vpop.f32.mrb[0].mxu0
    %v2744 = vadd.f32 %v2703, %v2743
    %v2745 = vpop.f32.mrb[0].mxu0
    %v2746 = vadd.f32 %v2705, %v2745
    %v2747 = vpop.f32.mrb[0].mxu0
    %v2748 = vpop.f32.mrb[0].mxu0
    %2749 = vdwg.mxu0
    %2750 = vmatprep.subr.bf16.mxu0 %v2036
    %2751 = vmatpush1.bf16.msra.mxu0 %v2035
    %2752 = vmatprep.subr.bf16.mxu0 %v2044
    %2753 = vmatpush1.bf16.msra.mxu0 %v2043
    %2754 = vmatprep.subr.bf16.mxu0 %v2052
    %2755 = vmatpush1.bf16.msra.mxu0 %v2051
    %2756 = vmatprep.subr.bf16.mxu0 %v2060
    %2757 = vmatpush1.bf16.msra.mxu0 %v2059
    %2758 = vmatprep.subr.bf16.mxu0 %v2068
    %2759 = vmatpush1.bf16.msra.mxu0 %v2067
    %2760 = vmatprep.subr.bf16.mxu0 %v2076
    %2761 = vmatpush1.bf16.msra.mxu0 %v2075
    %2762 = vmatprep.subr.bf16.mxu0 %v2084
    %2763 = vmatpush1.bf16.msra.mxu0 %v2083
    %2764 = vmatprep.subr.bf16.mxu0 %v2092
    %2765 = vmatpush1.bf16.msra.mxu0 %v2091
    %2766 = vmatprep.subr.bf16.mxu0 %v2100
    %2767 = vmatpush1.bf16.msra.mxu0 %v2099
    %2768 = vmatprep.subr.bf16.mxu0 %v2108
    %2769 = vmatpush1.bf16.msra.mxu0 %v2107
    %2770 = vmatprep.subr.bf16.mxu0 %v2116
    %2771 = vmatpush1.bf16.msra.mxu0 %v2115
    %2772 = vmatprep.subr.bf16.mxu0 %v2124
    %2773 = vmatpush1.bf16.msra.mxu0 %v2123
    %2774 = vmatprep.subr.bf16.mxu0 %v2132
    %2775 = vmatpush1.bf16.msra.mxu0 %v2131
    %2776 = vmatprep.subr.bf16.mxu0 %v2140
    %2777 = vmatpush1.bf16.msra.mxu0 %v2139
    %2778 = vmatprep.subr.bf16.mxu0 %v2148
    %2779 = vmatpush1.bf16.msra.mxu0 %v2147
    %2780 = vmatprep.subr.bf16.mxu0 %v2156
    %2781 = vmatpush1.bf16.msra.mxu0 %v2155
    %2782 = vmatprep.mubr.bf16.mxu0 %v198
    %2783 = vmatmul.mubr.bf16.gmra.mrb[0].mxu0 %v197
    %v2784 = vpop.f32.mrb[0].mxu0
    %v2785 = vadd.f32 %v2744, %v2784
    %v2786 = vpop.f32.mrb[0].mxu0
    %v2787 = vadd.f32 %v2746, %v2786
    %v2788 = vpop.f32.mrb[0].mxu0
    %v2789 = vpop.f32.mrb[0].mxu0
    %2790 = vdwg.mxu0
    %2791 = vmatprep.subr.bf16.mxu0 %v1782
    %2792 = vmatpush1.bf16.msra.mxu0 %v1781
    %2793 = vmatprep.subr.bf16.mxu0 %v1790
    %2794 = vmatpush1.bf16.msra.mxu0 %v1789
    %2795 = vmatprep.subr.bf16.mxu0 %v1798
    %2796 = vmatpush1.bf16.msra.mxu0 %v1797
    %2797 = vmatprep.subr.bf16.mxu0 %v1806
    %2798 = vmatpush1.bf16.msra.mxu0 %v1805
    %2799 = vmatprep.subr.bf16.mxu0 %v1814
    %2800 = vmatpush1.bf16.msra.mxu0 %v1813
    %2801 = vmatprep.subr.bf16.mxu0 %v1822
    %2802 = vmatpush1.bf16.msra.mxu0 %v1821
    %2803 = vmatprep.subr.bf16.mxu0 %v1830
    %2804 = vmatpush1.bf16.msra.mxu0 %v1829
    %2805 = vmatprep.subr.bf16.mxu0 %v1838
    %2806 = vmatpush1.bf16.msra.mxu0 %v1837
    %2807 = vmatprep.subr.bf16.mxu0 %v1846
    %2808 = vmatpush1.bf16.msra.mxu0 %v1845
    %2809 = vmatprep.subr.bf16.mxu0 %v1854
    %2810 = vmatpush1.bf16.msra.mxu0 %v1853
    %2811 = vmatprep.subr.bf16.mxu0 %v1862
    %2812 = vmatpush1.bf16.msra.mxu0 %v1861
    %2813 = vmatprep.subr.bf16.mxu0 %v1870
    %2814 = vmatpush1.bf16.msra.mxu0 %v1869
    %2815 = vmatprep.subr.bf16.mxu0 %v1878
    %2816 = vmatpush1.bf16.msra.mxu0 %v1877
    %2817 = vmatprep.subr.bf16.mxu0 %v1886
    %2818 = vmatpush1.bf16.msra.mxu0 %v1885
    %2819 = vmatprep.subr.bf16.mxu0 %v1894
    %2820 = vmatpush1.bf16.msra.mxu0 %v1893
    %2821 = vmatprep.subr.bf16.mxu0 %v1902
    %2822 = vmatpush1.bf16.msra.mxu0 %v1901
    %2823 = vmatprep.mubr.bf16.mxu0 %v194
    %2824 = vmatmul.mubr.bf16.gmra.mrb[0].mxu0 %v193
    %v2825 = vpop.f32.mrb[0].mxu0
    %v2826 = vadd.f32 %v604, %v2825
    %v2827 = vpop.f32.mrb[0].mxu0
    %v2828 = vadd.f32 %v608, %v2827
    %v2829 = vpop.f32.mrb[0].mxu0
    %v2830 = vpop.f32.mrb[0].mxu0
    %2831 = vdwg.mxu0
    %2832 = vmatprep.subr.bf16.mxu0 %v1910
    %2833 = vmatpush1.bf16.msra.mxu0 %v1909
    %2834 = vmatprep.subr.bf16.mxu0 %v1918
    %2835 = vmatpush1.bf16.msra.mxu0 %v1917
    %2836 = vmatprep.subr.bf16.mxu0 %v1926
    %2837 = vmatpush1.bf16.msra.mxu0 %v1925
    %2838 = vmatprep.subr.bf16.mxu0 %v1934
    %2839 = vmatpush1.bf16.msra.mxu0 %v1933
    %2840 = vmatprep.subr.bf16.mxu0 %v1942
    %2841 = vmatpush1.bf16.msra.mxu0 %v1941
    %2842 = vmatprep.subr.bf16.mxu0 %v1950
    %2843 = vmatpush1.bf16.msra.mxu0 %v1949
    %2844 = vmatprep.subr.bf16.mxu0 %v1958
    %2845 = vmatpush1.bf16.msra.mxu0 %v1957
    %2846 = vmatprep.subr.bf16.mxu0 %v1966
    %2847 = vmatpush1.bf16.msra.mxu0 %v1965
    %2848 = vmatprep.subr.bf16.mxu0 %v1974
    %2849 = vmatpush1.bf16.msra.mxu0 %v1973
    %2850 = vmatprep.subr.bf16.mxu0 %v1982
    %2851 = vmatpush1.bf16.msra.mxu0 %v1981
    %2852 = vmatprep.subr.bf16.mxu0 %v1990
    %2853 = vmatpush1.bf16.msra.mxu0 %v1989
    %2854 = vmatprep.subr.bf16.mxu0 %v1998
    %2855 = vmatpush1.bf16.msra.mxu0 %v1997
    %2856 = vmatprep.subr.bf16.mxu0 %v2006
    %2857 = vmatpush1.bf16.msra.mxu0 %v2005
    %2858 = vmatprep.subr.bf16.mxu0 %v2014
    %2859 = vmatpush1.bf16.msra.mxu0 %v2013
    %2860 = vmatprep.subr.bf16.mxu0 %v2022
    %2861 = vmatpush1.bf16.msra.mxu0 %v2021
    %2862 = vmatprep.subr.bf16.mxu0 %v2030
    %2863 = vmatpush1.bf16.msra.mxu0 %v2029
    %2864 = vmatprep.mubr.bf16.mxu0 %v196
    %2865 = vmatmul.mubr.bf16.gmra.mrb[0].mxu0 %v195
    %v2866 = vpop.f32.mrb[0].mxu0
    %v2867 = vadd.f32 %v2826, %v2866
    %v2868 = vpop.f32.mrb[0].mxu0
    %v2869 = vadd.f32 %v2828, %v2868
    %v2870 = vpop.f32.mrb[0].mxu0
    %v2871 = vpop.f32.mrb[0].mxu0
    %2872 = vdwg.mxu0
    %2873 = vmatprep.subr.bf16.mxu0 %v2038
    %2874 = vmatpush1.bf16.msra.mxu0 %v2037
    %2875 = vmatprep.subr.bf16.mxu0 %v2046
    %2876 = vmatpush1.bf16.msra.mxu0 %v2045
    %2877 = vmatprep.subr.bf16.mxu0 %v2054
    %2878 = vmatpush1.bf16.msra.mxu0 %v2053
    %2879 = vmatprep.subr.bf16.mxu0 %v2062
    %2880 = vmatpush1.bf16.msra.mxu0 %v2061
    %2881 = vmatprep.subr.bf16.mxu0 %v2070
    %2882 = vmatpush1.bf16.msra.mxu0 %v2069
    %2883 = vmatprep.subr.bf16.mxu0 %v2078
    %2884 = vmatpush1.bf16.msra.mxu0 %v2077
    %2885 = vmatprep.subr.bf16.mxu0 %v2086
    %2886 = vmatpush1.bf16.msra.mxu0 %v2085
    %2887 = vmatprep.subr.bf16.mxu0 %v2094
    %2888 = vmatpush1.bf16.msra.mxu0 %v2093
    %2889 = vmatprep.subr.bf16.mxu0 %v2102
    %2890 = vmatpush1.bf16.msra.mxu0 %v2101
    %2891 = vmatprep.subr.bf16.mxu0 %v2110
    %2892 = vmatpush1.bf16.msra.mxu0 %v2109
    %2893 = vmatprep.subr.bf16.mxu0 %v2118
    %2894 = vmatpush1.bf16.msra.mxu0 %v2117
    %2895 = vmatprep.subr.bf16.mxu0 %v2126
    %2896 = vmatpush1.bf16.msra.mxu0 %v2125
    %2897 = vmatprep.subr.bf16.mxu0 %v2134
    %2898 = vmatpush1.bf16.msra.mxu0 %v2133
    %2899 = vmatprep.subr.bf16.mxu0 %v2142
    %2900 = vmatpush1.bf16.msra.mxu0 %v2141
    %2901 = vmatprep.subr.bf16.mxu0 %v2150
    %2902 = vmatpush1.bf16.msra.mxu0 %v2149
    %2903 = vmatprep.subr.bf16.mxu0 %v2158
    %2904 = vmatpush1.bf16.msra.mxu0 %v2157
    %2905 = vmatprep.mubr.bf16.mxu0 %v198
    %2906 = vmatmul.mubr.bf16.gmra.mrb[0].mxu0 %v197
    %v2907 = vpop.f32.mrb[0].mxu0
    %v2908 = vadd.f32 %v2867, %v2907
    %v2909 = vpop.f32.mrb[0].mxu0
    %v2910 = vadd.f32 %v2869, %v2909
    %v2911 = vpop.f32.mrb[0].mxu0
    %v2912 = vpop.f32.mrb[0].mxu0
    %2913 = vdwg.mxu0
    %2914 = vmatprep.subr.bf16.mxu0 %v1784
    %2915 = vmatpush1.bf16.msra.mxu0 %v1783
    %2916 = vmatprep.subr.bf16.mxu0 %v1792
    %2917 = vmatpush1.bf16.msra.mxu0 %v1791
    %2918 = vmatprep.subr.bf16.mxu0 %v1800
    %2919 = vmatpush1.bf16.msra.mxu0 %v1799
    %2920 = vmatprep.subr.bf16.mxu0 %v1808
    %2921 = vmatpush1.bf16.msra.mxu0 %v1807
    %2922 = vmatprep.subr.bf16.mxu0 %v1816
    %2923 = vmatpush1.bf16.msra.mxu0 %v1815
    %2924 = vmatprep.subr.bf16.mxu0 %v1824
    %2925 = vmatpush1.bf16.msra.mxu0 %v1823
    %2926 = vmatprep.subr.bf16.mxu0 %v1832
    %2927 = vmatpush1.bf16.msra.mxu0 %v1831
    %2928 = vmatprep.subr.bf16.mxu0 %v1840
    %2929 = vmatpush1.bf16.msra.mxu0 %v1839
    %2930 = vmatprep.subr.bf16.mxu0 %v1848
    %2931 = vmatpush1.bf16.msra.mxu0 %v1847
    %2932 = vmatprep.subr.bf16.mxu0 %v1856
    %2933 = vmatpush1.bf16.msra.mxu0 %v1855
    %2934 = vmatprep.subr.bf16.mxu0 %v1864
    %2935 = vmatpush1.bf16.msra.mxu0 %v1863
    %2936 = vmatprep.subr.bf16.mxu0 %v1872
    %2937 = vmatpush1.bf16.msra.mxu0 %v1871
    %2938 = vmatprep.subr.bf16.mxu0 %v1880
    %2939 = vmatpush1.bf16.msra.mxu0 %v1879
    %2940 = vmatprep.subr.bf16.mxu0 %v1888
    %2941 = vmatpush1.bf16.msra.mxu0 %v1887
    %2942 = vmatprep.subr.bf16.mxu0 %v1896
    %2943 = vmatpush1.bf16.msra.mxu0 %v1895
    %2944 = vmatprep.subr.bf16.mxu0 %v1904
    %2945 = vmatpush1.bf16.msra.mxu0 %v1903
    %2946 = vmatprep.mubr.bf16.mxu0 %v194
    %2947 = vmatmul.mubr.bf16.gmra.mrb[0].mxu0 %v193
    %v2948 = vpop.f32.mrb[0].mxu0
    %v2949 = vadd.f32 %v612, %v2948
    %v2950 = vpop.f32.mrb[0].mxu0
    %v2951 = vadd.f32 %v616, %v2950
    %v2952 = vpop.f32.mrb[0].mxu0
    %v2953 = vpop.f32.mrb[0].mxu0
    %2954 = vdwg.mxu0
    %2955 = vmatprep.subr.bf16.mxu0 %v1912
    %2956 = vmatpush1.bf16.msra.mxu0 %v1911
    %2957 = vmatprep.subr.bf16.mxu0 %v1920
    %2958 = vmatpush1.bf16.msra.mxu0 %v1919
    %2959 = vmatprep.subr.bf16.mxu0 %v1928
    %2960 = vmatpush1.bf16.msra.mxu0 %v1927
    %2961 = vmatprep.subr.bf16.mxu0 %v1936
    %2962 = vmatpush1.bf16.msra.mxu0 %v1935
    %2963 = vmatprep.subr.bf16.mxu0 %v1944
    %2964 = vmatpush1.bf16.msra.mxu0 %v1943
    %2965 = vmatprep.subr.bf16.mxu0 %v1952
    %2966 = vmatpush1.bf16.msra.mxu0 %v1951
    %2967 = vmatprep.subr.bf16.mxu0 %v1960
    %2968 = vmatpush1.bf16.msra.mxu0 %v1959
    %2969 = vmatprep.subr.bf16.mxu0 %v1968
    %2970 = vmatpush1.bf16.msra.mxu0 %v1967
    %2971 = vmatprep.subr.bf16.mxu0 %v1976
    %2972 = vmatpush1.bf16.msra.mxu0 %v1975
    %2973 = vmatprep.subr.bf16.mxu0 %v1984
    %2974 = vmatpush1.bf16.msra.mxu0 %v1983
    %2975 = vmatprep.subr.bf16.mxu0 %v1992
    %2976 = vmatpush1.bf16.msra.mxu0 %v1991
    %2977 = vmatprep.subr.bf16.mxu0 %v2000
    %2978 = vmatpush1.bf16.msra.mxu0 %v1999
    %2979 = vmatprep.subr.bf16.mxu0 %v2008
    %2980 = vmatpush1.bf16.msra.mxu0 %v2007
    %2981 = vmatprep.subr.bf16.mxu0 %v2016
    %2982 = vmatpush1.bf16.msra.mxu0 %v2015
    %2983 = vmatprep.subr.bf16.mxu0 %v2024
    %2984 = vmatpush1.bf16.msra.mxu0 %v2023
    %2985 = vmatprep.subr.bf16.mxu0 %v2032
    %2986 = vmatpush1.bf16.msra.mxu0 %v2031
    %2987 = vmatprep.mubr.bf16.mxu0 %v196
    %2988 = vmatmul.mubr.bf16.gmra.mrb[0].mxu0 %v195
    %v2989 = vpop.f32.mrb[0].mxu0
    %v2990 = vadd.f32 %v2949, %v2989
    %v2991 = vpop.f32.mrb[0].mxu0
    %v2992 = vadd.f32 %v2951, %v2991
    %v2993 = vpop.f32.mrb[0].mxu0
    %v2994 = vpop.f32.mrb[0].mxu0
    %2995 = vdwg.mxu0
    %2996 = vmatprep.subr.bf16.mxu0 %v2040
    %2997 = vmatpush1.bf16.msra.mxu0 %v2039
    %2998 = vmatprep.subr.bf16.mxu0 %v2048
    %2999 = vmatpush1.bf16.msra.mxu0 %v2047
    %3000 = vmatprep.subr.bf16.mxu0 %v2056
    %3001 = vmatpush1.bf16.msra.mxu0 %v2055
    %3002 = vmatprep.subr.bf16.mxu0 %v2064
    %3003 = vmatpush1.bf16.msra.mxu0 %v2063
    %3004 = vmatprep.subr.bf16.mxu0 %v2072
    %3005 = vmatpush1.bf16.msra.mxu0 %v2071
    %3006 = vmatprep.subr.bf16.mxu0 %v2080
    %3007 = vmatpush1.bf16.msra.mxu0 %v2079
    %3008 = vmatprep.subr.bf16.mxu0 %v2088
    %3009 = vmatpush1.bf16.msra.mxu0 %v2087
    %3010 = vmatprep.subr.bf16.mxu0 %v2096
    %3011 = vmatpush1.bf16.msra.mxu0 %v2095
    %3012 = vmatprep.subr.bf16.mxu0 %v2104
    %3013 = vmatpush1.bf16.msra.mxu0 %v2103
    %3014 = vmatprep.subr.bf16.mxu0 %v2112
    %3015 = vmatpush1.bf16.msra.mxu0 %v2111
    %3016 = vmatprep.subr.bf16.mxu0 %v2120
    %3017 = vmatpush1.bf16.msra.mxu0 %v2119
    %3018 = vmatprep.subr.bf16.mxu0 %v2128
    %3019 = vmatpush1.bf16.msra.mxu0 %v2127
    %3020 = vmatprep.subr.bf16.mxu0 %v2136
    %3021 = vmatpush1.bf16.msra.mxu0 %v2135
    %3022 = vmatprep.subr.bf16.mxu0 %v2144
    %3023 = vmatpush1.bf16.msra.mxu0 %v2143
    %3024 = vmatprep.subr.bf16.mxu0 %v2152
    %3025 = vmatpush1.bf16.msra.mxu0 %v2151
    %3026 = vmatprep.subr.bf16.mxu0 %v2160
    %3027 = vmatpush1.bf16.msra.mxu0 %v2159
    %3028 = vmatprep.mubr.bf16.mxu0 %v198
    %3029 = vmatmul.mubr.bf16.gmra.mrb[0].mxu0 %v197
    %v3030 = vpop.f32.mrb[0].mxu0
    %v3031 = vadd.f32 %v2990, %v3030
    %v3032 = vpop.f32.mrb[0].mxu0
    %v3033 = vadd.f32 %v2992, %v3032
    %v3034 = vpop.f32.mrb[0].mxu0
    %v3035 = vpop.f32.mrb[0].mxu0
    %3036 = vdwg.mxu0
    %v3037 = vmul.f32 %v2662, 0.2
    %v3038 = vmul.f32 %v2664, 0.2
    %v3039 = vmul.f32 %v2785, 0.2
    %v3040 = vmul.f32 %v2787, 0.2
    %v3041 = vmul.f32 %v2908, 0.2
    %v3042 = vmul.f32 %v2910, 0.2
    %v3043 = vmul.f32 %v3031, 0.2
    %v3044 = vmul.f32 %v3033, 0.2
    %v3045 = vmax.f32 %v2662, %v3037
    %v3046 = vmax.f32 %v2664, %v3038
    %v3047 = vmax.f32 %v2785, %v3039
    %v3048 = vmax.f32 %v2787, %v3040
    %v3049 = vmax.f32 %v2908, %v3041
    %v3050 = vmax.f32 %v2910, %v3042
    %v3051 = vmax.f32 %v3031, %v3043
    %v3052 = vmax.f32 %v3033, %v3044
    %v3053 = vpack.c.bf16 %v3045, %v3045
    %v3054 = vpack.c.bf16 %v3046, %v3046
    %v3055 = vpack.c.bf16 %v3047, %v3047
    %v3056 = vpack.c.bf16 %v3048, %v3048
    %v3057 = vpack.c.bf16 %v3049, %v3049
    %v3058 = vpack.c.bf16 %v3050, %v3050
    %v3059 = vpack.c.bf16 %v3051, %v3051
    %v3060 = vpack.c.bf16 %v3052, %v3052
    %v3061 = vld [vmem:[#allocation8] sm:$0xff]
    %v3062 = vld [vmem:[#allocation8 + $0x8] sm:$0xff]
    %v3063 = vld [vmem:[#allocation8 + $0x10] sm:$0xff]
    %v3064 = vld [vmem:[#allocation8 + $0x18] sm:$0xff]
    %v3065 = vld [vmem:[#allocation8 + $0x20] sm:$0xff]
    %v3066 = vld [vmem:[#allocation8 + $0x28] sm:$0xff]
    %v3067 = vld [vmem:[#allocation8 + $0x30] sm:$0xff]
    %v3068 = vld [vmem:[#allocation8 + $0x38] sm:$0xff]
    %v3069 = vld [vmem:[#allocation8 + $0x40] sm:$0xff]
    %v3070 = vld [vmem:[#allocation8 + $0x48] sm:$0xff]
    %v3071 = vld [vmem:[#allocation8 + $0x50] sm:$0xff]
    %v3072 = vld [vmem:[#allocation8 + $0x58] sm:$0xff]
    %v3073 = vld [vmem:[#allocation8 + $0x60] sm:$0xff]
    %v3074 = vld [vmem:[#allocation8 + $0x68] sm:$0xff]
    %v3075 = vld [vmem:[#allocation8 + $0x70] sm:$0xff]
    %v3076 = vld [vmem:[#allocation8 + $0x78] sm:$0xff]
    %v3077 = vld [vmem:[#allocation8 + $0x80] sm:$0xff]
    %v3078 = vld [vmem:[#allocation8 + $0x88] sm:$0xff]
    %v3079 = vld [vmem:[#allocation8 + $0x90] sm:$0xff]
    %v3080 = vld [vmem:[#allocation8 + $0x98] sm:$0xff]
    %v3081 = vld [vmem:[#allocation8 + $0xa0] sm:$0xff]
    %v3082 = vld [vmem:[#allocation8 + $0xa8] sm:$0xff]
    %v3083 = vld [vmem:[#allocation8 + $0xb0] sm:$0xff]
    %v3084 = vld [vmem:[#allocation8 + $0xb8] sm:$0xff]
    %v3085 = vld [vmem:[#allocation8 + $0xc0] sm:$0xff]
    %v3086 = vld [vmem:[#allocation8 + $0xc8] sm:$0xff]
    %v3087 = vld [vmem:[#allocation8 + $0xd0] sm:$0xff]
    %v3088 = vld [vmem:[#allocation8 + $0xd8] sm:$0xff]
    %v3089 = vld [vmem:[#allocation8 + $0xe0] sm:$0xff]
    %v3090 = vld [vmem:[#allocation8 + $0xe8] sm:$0xff]
    %v3091 = vld [vmem:[#allocation8 + $0xf0] sm:$0xff]
    %v3092 = vld [vmem:[#allocation8 + $0xf8] sm:$0xff]
    %v3093 = vld [vmem:[#allocation8 + $0x100] sm:$0xff]
    %v3094 = vld [vmem:[#allocation8 + $0x108] sm:$0xff]
    %v3095 = vld [vmem:[#allocation8 + $0x110] sm:$0xff]
    %v3096 = vld [vmem:[#allocation8 + $0x118] sm:$0xff]
    %v3097 = vld [vmem:[#allocation8 + $0x120] sm:$0xff]
    %v3098 = vld [vmem:[#allocation8 + $0x128] sm:$0xff]
    %v3099 = vld [vmem:[#allocation8 + $0x130] sm:$0xff]
    %v3100 = vld [vmem:[#allocation8 + $0x138] sm:$0xff]
    %v3101 = vld [vmem:[#allocation8 + $0x140] sm:$0xff]
    %v3102 = vld [vmem:[#allocation8 + $0x148] sm:$0xff]
    %v3103 = vld [vmem:[#allocation8 + $0x150] sm:$0xff]
    %v3104 = vld [vmem:[#allocation8 + $0x158] sm:$0xff]
    %v3105 = vld [vmem:[#allocation8 + $0x160] sm:$0xff]
    %v3106 = vld [vmem:[#allocation8 + $0x168] sm:$0xff]
    %v3107 = vld [vmem:[#allocation8 + $0x170] sm:$0xff]
    %v3108 = vld [vmem:[#allocation8 + $0x178] sm:$0xff]
    %v3109 = vld [vmem:[#allocation8 + $0x180] sm:$0xff]
    %v3110 = vld [vmem:[#allocation8 + $0x188] sm:$0xff]
    %v3111 = vld [vmem:[#allocation8 + $0x190] sm:$0xff]
    %v3112 = vld [vmem:[#allocation8 + $0x198] sm:$0xff]
    %v3113 = vld [vmem:[#allocation8 + $0x1a0] sm:$0xff]
    %v3114 = vld [vmem:[#allocation8 + $0x1a8] sm:$0xff]
    %v3115 = vld [vmem:[#allocation8 + $0x1b0] sm:$0xff]
    %v3116 = vld [vmem:[#allocation8 + $0x1b8] sm:$0xff]
    %v3117 = vld [vmem:[#allocation8 + $0x1c0] sm:$0xff]
    %v3118 = vld [vmem:[#allocation8 + $0x1c8] sm:$0xff]
    %v3119 = vld [vmem:[#allocation8 + $0x1d0] sm:$0xff]
    %v3120 = vld [vmem:[#allocation8 + $0x1d8] sm:$0xff]
    %v3121 = vld [vmem:[#allocation8 + $0x1e0] sm:$0xff]
    %v3122 = vld [vmem:[#allocation8 + $0x1e8] sm:$0xff]
    %v3123 = vld [vmem:[#allocation8 + $0x1f0] sm:$0xff]
    %v3124 = vld [vmem:[#allocation8 + $0x1f8] sm:$0xff]
    %v3125 = vld [vmem:[#allocation8 + $0x200] sm:$0xff]
    %v3126 = vld [vmem:[#allocation8 + $0x208] sm:$0xff]
    %v3127 = vld [vmem:[#allocation8 + $0x210] sm:$0xff]
    %v3128 = vld [vmem:[#allocation8 + $0x218] sm:$0xff]
    %v3129 = vld [vmem:[#allocation8 + $0x220] sm:$0xff]
    %v3130 = vld [vmem:[#allocation8 + $0x228] sm:$0xff]
    %v3131 = vld [vmem:[#allocation8 + $0x230] sm:$0xff]
    %v3132 = vld [vmem:[#allocation8 + $0x238] sm:$0xff]
    %v3133 = vld [vmem:[#allocation8 + $0x240] sm:$0xff]
    %v3134 = vld [vmem:[#allocation8 + $0x248] sm:$0xff]
    %v3135 = vld [vmem:[#allocation8 + $0x250] sm:$0xff]
    %v3136 = vld [vmem:[#allocation8 + $0x258] sm:$0xff]
    %v3137 = vld [vmem:[#allocation8 + $0x260] sm:$0xff]
    %v3138 = vld [vmem:[#allocation8 + $0x268] sm:$0xff]
    %v3139 = vld [vmem:[#allocation8 + $0x270] sm:$0xff]
    %v3140 = vld [vmem:[#allocation8 + $0x278] sm:$0xff]
    %v3141 = vld [vmem:[#allocation8 + $0x280] sm:$0xff]
    %v3142 = vld [vmem:[#allocation8 + $0x288] sm:$0xff]
    %v3143 = vld [vmem:[#allocation8 + $0x290] sm:$0xff]
    %v3144 = vld [vmem:[#allocation8 + $0x298] sm:$0xff]
    %v3145 = vld [vmem:[#allocation8 + $0x2a0] sm:$0xff]
    %v3146 = vld [vmem:[#allocation8 + $0x2a8] sm:$0xff]
    %v3147 = vld [vmem:[#allocation8 + $0x2b0] sm:$0xff]
    %v3148 = vld [vmem:[#allocation8 + $0x2b8] sm:$0xff]
    %v3149 = vld [vmem:[#allocation8 + $0x2c0] sm:$0xff]
    %v3150 = vld [vmem:[#allocation8 + $0x2c8] sm:$0xff]
    %v3151 = vld [vmem:[#allocation8 + $0x2d0] sm:$0xff]
    %v3152 = vld [vmem:[#allocation8 + $0x2d8] sm:$0xff]
    %v3153 = vld [vmem:[#allocation8 + $0x2e0] sm:$0xff]
    %v3154 = vld [vmem:[#allocation8 + $0x2e8] sm:$0xff]
    %v3155 = vld [vmem:[#allocation8 + $0x2f0] sm:$0xff]
    %v3156 = vld [vmem:[#allocation8 + $0x2f8] sm:$0xff]
    %v3157 = vld [vmem:[#allocation8 + $0x300] sm:$0xff]
    %v3158 = vld [vmem:[#allocation8 + $0x308] sm:$0xff]
    %v3159 = vld [vmem:[#allocation8 + $0x310] sm:$0xff]
    %v3160 = vld [vmem:[#allocation8 + $0x318] sm:$0xff]
    %v3161 = vld [vmem:[#allocation8 + $0x320] sm:$0xff]
    %v3162 = vld [vmem:[#allocation8 + $0x328] sm:$0xff]
    %v3163 = vld [vmem:[#allocation8 + $0x330] sm:$0xff]
    %v3164 = vld [vmem:[#allocation8 + $0x338] sm:$0xff]
    %v3165 = vld [vmem:[#allocation8 + $0x340] sm:$0xff]
    %v3166 = vld [vmem:[#allocation8 + $0x348] sm:$0xff]
    %v3167 = vld [vmem:[#allocation8 + $0x350] sm:$0xff]
    %v3168 = vld [vmem:[#allocation8 + $0x358] sm:$0xff]
    %v3169 = vld [vmem:[#allocation8 + $0x360] sm:$0xff]
    %v3170 = vld [vmem:[#allocation8 + $0x368] sm:$0xff]
    %v3171 = vld [vmem:[#allocation8 + $0x370] sm:$0xff]
    %v3172 = vld [vmem:[#allocation8 + $0x378] sm:$0xff]
    %v3173 = vld [vmem:[#allocation8 + $0x380] sm:$0xff]
    %v3174 = vld [vmem:[#allocation8 + $0x388] sm:$0xff]
    %v3175 = vld [vmem:[#allocation8 + $0x390] sm:$0xff]
    %v3176 = vld [vmem:[#allocation8 + $0x398] sm:$0xff]
    %v3177 = vld [vmem:[#allocation8 + $0x3a0] sm:$0xff]
    %v3178 = vld [vmem:[#allocation8 + $0x3a8] sm:$0xff]
    %v3179 = vld [vmem:[#allocation8 + $0x3b0] sm:$0xff]
    %v3180 = vld [vmem:[#allocation8 + $0x3b8] sm:$0xff]
    %v3181 = vld [vmem:[#allocation8 + $0x3c0] sm:$0xff]
    %v3182 = vld [vmem:[#allocation8 + $0x3c8] sm:$0xff]
    %v3183 = vld [vmem:[#allocation8 + $0x3d0] sm:$0xff]
    %v3184 = vld [vmem:[#allocation8 + $0x3d8] sm:$0xff]
    %v3185 = vld [vmem:[#allocation8 + $0x3e0] sm:$0xff]
    %v3186 = vld [vmem:[#allocation8 + $0x3e8] sm:$0xff]
    %v3187 = vld [vmem:[#allocation8 + $0x3f0] sm:$0xff]
    %v3188 = vld [vmem:[#allocation8 + $0x3f8] sm:$0xff]
    %v3189 = vld [vmem:[#allocation8 + $0x400] sm:$0xff]
    %v3190 = vld [vmem:[#allocation8 + $0x408] sm:$0xff]
    %v3191 = vld [vmem:[#allocation8 + $0x410] sm:$0xff]
    %v3192 = vld [vmem:[#allocation8 + $0x418] sm:$0xff]
    %v3193 = vld [vmem:[#allocation8 + $0x420] sm:$0xff]
    %v3194 = vld [vmem:[#allocation8 + $0x428] sm:$0xff]
    %v3195 = vld [vmem:[#allocation8 + $0x430] sm:$0xff]
    %v3196 = vld [vmem:[#allocation8 + $0x438] sm:$0xff]
    %v3197 = vld [vmem:[#allocation8 + $0x440] sm:$0xff]
    %v3198 = vld [vmem:[#allocation8 + $0x448] sm:$0xff]
    %v3199 = vld [vmem:[#allocation8 + $0x450] sm:$0xff]
    %v3200 = vld [vmem:[#allocation8 + $0x458] sm:$0xff]
    %v3201 = vld [vmem:[#allocation8 + $0x460] sm:$0xff]
    %v3202 = vld [vmem:[#allocation8 + $0x468] sm:$0xff]
    %v3203 = vld [vmem:[#allocation8 + $0x470] sm:$0xff]
    %v3204 = vld [vmem:[#allocation8 + $0x478] sm:$0xff]
    %v3205 = vld [vmem:[#allocation8 + $0x480] sm:$0xff]
    %v3206 = vld [vmem:[#allocation8 + $0x488] sm:$0xff]
    %v3207 = vld [vmem:[#allocation8 + $0x490] sm:$0xff]
    %v3208 = vld [vmem:[#allocation8 + $0x498] sm:$0xff]
    %v3209 = vld [vmem:[#allocation8 + $0x4a0] sm:$0xff]
    %v3210 = vld [vmem:[#allocation8 + $0x4a8] sm:$0xff]
    %v3211 = vld [vmem:[#allocation8 + $0x4b0] sm:$0xff]
    %v3212 = vld [vmem:[#allocation8 + $0x4b8] sm:$0xff]
    %v3213 = vld [vmem:[#allocation8 + $0x4c0] sm:$0xff]
    %v3214 = vld [vmem:[#allocation8 + $0x4c8] sm:$0xff]
    %v3215 = vld [vmem:[#allocation8 + $0x4d0] sm:$0xff]
    %v3216 = vld [vmem:[#allocation8 + $0x4d8] sm:$0xff]
    %v3217 = vld [vmem:[#allocation8 + $0x4e0] sm:$0xff]
    %v3218 = vld [vmem:[#allocation8 + $0x4e8] sm:$0xff]
    %v3219 = vld [vmem:[#allocation8 + $0x4f0] sm:$0xff]
    %v3220 = vld [vmem:[#allocation8 + $0x4f8] sm:$0xff]
    %v3221 = vld [vmem:[#allocation8 + $0x500] sm:$0xff]
    %v3222 = vld [vmem:[#allocation8 + $0x508] sm:$0xff]
    %v3223 = vld [vmem:[#allocation8 + $0x510] sm:$0xff]
    %v3224 = vld [vmem:[#allocation8 + $0x518] sm:$0xff]
    %v3225 = vld [vmem:[#allocation8 + $0x520] sm:$0xff]
    %v3226 = vld [vmem:[#allocation8 + $0x528] sm:$0xff]
    %v3227 = vld [vmem:[#allocation8 + $0x530] sm:$0xff]
    %v3228 = vld [vmem:[#allocation8 + $0x538] sm:$0xff]
    %v3229 = vld [vmem:[#allocation8 + $0x540] sm:$0xff]
    %v3230 = vld [vmem:[#allocation8 + $0x548] sm:$0xff]
    %v3231 = vld [vmem:[#allocation8 + $0x550] sm:$0xff]
    %v3232 = vld [vmem:[#allocation8 + $0x558] sm:$0xff]
    %v3233 = vld [vmem:[#allocation8 + $0x560] sm:$0xff]
    %v3234 = vld [vmem:[#allocation8 + $0x568] sm:$0xff]
    %v3235 = vld [vmem:[#allocation8 + $0x570] sm:$0xff]
    %v3236 = vld [vmem:[#allocation8 + $0x578] sm:$0xff]
    %v3237 = vld [vmem:[#allocation8 + $0x580] sm:$0xff]
    %v3238 = vld [vmem:[#allocation8 + $0x588] sm:$0xff]
    %v3239 = vld [vmem:[#allocation8 + $0x590] sm:$0xff]
    %v3240 = vld [vmem:[#allocation8 + $0x598] sm:$0xff]
    %v3241 = vld [vmem:[#allocation8 + $0x5a0] sm:$0xff]
    %v3242 = vld [vmem:[#allocation8 + $0x5a8] sm:$0xff]
    %v3243 = vld [vmem:[#allocation8 + $0x5b0] sm:$0xff]
    %v3244 = vld [vmem:[#allocation8 + $0x5b8] sm:$0xff]
    %v3245 = vld [vmem:[#allocation8 + $0x5c0] sm:$0xff]
    %v3246 = vld [vmem:[#allocation8 + $0x5c8] sm:$0xff]
    %v3247 = vld [vmem:[#allocation8 + $0x5d0] sm:$0xff]
    %v3248 = vld [vmem:[#allocation8 + $0x5d8] sm:$0xff]
    %v3249 = vld [vmem:[#allocation8 + $0x5e0] sm:$0xff]
    %v3250 = vld [vmem:[#allocation8 + $0x5e8] sm:$0xff]
    %v3251 = vld [vmem:[#allocation8 + $0x5f0] sm:$0xff]
    %v3252 = vld [vmem:[#allocation8 + $0x5f8] sm:$0xff]
    %v3253 = vld [vmem:[#allocation8 + $0x600] sm:$0xff]
    %v3254 = vld [vmem:[#allocation8 + $0x608] sm:$0xff]
    %v3255 = vld [vmem:[#allocation8 + $0x610] sm:$0xff]
    %v3256 = vld [vmem:[#allocation8 + $0x618] sm:$0xff]
    %v3257 = vld [vmem:[#allocation8 + $0x620] sm:$0xff]
    %v3258 = vld [vmem:[#allocation8 + $0x628] sm:$0xff]
    %v3259 = vld [vmem:[#allocation8 + $0x630] sm:$0xff]
    %v3260 = vld [vmem:[#allocation8 + $0x638] sm:$0xff]
    %v3261 = vld [vmem:[#allocation8 + $0x640] sm:$0xff]
    %v3262 = vld [vmem:[#allocation8 + $0x648] sm:$0xff]
    %v3263 = vld [vmem:[#allocation8 + $0x650] sm:$0xff]
    %v3264 = vld [vmem:[#allocation8 + $0x658] sm:$0xff]
    %v3265 = vld [vmem:[#allocation8 + $0x660] sm:$0xff]
    %v3266 = vld [vmem:[#allocation8 + $0x668] sm:$0xff]
    %v3267 = vld [vmem:[#allocation8 + $0x670] sm:$0xff]
    %v3268 = vld [vmem:[#allocation8 + $0x678] sm:$0xff]
    %v3269 = vld [vmem:[#allocation8 + $0x680] sm:$0xff]
    %v3270 = vld [vmem:[#allocation8 + $0x688] sm:$0xff]
    %v3271 = vld [vmem:[#allocation8 + $0x690] sm:$0xff]
    %v3272 = vld [vmem:[#allocation8 + $0x698] sm:$0xff]
    %v3273 = vld [vmem:[#allocation8 + $0x6a0] sm:$0xff]
    %v3274 = vld [vmem:[#allocation8 + $0x6a8] sm:$0xff]
    %v3275 = vld [vmem:[#allocation8 + $0x6b0] sm:$0xff]
    %v3276 = vld [vmem:[#allocation8 + $0x6b8] sm:$0xff]
    %v3277 = vld [vmem:[#allocation8 + $0x6c0] sm:$0xff]
    %v3278 = vld [vmem:[#allocation8 + $0x6c8] sm:$0xff]
    %v3279 = vld [vmem:[#allocation8 + $0x6d0] sm:$0xff]
    %v3280 = vld [vmem:[#allocation8 + $0x6d8] sm:$0xff]
    %v3281 = vld [vmem:[#allocation8 + $0x6e0] sm:$0xff]
    %v3282 = vld [vmem:[#allocation8 + $0x6e8] sm:$0xff]
    %v3283 = vld [vmem:[#allocation8 + $0x6f0] sm:$0xff]
    %v3284 = vld [vmem:[#allocation8 + $0x6f8] sm:$0xff]
    %v3285 = vld [vmem:[#allocation8 + $0x700] sm:$0xff]
    %v3286 = vld [vmem:[#allocation8 + $0x708] sm:$0xff]
    %v3287 = vld [vmem:[#allocation8 + $0x710] sm:$0xff]
    %v3288 = vld [vmem:[#allocation8 + $0x718] sm:$0xff]
    %v3289 = vld [vmem:[#allocation8 + $0x720] sm:$0xff]
    %v3290 = vld [vmem:[#allocation8 + $0x728] sm:$0xff]
    %v3291 = vld [vmem:[#allocation8 + $0x730] sm:$0xff]
    %v3292 = vld [vmem:[#allocation8 + $0x738] sm:$0xff]
    %v3293 = vld [vmem:[#allocation8 + $0x740] sm:$0xff]
    %v3294 = vld [vmem:[#allocation8 + $0x748] sm:$0xff]
    %v3295 = vld [vmem:[#allocation8 + $0x750] sm:$0xff]
    %v3296 = vld [vmem:[#allocation8 + $0x758] sm:$0xff]
    %v3297 = vld [vmem:[#allocation8 + $0x760] sm:$0xff]
    %v3298 = vld [vmem:[#allocation8 + $0x768] sm:$0xff]
    %v3299 = vld [vmem:[#allocation8 + $0x770] sm:$0xff]
    %v3300 = vld [vmem:[#allocation8 + $0x778] sm:$0xff]
    %v3301 = vld [vmem:[#allocation8 + $0x780] sm:$0xff]
    %v3302 = vld [vmem:[#allocation8 + $0x788] sm:$0xff]
    %v3303 = vld [vmem:[#allocation8 + $0x790] sm:$0xff]
    %v3304 = vld [vmem:[#allocation8 + $0x798] sm:$0xff]
    %v3305 = vld [vmem:[#allocation8 + $0x7a0] sm:$0xff]
    %v3306 = vld [vmem:[#allocation8 + $0x7a8] sm:$0xff]
    %v3307 = vld [vmem:[#allocation8 + $0x7b0] sm:$0xff]
    %v3308 = vld [vmem:[#allocation8 + $0x7b8] sm:$0xff]
    %v3309 = vld [vmem:[#allocation8 + $0x7c0] sm:$0xff]
    %v3310 = vld [vmem:[#allocation8 + $0x7c8] sm:$0xff]
    %v3311 = vld [vmem:[#allocation8 + $0x7d0] sm:$0xff]
    %v3312 = vld [vmem:[#allocation8 + $0x7d8] sm:$0xff]
    %v3313 = vld [vmem:[#allocation8 + $0x7e0] sm:$0xff]
    %v3314 = vld [vmem:[#allocation8 + $0x7e8] sm:$0xff]
    %v3315 = vld [vmem:[#allocation8 + $0x7f0] sm:$0xff]
    %v3316 = vld [vmem:[#allocation8 + $0x7f8] sm:$0xff]
    %v3317 = vld [vmem:[#allocation10] sm:$0xf]
    %v3319 = vlaneseq
    %v3320 = vshrl.u32 %v3319, 7
    %v3321 = vsub.s32 0, %v3320
    %v3322 = vrot.slane %v3317, %v3321
    %v3323 = vlaneseq
    %v3324 = vshrl.u32 %v3323, 7
    %v3325 = vsub.s32 1, %v3324
    %v3326 = vrot.slane %v3317, %v3325
    %v3327 = vlaneseq
    %v3328 = vshrl.u32 %v3327, 7
    %v3329 = vsub.s32 2, %v3328
    %v3330 = vrot.slane %v3317, %v3329
    %v3331 = vlaneseq
    %v3332 = vshrl.u32 %v3331, 7
    %v3333 = vsub.s32 3, %v3332
    %v3334 = vrot.slane %v3317, %v3333
    %v3595 = vunpack.c.l.b16 %v3061
    %v3596 = vunpack.c.h.b16 %v3061
    %v3597 = vunpack.c.l.b16 %v3062
    %v3598 = vunpack.c.h.b16 %v3062
    %v3599 = vunpack.c.l.b16 %v3063
    %v3600 = vunpack.c.h.b16 %v3063
    %v3601 = vunpack.c.l.b16 %v3064
    %v3602 = vunpack.c.h.b16 %v3064
    %v3603 = vunpack.c.l.b16 %v3065
    %v3604 = vunpack.c.h.b16 %v3065
    %v3605 = vunpack.c.l.b16 %v3066
    %v3606 = vunpack.c.h.b16 %v3066
    %v3607 = vunpack.c.l.b16 %v3067
    %v3608 = vunpack.c.h.b16 %v3067
    %v3609 = vunpack.c.l.b16 %v3068
    %v3610 = vunpack.c.h.b16 %v3068
    %v3611 = vunpack.c.l.b16 %v3069
    %v3612 = vunpack.c.h.b16 %v3069
    %v3613 = vunpack.c.l.b16 %v3070
    %v3614 = vunpack.c.h.b16 %v3070
    %v3615 = vunpack.c.l.b16 %v3071
    %v3616 = vunpack.c.h.b16 %v3071
    %v3617 = vunpack.c.l.b16 %v3072
    %v3618 = vunpack.c.h.b16 %v3072
    %v3619 = vunpack.c.l.b16 %v3073
    %v3620 = vunpack.c.h.b16 %v3073
    %v3621 = vunpack.c.l.b16 %v3074
    %v3622 = vunpack.c.h.b16 %v3074
    %v3623 = vunpack.c.l.b16 %v3075
    %v3624 = vunpack.c.h.b16 %v3075
    %v3625 = vunpack.c.l.b16 %v3076
    %v3626 = vunpack.c.h.b16 %v3076
    %v3627 = vunpack.c.l.b16 %v3077
    %v3628 = vunpack.c.h.b16 %v3077
    %v3629 = vunpack.c.l.b16 %v3078
    %v3630 = vunpack.c.h.b16 %v3078
    %v3631 = vunpack.c.l.b16 %v3079
    %v3632 = vunpack.c.h.b16 %v3079
    %v3633 = vunpack.c.l.b16 %v3080
    %v3634 = vunpack.c.h.b16 %v3080
    %v3635 = vunpack.c.l.b16 %v3081
    %v3636 = vunpack.c.h.b16 %v3081
    %v3637 = vunpack.c.l.b16 %v3082
    %v3638 = vunpack.c.h.b16 %v3082
    %v3639 = vunpack.c.l.b16 %v3083
    %v3640 = vunpack.c.h.b16 %v3083
    %v3641 = vunpack.c.l.b16 %v3084
    %v3642 = vunpack.c.h.b16 %v3084
    %v3643 = vunpack.c.l.b16 %v3085
    %v3644 = vunpack.c.h.b16 %v3085
    %v3645 = vunpack.c.l.b16 %v3086
    %v3646 = vunpack.c.h.b16 %v3086
    %v3647 = vunpack.c.l.b16 %v3087
    %v3648 = vunpack.c.h.b16 %v3087
    %v3649 = vunpack.c.l.b16 %v3088
    %v3650 = vunpack.c.h.b16 %v3088
    %v3651 = vunpack.c.l.b16 %v3089
    %v3652 = vunpack.c.h.b16 %v3089
    %v3653 = vunpack.c.l.b16 %v3090
    %v3654 = vunpack.c.h.b16 %v3090
    %v3655 = vunpack.c.l.b16 %v3091
    %v3656 = vunpack.c.h.b16 %v3091
    %v3657 = vunpack.c.l.b16 %v3092
    %v3658 = vunpack.c.h.b16 %v3092
    %v3659 = vunpack.c.l.b16 %v3093
    %v3660 = vunpack.c.h.b16 %v3093
    %v3661 = vunpack.c.l.b16 %v3094
    %v3662 = vunpack.c.h.b16 %v3094
    %v3663 = vunpack.c.l.b16 %v3095
    %v3664 = vunpack.c.h.b16 %v3095
    %v3665 = vunpack.c.l.b16 %v3096
    %v3666 = vunpack.c.h.b16 %v3096
    %v3667 = vunpack.c.l.b16 %v3097
    %v3668 = vunpack.c.h.b16 %v3097
    %v3669 = vunpack.c.l.b16 %v3098
    %v3670 = vunpack.c.h.b16 %v3098
    %v3671 = vunpack.c.l.b16 %v3099
    %v3672 = vunpack.c.h.b16 %v3099
    %v3673 = vunpack.c.l.b16 %v3100
    %v3674 = vunpack.c.h.b16 %v3100
    %v3675 = vunpack.c.l.b16 %v3101
    %v3676 = vunpack.c.h.b16 %v3101
    %v3677 = vunpack.c.l.b16 %v3102
    %v3678 = vunpack.c.h.b16 %v3102
    %v3679 = vunpack.c.l.b16 %v3103
    %v3680 = vunpack.c.h.b16 %v3103
    %v3681 = vunpack.c.l.b16 %v3104
    %v3682 = vunpack.c.h.b16 %v3104
    %v3683 = vunpack.c.l.b16 %v3105
    %v3684 = vunpack.c.h.b16 %v3105
    %v3685 = vunpack.c.l.b16 %v3106
    %v3686 = vunpack.c.h.b16 %v3106
    %v3687 = vunpack.c.l.b16 %v3107
    %v3688 = vunpack.c.h.b16 %v3107
    %v3689 = vunpack.c.l.b16 %v3108
    %v3690 = vunpack.c.h.b16 %v3108
    %v3691 = vunpack.c.l.b16 %v3109
    %v3692 = vunpack.c.h.b16 %v3109
    %v3693 = vunpack.c.l.b16 %v3110
    %v3694 = vunpack.c.h.b16 %v3110
    %v3695 = vunpack.c.l.b16 %v3111
    %v3696 = vunpack.c.h.b16 %v3111
    %v3697 = vunpack.c.l.b16 %v3112
    %v3698 = vunpack.c.h.b16 %v3112
    %v3699 = vunpack.c.l.b16 %v3113
    %v3700 = vunpack.c.h.b16 %v3113
    %v3701 = vunpack.c.l.b16 %v3114
    %v3702 = vunpack.c.h.b16 %v3114
    %v3703 = vunpack.c.l.b16 %v3115
    %v3704 = vunpack.c.h.b16 %v3115
    %v3705 = vunpack.c.l.b16 %v3116
    %v3706 = vunpack.c.h.b16 %v3116
    %v3707 = vunpack.c.l.b16 %v3117
    %v3708 = vunpack.c.h.b16 %v3117
    %v3709 = vunpack.c.l.b16 %v3118
    %v3710 = vunpack.c.h.b16 %v3118
    %v3711 = vunpack.c.l.b16 %v3119
    %v3712 = vunpack.c.h.b16 %v3119
    %v3713 = vunpack.c.l.b16 %v3120
    %v3714 = vunpack.c.h.b16 %v3120
    %v3715 = vunpack.c.l.b16 %v3121
    %v3716 = vunpack.c.h.b16 %v3121
    %v3717 = vunpack.c.l.b16 %v3122
    %v3718 = vunpack.c.h.b16 %v3122
    %v3719 = vunpack.c.l.b16 %v3123
    %v3720 = vunpack.c.h.b16 %v3123
    %v3721 = vunpack.c.l.b16 %v3124
    %v3722 = vunpack.c.h.b16 %v3124
    %v3723 = vunpack.c.l.b16 %v3125
    %v3724 = vunpack.c.h.b16 %v3125
    %v3725 = vunpack.c.l.b16 %v3126
    %v3726 = vunpack.c.h.b16 %v3126
    %v3727 = vunpack.c.l.b16 %v3127
    %v3728 = vunpack.c.h.b16 %v3127
    %v3729 = vunpack.c.l.b16 %v3128
    %v3730 = vunpack.c.h.b16 %v3128
    %v3731 = vunpack.c.l.b16 %v3129
    %v3732 = vunpack.c.h.b16 %v3129
    %v3733 = vunpack.c.l.b16 %v3130
    %v3734 = vunpack.c.h.b16 %v3130
    %v3735 = vunpack.c.l.b16 %v3131
    %v3736 = vunpack.c.h.b16 %v3131
    %v3737 = vunpack.c.l.b16 %v3132
    %v3738 = vunpack.c.h.b16 %v3132
    %v3739 = vunpack.c.l.b16 %v3133
    %v3740 = vunpack.c.h.b16 %v3133
    %v3741 = vunpack.c.l.b16 %v3134
    %v3742 = vunpack.c.h.b16 %v3134
    %v3743 = vunpack.c.l.b16 %v3135
    %v3744 = vunpack.c.h.b16 %v3135
    %v3745 = vunpack.c.l.b16 %v3136
    %v3746 = vunpack.c.h.b16 %v3136
    %v3747 = vunpack.c.l.b16 %v3137
    %v3748 = vunpack.c.h.b16 %v3137
    %v3749 = vunpack.c.l.b16 %v3138
    %v3750 = vunpack.c.h.b16 %v3138
    %v3751 = vunpack.c.l.b16 %v3139
    %v3752 = vunpack.c.h.b16 %v3139
    %v3753 = vunpack.c.l.b16 %v3140
    %v3754 = vunpack.c.h.b16 %v3140
    %v3755 = vunpack.c.l.b16 %v3141
    %v3756 = vunpack.c.h.b16 %v3141
    %v3757 = vunpack.c.l.b16 %v3142
    %v3758 = vunpack.c.h.b16 %v3142
    %v3759 = vunpack.c.l.b16 %v3143
    %v3760 = vunpack.c.h.b16 %v3143
    %v3761 = vunpack.c.l.b16 %v3144
    %v3762 = vunpack.c.h.b16 %v3144
    %v3763 = vunpack.c.l.b16 %v3145
    %v3764 = vunpack.c.h.b16 %v3145
    %v3765 = vunpack.c.l.b16 %v3146
    %v3766 = vunpack.c.h.b16 %v3146
    %v3767 = vunpack.c.l.b16 %v3147
    %v3768 = vunpack.c.h.b16 %v3147
    %v3769 = vunpack.c.l.b16 %v3148
    %v3770 = vunpack.c.h.b16 %v3148
    %v3771 = vunpack.c.l.b16 %v3149
    %v3772 = vunpack.c.h.b16 %v3149
    %v3773 = vunpack.c.l.b16 %v3150
    %v3774 = vunpack.c.h.b16 %v3150
    %v3775 = vunpack.c.l.b16 %v3151
    %v3776 = vunpack.c.h.b16 %v3151
    %v3777 = vunpack.c.l.b16 %v3152
    %v3778 = vunpack.c.h.b16 %v3152
    %v3779 = vunpack.c.l.b16 %v3153
    %v3780 = vunpack.c.h.b16 %v3153
    %v3781 = vunpack.c.l.b16 %v3154
    %v3782 = vunpack.c.h.b16 %v3154
    %v3783 = vunpack.c.l.b16 %v3155
    %v3784 = vunpack.c.h.b16 %v3155
    %v3785 = vunpack.c.l.b16 %v3156
    %v3786 = vunpack.c.h.b16 %v3156
    %v3787 = vunpack.c.l.b16 %v3157
    %v3788 = vunpack.c.h.b16 %v3157
    %v3789 = vunpack.c.l.b16 %v3158
    %v3790 = vunpack.c.h.b16 %v3158
    %v3791 = vunpack.c.l.b16 %v3159
    %v3792 = vunpack.c.h.b16 %v3159
    %v3793 = vunpack.c.l.b16 %v3160
    %v3794 = vunpack.c.h.b16 %v3160
    %v3795 = vunpack.c.l.b16 %v3161
    %v3796 = vunpack.c.h.b16 %v3161
    %v3797 = vunpack.c.l.b16 %v3162
    %v3798 = vunpack.c.h.b16 %v3162
    %v3799 = vunpack.c.l.b16 %v3163
    %v3800 = vunpack.c.h.b16 %v3163
    %v3801 = vunpack.c.l.b16 %v3164
    %v3802 = vunpack.c.h.b16 %v3164
    %v3803 = vunpack.c.l.b16 %v3165
    %v3804 = vunpack.c.h.b16 %v3165
    %v3805 = vunpack.c.l.b16 %v3166
    %v3806 = vunpack.c.h.b16 %v3166
    %v3807 = vunpack.c.l.b16 %v3167
    %v3808 = vunpack.c.h.b16 %v3167
    %v3809 = vunpack.c.l.b16 %v3168
    %v3810 = vunpack.c.h.b16 %v3168
    %v3811 = vunpack.c.l.b16 %v3169
    %v3812 = vunpack.c.h.b16 %v3169
    %v3813 = vunpack.c.l.b16 %v3170
    %v3814 = vunpack.c.h.b16 %v3170
    %v3815 = vunpack.c.l.b16 %v3171
    %v3816 = vunpack.c.h.b16 %v3171
    %v3817 = vunpack.c.l.b16 %v3172
    %v3818 = vunpack.c.h.b16 %v3172
    %v3819 = vunpack.c.l.b16 %v3173
    %v3820 = vunpack.c.h.b16 %v3173
    %v3821 = vunpack.c.l.b16 %v3174
    %v3822 = vunpack.c.h.b16 %v3174
    %v3823 = vunpack.c.l.b16 %v3175
    %v3824 = vunpack.c.h.b16 %v3175
    %v3825 = vunpack.c.l.b16 %v3176
    %v3826 = vunpack.c.h.b16 %v3176
    %v3827 = vunpack.c.l.b16 %v3177
    %v3828 = vunpack.c.h.b16 %v3177
    %v3829 = vunpack.c.l.b16 %v3178
    %v3830 = vunpack.c.h.b16 %v3178
    %v3831 = vunpack.c.l.b16 %v3179
    %v3832 = vunpack.c.h.b16 %v3179
    %v3833 = vunpack.c.l.b16 %v3180
    %v3834 = vunpack.c.h.b16 %v3180
    %v3835 = vunpack.c.l.b16 %v3181
    %v3836 = vunpack.c.h.b16 %v3181
    %v3837 = vunpack.c.l.b16 %v3182
    %v3838 = vunpack.c.h.b16 %v3182
    %v3839 = vunpack.c.l.b16 %v3183
    %v3840 = vunpack.c.h.b16 %v3183
    %v3841 = vunpack.c.l.b16 %v3184
    %v3842 = vunpack.c.h.b16 %v3184
    %v3843 = vunpack.c.l.b16 %v3185
    %v3844 = vunpack.c.h.b16 %v3185
    %v3845 = vunpack.c.l.b16 %v3186
    %v3846 = vunpack.c.h.b16 %v3186
    %v3847 = vunpack.c.l.b16 %v3187
    %v3848 = vunpack.c.h.b16 %v3187
    %v3849 = vunpack.c.l.b16 %v3188
    %v3850 = vunpack.c.h.b16 %v3188
    %v3851 = vunpack.c.l.b16 %v3189
    %v3852 = vunpack.c.h.b16 %v3189
    %v3853 = vunpack.c.l.b16 %v3190
    %v3854 = vunpack.c.h.b16 %v3190
    %v3855 = vunpack.c.l.b16 %v3191
    %v3856 = vunpack.c.h.b16 %v3191
    %v3857 = vunpack.c.l.b16 %v3192
    %v3858 = vunpack.c.h.b16 %v3192
    %v3859 = vunpack.c.l.b16 %v3193
    %v3860 = vunpack.c.h.b16 %v3193
    %v3861 = vunpack.c.l.b16 %v3194
    %v3862 = vunpack.c.h.b16 %v3194
    %v3863 = vunpack.c.l.b16 %v3195
    %v3864 = vunpack.c.h.b16 %v3195
    %v3865 = vunpack.c.l.b16 %v3196
    %v3866 = vunpack.c.h.b16 %v3196
    %v3867 = vunpack.c.l.b16 %v3197
    %v3868 = vunpack.c.h.b16 %v3197
    %v3869 = vunpack.c.l.b16 %v3198
    %v3870 = vunpack.c.h.b16 %v3198
    %v3871 = vunpack.c.l.b16 %v3199
    %v3872 = vunpack.c.h.b16 %v3199
    %v3873 = vunpack.c.l.b16 %v3200
    %v3874 = vunpack.c.h.b16 %v3200
    %v3875 = vunpack.c.l.b16 %v3201
    %v3876 = vunpack.c.h.b16 %v3201
    %v3877 = vunpack.c.l.b16 %v3202
    %v3878 = vunpack.c.h.b16 %v3202
    %v3879 = vunpack.c.l.b16 %v3203
    %v3880 = vunpack.c.h.b16 %v3203
    %v3881 = vunpack.c.l.b16 %v3204
    %v3882 = vunpack.c.h.b16 %v3204
    %v3883 = vunpack.c.l.b16 %v3205
    %v3884 = vunpack.c.h.b16 %v3205
    %v3885 = vunpack.c.l.b16 %v3206
    %v3886 = vunpack.c.h.b16 %v3206
    %v3887 = vunpack.c.l.b16 %v3207
    %v3888 = vunpack.c.h.b16 %v3207
    %v3889 = vunpack.c.l.b16 %v3208
    %v3890 = vunpack.c.h.b16 %v3208
    %v3891 = vunpack.c.l.b16 %v3209
    %v3892 = vunpack.c.h.b16 %v3209
    %v3893 = vunpack.c.l.b16 %v3210
    %v3894 = vunpack.c.h.b16 %v3210
    %v3895 = vunpack.c.l.b16 %v3211
    %v3896 = vunpack.c.h.b16 %v3211
    %v3897 = vunpack.c.l.b16 %v3212
    %v3898 = vunpack.c.h.b16 %v3212
    %v3899 = vunpack.c.l.b16 %v3213
    %v3900 = vunpack.c.h.b16 %v3213
    %v3901 = vunpack.c.l.b16 %v3214
    %v3902 = vunpack.c.h.b16 %v3214
    %v3903 = vunpack.c.l.b16 %v3215
    %v3904 = vunpack.c.h.b16 %v3215
    %v3905 = vunpack.c.l.b16 %v3216
    %v3906 = vunpack.c.h.b16 %v3216
    %v3907 = vunpack.c.l.b16 %v3217
    %v3908 = vunpack.c.h.b16 %v3217
    %v3909 = vunpack.c.l.b16 %v3218
    %v3910 = vunpack.c.h.b16 %v3218
    %v3911 = vunpack.c.l.b16 %v3219
    %v3912 = vunpack.c.h.b16 %v3219
    %v3913 = vunpack.c.l.b16 %v3220
    %v3914 = vunpack.c.h.b16 %v3220
    %v3915 = vunpack.c.l.b16 %v3221
    %v3916 = vunpack.c.h.b16 %v3221
    %v3917 = vunpack.c.l.b16 %v3222
    %v3918 = vunpack.c.h.b16 %v3222
    %v3919 = vunpack.c.l.b16 %v3223
    %v3920 = vunpack.c.h.b16 %v3223
    %v3921 = vunpack.c.l.b16 %v3224
    %v3922 = vunpack.c.h.b16 %v3224
    %v3923 = vunpack.c.l.b16 %v3225
    %v3924 = vunpack.c.h.b16 %v3225
    %v3925 = vunpack.c.l.b16 %v3226
    %v3926 = vunpack.c.h.b16 %v3226
    %v3927 = vunpack.c.l.b16 %v3227
    %v3928 = vunpack.c.h.b16 %v3227
    %v3929 = vunpack.c.l.b16 %v3228
    %v3930 = vunpack.c.h.b16 %v3228
    %v3931 = vunpack.c.l.b16 %v3229
    %v3932 = vunpack.c.h.b16 %v3229
    %v3933 = vunpack.c.l.b16 %v3230
    %v3934 = vunpack.c.h.b16 %v3230
    %v3935 = vunpack.c.l.b16 %v3231
    %v3936 = vunpack.c.h.b16 %v3231
    %v3937 = vunpack.c.l.b16 %v3232
    %v3938 = vunpack.c.h.b16 %v3232
    %v3939 = vunpack.c.l.b16 %v3233
    %v3940 = vunpack.c.h.b16 %v3233
    %v3941 = vunpack.c.l.b16 %v3234
    %v3942 = vunpack.c.h.b16 %v3234
    %v3943 = vunpack.c.l.b16 %v3235
    %v3944 = vunpack.c.h.b16 %v3235
    %v3945 = vunpack.c.l.b16 %v3236
    %v3946 = vunpack.c.h.b16 %v3236
    %v3947 = vunpack.c.l.b16 %v3237
    %v3948 = vunpack.c.h.b16 %v3237
    %v3949 = vunpack.c.l.b16 %v3238
    %v3950 = vunpack.c.h.b16 %v3238
    %v3951 = vunpack.c.l.b16 %v3239
    %v3952 = vunpack.c.h.b16 %v3239
    %v3953 = vunpack.c.l.b16 %v3240
    %v3954 = vunpack.c.h.b16 %v3240
    %v3955 = vunpack.c.l.b16 %v3241
    %v3956 = vunpack.c.h.b16 %v3241
    %v3957 = vunpack.c.l.b16 %v3242
    %v3958 = vunpack.c.h.b16 %v3242
    %v3959 = vunpack.c.l.b16 %v3243
    %v3960 = vunpack.c.h.b16 %v3243
    %v3961 = vunpack.c.l.b16 %v3244
    %v3962 = vunpack.c.h.b16 %v3244
    %v3963 = vunpack.c.l.b16 %v3245
    %v3964 = vunpack.c.h.b16 %v3245
    %v3965 = vunpack.c.l.b16 %v3246
    %v3966 = vunpack.c.h.b16 %v3246
    %v3967 = vunpack.c.l.b16 %v3247
    %v3968 = vunpack.c.h.b16 %v3247
    %v3969 = vunpack.c.l.b16 %v3248
    %v3970 = vunpack.c.h.b16 %v3248
    %v3971 = vunpack.c.l.b16 %v3249
    %v3972 = vunpack.c.h.b16 %v3249
    %v3973 = vunpack.c.l.b16 %v3250
    %v3974 = vunpack.c.h.b16 %v3250
    %v3975 = vunpack.c.l.b16 %v3251
    %v3976 = vunpack.c.h.b16 %v3251
    %v3977 = vunpack.c.l.b16 %v3252
    %v3978 = vunpack.c.h.b16 %v3252
    %v3979 = vunpack.c.l.b16 %v3253
    %v3980 = vunpack.c.h.b16 %v3253
    %v3981 = vunpack.c.l.b16 %v3254
    %v3982 = vunpack.c.h.b16 %v3254
    %v3983 = vunpack.c.l.b16 %v3255
    %v3984 = vunpack.c.h.b16 %v3255
    %v3985 = vunpack.c.l.b16 %v3256
    %v3986 = vunpack.c.h.b16 %v3256
    %v3987 = vunpack.c.l.b16 %v3257
    %v3988 = vunpack.c.h.b16 %v3257
    %v3989 = vunpack.c.l.b16 %v3258
    %v3990 = vunpack.c.h.b16 %v3258
    %v3991 = vunpack.c.l.b16 %v3259
    %v3992 = vunpack.c.h.b16 %v3259
    %v3993 = vunpack.c.l.b16 %v3260
    %v3994 = vunpack.c.h.b16 %v3260
    %v3995 = vunpack.c.l.b16 %v3261
    %v3996 = vunpack.c.h.b16 %v3261
    %v3997 = vunpack.c.l.b16 %v3262
    %v3998 = vunpack.c.h.b16 %v3262
    %v3999 = vunpack.c.l.b16 %v3263
    %v4000 = vunpack.c.h.b16 %v3263
    %v4001 = vunpack.c.l.b16 %v3264
    %v4002 = vunpack.c.h.b16 %v3264
    %v4003 = vunpack.c.l.b16 %v3265
    %v4004 = vunpack.c.h.b16 %v3265
    %v4005 = vunpack.c.l.b16 %v3266
    %v4006 = vunpack.c.h.b16 %v3266
    %v4007 = vunpack.c.l.b16 %v3267
    %v4008 = vunpack.c.h.b16 %v3267
    %v4009 = vunpack.c.l.b16 %v3268
    %v4010 = vunpack.c.h.b16 %v3268
    %v4011 = vunpack.c.l.b16 %v3269
    %v4012 = vunpack.c.h.b16 %v3269
    %v4013 = vunpack.c.l.b16 %v3270
    %v4014 = vunpack.c.h.b16 %v3270
    %v4015 = vunpack.c.l.b16 %v3271
    %v4016 = vunpack.c.h.b16 %v3271
    %v4017 = vunpack.c.l.b16 %v3272
    %v4018 = vunpack.c.h.b16 %v3272
    %v4019 = vunpack.c.l.b16 %v3273
    %v4020 = vunpack.c.h.b16 %v3273
    %v4021 = vunpack.c.l.b16 %v3274
    %v4022 = vunpack.c.h.b16 %v3274
    %v4023 = vunpack.c.l.b16 %v3275
    %v4024 = vunpack.c.h.b16 %v3275
    %v4025 = vunpack.c.l.b16 %v3276
    %v4026 = vunpack.c.h.b16 %v3276
    %v4027 = vunpack.c.l.b16 %v3277
    %v4028 = vunpack.c.h.b16 %v3277
    %v4029 = vunpack.c.l.b16 %v3278
    %v4030 = vunpack.c.h.b16 %v3278
    %v4031 = vunpack.c.l.b16 %v3279
    %v4032 = vunpack.c.h.b16 %v3279
    %v4033 = vunpack.c.l.b16 %v3280
    %v4034 = vunpack.c.h.b16 %v3280
    %v4035 = vunpack.c.l.b16 %v3281
    %v4036 = vunpack.c.h.b16 %v3281
    %v4037 = vunpack.c.l.b16 %v3282
    %v4038 = vunpack.c.h.b16 %v3282
    %v4039 = vunpack.c.l.b16 %v3283
    %v4040 = vunpack.c.h.b16 %v3283
    %v4041 = vunpack.c.l.b16 %v3284
    %v4042 = vunpack.c.h.b16 %v3284
    %v4043 = vunpack.c.l.b16 %v3285
    %v4044 = vunpack.c.h.b16 %v3285
    %v4045 = vunpack.c.l.b16 %v3286
    %v4046 = vunpack.c.h.b16 %v3286
    %v4047 = vunpack.c.l.b16 %v3287
    %v4048 = vunpack.c.h.b16 %v3287
    %v4049 = vunpack.c.l.b16 %v3288
    %v4050 = vunpack.c.h.b16 %v3288
    %v4051 = vunpack.c.l.b16 %v3289
    %v4052 = vunpack.c.h.b16 %v3289
    %v4053 = vunpack.c.l.b16 %v3290
    %v4054 = vunpack.c.h.b16 %v3290
    %v4055 = vunpack.c.l.b16 %v3291
    %v4056 = vunpack.c.h.b16 %v3291
    %v4057 = vunpack.c.l.b16 %v3292
    %v4058 = vunpack.c.h.b16 %v3292
    %v4059 = vunpack.c.l.b16 %v3293
    %v4060 = vunpack.c.h.b16 %v3293
    %v4061 = vunpack.c.l.b16 %v3294
    %v4062 = vunpack.c.h.b16 %v3294
    %v4063 = vunpack.c.l.b16 %v3295
    %v4064 = vunpack.c.h.b16 %v3295
    %v4065 = vunpack.c.l.b16 %v3296
    %v4066 = vunpack.c.h.b16 %v3296
    %v4067 = vunpack.c.l.b16 %v3297
    %v4068 = vunpack.c.h.b16 %v3297
    %v4069 = vunpack.c.l.b16 %v3298
    %v4070 = vunpack.c.h.b16 %v3298
    %v4071 = vunpack.c.l.b16 %v3299
    %v4072 = vunpack.c.h.b16 %v3299
    %v4073 = vunpack.c.l.b16 %v3300
    %v4074 = vunpack.c.h.b16 %v3300
    %v4075 = vunpack.c.l.b16 %v3301
    %v4076 = vunpack.c.h.b16 %v3301
    %v4077 = vunpack.c.l.b16 %v3302
    %v4078 = vunpack.c.h.b16 %v3302
    %v4079 = vunpack.c.l.b16 %v3303
    %v4080 = vunpack.c.h.b16 %v3303
    %v4081 = vunpack.c.l.b16 %v3304
    %v4082 = vunpack.c.h.b16 %v3304
    %v4083 = vunpack.c.l.b16 %v3305
    %v4084 = vunpack.c.h.b16 %v3305
    %v4085 = vunpack.c.l.b16 %v3306
    %v4086 = vunpack.c.h.b16 %v3306
    %v4087 = vunpack.c.l.b16 %v3307
    %v4088 = vunpack.c.h.b16 %v3307
    %v4089 = vunpack.c.l.b16 %v3308
    %v4090 = vunpack.c.h.b16 %v3308
    %v4091 = vunpack.c.l.b16 %v3309
    %v4092 = vunpack.c.h.b16 %v3309
    %v4093 = vunpack.c.l.b16 %v3310
    %v4094 = vunpack.c.h.b16 %v3310
    %v4095 = vunpack.c.l.b16 %v3311
    %v4096 = vunpack.c.h.b16 %v3311
    %v4097 = vunpack.c.l.b16 %v3312
    %v4098 = vunpack.c.h.b16 %v3312
    %v4099 = vunpack.c.l.b16 %v3313
    %v4100 = vunpack.c.h.b16 %v3313
    %v4101 = vunpack.c.l.b16 %v3314
    %v4102 = vunpack.c.h.b16 %v3314
    %v4103 = vunpack.c.l.b16 %v3315
    %v4104 = vunpack.c.h.b16 %v3315
    %v4105 = vunpack.c.l.b16 %v3316
    %v4106 = vunpack.c.h.b16 %v3316
    %v4107 = vpack.c.b16 %v3599, %v3595
    %v4108 = vpack.c.b16 %v3600, %v3596
    %v4109 = vpack.c.b16 %v3601, %v3597
    %v4110 = vpack.c.b16 %v3602, %v3598
    %v4111 = vpack.c.b16 %v3607, %v3603
    %v4112 = vpack.c.b16 %v3608, %v3604
    %v4113 = vpack.c.b16 %v3609, %v3605
    %v4114 = vpack.c.b16 %v3610, %v3606
    %v4115 = vpack.c.b16 %v3615, %v3611
    %v4116 = vpack.c.b16 %v3616, %v3612
    %v4117 = vpack.c.b16 %v3617, %v3613
    %v4118 = vpack.c.b16 %v3618, %v3614
    %v4119 = vpack.c.b16 %v3623, %v3619
    %v4120 = vpack.c.b16 %v3624, %v3620
    %v4121 = vpack.c.b16 %v3625, %v3621
    %v4122 = vpack.c.b16 %v3626, %v3622
    %v4123 = vpack.c.b16 %v3631, %v3627
    %v4124 = vpack.c.b16 %v3632, %v3628
    %v4125 = vpack.c.b16 %v3633, %v3629
    %v4126 = vpack.c.b16 %v3634, %v3630
    %v4127 = vpack.c.b16 %v3639, %v3635
    %v4128 = vpack.c.b16 %v3640, %v3636
    %v4129 = vpack.c.b16 %v3641, %v3637
    %v4130 = vpack.c.b16 %v3642, %v3638
    %v4131 = vpack.c.b16 %v3647, %v3643
    %v4132 = vpack.c.b16 %v3648, %v3644
    %v4133 = vpack.c.b16 %v3649, %v3645
    %v4134 = vpack.c.b16 %v3650, %v3646
    %v4135 = vpack.c.b16 %v3655, %v3651
    %v4136 = vpack.c.b16 %v3656, %v3652
    %v4137 = vpack.c.b16 %v3657, %v3653
    %v4138 = vpack.c.b16 %v3658, %v3654
    %v4139 = vpack.c.b16 %v3663, %v3659
    %v4140 = vpack.c.b16 %v3664, %v3660
    %v4141 = vpack.c.b16 %v3665, %v3661
    %v4142 = vpack.c.b16 %v3666, %v3662
    %v4143 = vpack.c.b16 %v3671, %v3667
    %v4144 = vpack.c.b16 %v3672, %v3668
    %v4145 = vpack.c.b16 %v3673, %v3669
    %v4146 = vpack.c.b16 %v3674, %v3670
    %v4147 = vpack.c.b16 %v3679, %v3675
    %v4148 = vpack.c.b16 %v3680, %v3676
    %v4149 = vpack.c.b16 %v3681, %v3677
    %v4150 = vpack.c.b16 %v3682, %v3678
    %v4151 = vpack.c.b16 %v3687, %v3683
    %v4152 = vpack.c.b16 %v3688, %v3684
    %v4153 = vpack.c.b16 %v3689, %v3685
    %v4154 = vpack.c.b16 %v3690, %v3686
    %v4155 = vpack.c.b16 %v3695, %v3691
    %v4156 = vpack.c.b16 %v3696, %v3692
    %v4157 = vpack.c.b16 %v3697, %v3693
    %v4158 = vpack.c.b16 %v3698, %v3694
    %v4159 = vpack.c.b16 %v3703, %v3699
    %v4160 = vpack.c.b16 %v3704, %v3700
    %v4161 = vpack.c.b16 %v3705, %v3701
    %v4162 = vpack.c.b16 %v3706, %v3702
    %v4163 = vpack.c.b16 %v3711, %v3707
    %v4164 = vpack.c.b16 %v3712, %v3708
    %v4165 = vpack.c.b16 %v3713, %v3709
    %v4166 = vpack.c.b16 %v3714, %v3710
    %v4167 = vpack.c.b16 %v3719, %v3715
    %v4168 = vpack.c.b16 %v3720, %v3716
    %v4169 = vpack.c.b16 %v3721, %v3717
    %v4170 = vpack.c.b16 %v3722, %v3718
    %v4171 = vpack.c.b16 %v3727, %v3723
    %v4172 = vpack.c.b16 %v3728, %v3724
    %v4173 = vpack.c.b16 %v3729, %v3725
    %v4174 = vpack.c.b16 %v3730, %v3726
    %v4175 = vpack.c.b16 %v3735, %v3731
    %v4176 = vpack.c.b16 %v3736, %v3732
    %v4177 = vpack.c.b16 %v3737, %v3733
    %v4178 = vpack.c.b16 %v3738, %v3734
    %v4179 = vpack.c.b16 %v3743, %v3739
    %v4180 = vpack.c.b16 %v3744, %v3740
    %v4181 = vpack.c.b16 %v3745, %v3741
    %v4182 = vpack.c.b16 %v3746, %v3742
    %v4183 = vpack.c.b16 %v3751, %v3747
    %v4184 = vpack.c.b16 %v3752, %v3748
    %v4185 = vpack.c.b16 %v3753, %v3749
    %v4186 = vpack.c.b16 %v3754, %v3750
    %v4187 = vpack.c.b16 %v3759, %v3755
    %v4188 = vpack.c.b16 %v3760, %v3756
    %v4189 = vpack.c.b16 %v3761, %v3757
    %v4190 = vpack.c.b16 %v3762, %v3758
    %v4191 = vpack.c.b16 %v3767, %v3763
    %v4192 = vpack.c.b16 %v3768, %v3764
    %v4193 = vpack.c.b16 %v3769, %v3765
    %v4194 = vpack.c.b16 %v3770, %v3766
    %v4195 = vpack.c.b16 %v3775, %v3771
    %v4196 = vpack.c.b16 %v3776, %v3772
    %v4197 = vpack.c.b16 %v3777, %v3773
    %v4198 = vpack.c.b16 %v3778, %v3774
    %v4199 = vpack.c.b16 %v3783, %v3779
    %v4200 = vpack.c.b16 %v3784, %v3780
    %v4201 = vpack.c.b16 %v3785, %v3781
    %v4202 = vpack.c.b16 %v3786, %v3782
    %v4203 = vpack.c.b16 %v3791, %v3787
    %v4204 = vpack.c.b16 %v3792, %v3788
    %v4205 = vpack.c.b16 %v3793, %v3789
    %v4206 = vpack.c.b16 %v3794, %v3790
    %v4207 = vpack.c.b16 %v3799, %v3795
    %v4208 = vpack.c.b16 %v3800, %v3796
    %v4209 = vpack.c.b16 %v3801, %v3797
    %v4210 = vpack.c.b16 %v3802, %v3798
    %v4211 = vpack.c.b16 %v3807, %v3803
    %v4212 = vpack.c.b16 %v3808, %v3804
    %v4213 = vpack.c.b16 %v3809, %v3805
    %v4214 = vpack.c.b16 %v3810, %v3806
    %v4215 = vpack.c.b16 %v3815, %v3811
    %v4216 = vpack.c.b16 %v3816, %v3812
    %v4217 = vpack.c.b16 %v3817, %v3813
    %v4218 = vpack.c.b16 %v3818, %v3814
    %v4219 = vpack.c.b16 %v3823, %v3819
    %v4220 = vpack.c.b16 %v3824, %v3820
    %v4221 = vpack.c.b16 %v3825, %v3821
    %v4222 = vpack.c.b16 %v3826, %v3822
    %v4223 = vpack.c.b16 %v3831, %v3827
    %v4224 = vpack.c.b16 %v3832, %v3828
    %v4225 = vpack.c.b16 %v3833, %v3829
    %v4226 = vpack.c.b16 %v3834, %v3830
    %v4227 = vpack.c.b16 %v3839, %v3835
    %v4228 = vpack.c.b16 %v3840, %v3836
    %v4229 = vpack.c.b16 %v3841, %v3837
    %v4230 = vpack.c.b16 %v3842, %v3838
    %v4231 = vpack.c.b16 %v3847, %v3843
    %v4232 = vpack.c.b16 %v3848, %v3844
    %v4233 = vpack.c.b16 %v3849, %v3845
    %v4234 = vpack.c.b16 %v3850, %v3846
    %v4235 = vpack.c.b16 %v3855, %v3851
    %v4236 = vpack.c.b16 %v3856, %v3852
    %v4237 = vpack.c.b16 %v3857, %v3853
    %v4238 = vpack.c.b16 %v3858, %v3854
    %v4239 = vpack.c.b16 %v3863, %v3859
    %v4240 = vpack.c.b16 %v3864, %v3860
    %v4241 = vpack.c.b16 %v3865, %v3861
    %v4242 = vpack.c.b16 %v3866, %v3862
    %v4243 = vpack.c.b16 %v3871, %v3867
    %v4244 = vpack.c.b16 %v3872, %v3868
    %v4245 = vpack.c.b16 %v3873, %v3869
    %v4246 = vpack.c.b16 %v3874, %v3870
    %v4247 = vpack.c.b16 %v3879, %v3875
    %v4248 = vpack.c.b16 %v3880, %v3876
    %v4249 = vpack.c.b16 %v3881, %v3877
    %v4250 = vpack.c.b16 %v3882, %v3878
    %v4251 = vpack.c.b16 %v3887, %v3883
    %v4252 = vpack.c.b16 %v3888, %v3884
    %v4253 = vpack.c.b16 %v3889, %v3885
    %v4254 = vpack.c.b16 %v3890, %v3886
    %v4255 = vpack.c.b16 %v3895, %v3891
    %v4256 = vpack.c.b16 %v3896, %v3892
    %v4257 = vpack.c.b16 %v3897, %v3893
    %v4258 = vpack.c.b16 %v3898, %v3894
    %v4259 = vpack.c.b16 %v3903, %v3899
    %v4260 = vpack.c.b16 %v3904, %v3900
    %v4261 = vpack.c.b16 %v3905, %v3901
    %v4262 = vpack.c.b16 %v3906, %v3902
    %v4263 = vpack.c.b16 %v3911, %v3907
    %v4264 = vpack.c.b16 %v3912, %v3908
    %v4265 = vpack.c.b16 %v3913, %v3909
    %v4266 = vpack.c.b16 %v3914, %v3910
    %v4267 = vpack.c.b16 %v3919, %v3915
    %v4268 = vpack.c.b16 %v3920, %v3916
    %v4269 = vpack.c.b16 %v3921, %v3917
    %v4270 = vpack.c.b16 %v3922, %v3918
    %v4271 = vpack.c.b16 %v3927, %v3923
    %v4272 = vpack.c.b16 %v3928, %v3924
    %v4273 = vpack.c.b16 %v3929, %v3925
    %v4274 = vpack.c.b16 %v3930, %v3926
    %v4275 = vpack.c.b16 %v3935, %v3931
    %v4276 = vpack.c.b16 %v3936, %v3932
    %v4277 = vpack.c.b16 %v3937, %v3933
    %v4278 = vpack.c.b16 %v3938, %v3934
    %v4279 = vpack.c.b16 %v3943, %v3939
    %v4280 = vpack.c.b16 %v3944, %v3940
    %v4281 = vpack.c.b16 %v3945, %v3941
    %v4282 = vpack.c.b16 %v3946, %v3942
    %v4283 = vpack.c.b16 %v3951, %v3947
    %v4284 = vpack.c.b16 %v3952, %v3948
    %v4285 = vpack.c.b16 %v3953, %v3949
    %v4286 = vpack.c.b16 %v3954, %v3950
    %v4287 = vpack.c.b16 %v3959, %v3955
    %v4288 = vpack.c.b16 %v3960, %v3956
    %v4289 = vpack.c.b16 %v3961, %v3957
    %v4290 = vpack.c.b16 %v3962, %v3958
    %v4291 = vpack.c.b16 %v3967, %v3963
    %v4292 = vpack.c.b16 %v3968, %v3964
    %v4293 = vpack.c.b16 %v3969, %v3965
    %v4294 = vpack.c.b16 %v3970, %v3966
    %v4295 = vpack.c.b16 %v3975, %v3971
    %v4296 = vpack.c.b16 %v3976, %v3972
    %v4297 = vpack.c.b16 %v3977, %v3973
    %v4298 = vpack.c.b16 %v3978, %v3974
    %v4299 = vpack.c.b16 %v3983, %v3979
    %v4300 = vpack.c.b16 %v3984, %v3980
    %v4301 = vpack.c.b16 %v3985, %v3981
    %v4302 = vpack.c.b16 %v3986, %v3982
    %v4303 = vpack.c.b16 %v3991, %v3987
    %v4304 = vpack.c.b16 %v3992, %v3988
    %v4305 = vpack.c.b16 %v3993, %v3989
    %v4306 = vpack.c.b16 %v3994, %v3990
    %v4307 = vpack.c.b16 %v3999, %v3995
    %v4308 = vpack.c.b16 %v4000, %v3996
    %v4309 = vpack.c.b16 %v4001, %v3997
    %v4310 = vpack.c.b16 %v4002, %v3998
    %v4311 = vpack.c.b16 %v4007, %v4003
    %v4312 = vpack.c.b16 %v4008, %v4004
    %v4313 = vpack.c.b16 %v4009, %v4005
    %v4314 = vpack.c.b16 %v4010, %v4006
    %v4315 = vpack.c.b16 %v4015, %v4011
    %v4316 = vpack.c.b16 %v4016, %v4012
    %v4317 = vpack.c.b16 %v4017, %v4013
    %v4318 = vpack.c.b16 %v4018, %v4014
    %v4319 = vpack.c.b16 %v4023, %v4019
    %v4320 = vpack.c.b16 %v4024, %v4020
    %v4321 = vpack.c.b16 %v4025, %v4021
    %v4322 = vpack.c.b16 %v4026, %v4022
    %v4323 = vpack.c.b16 %v4031, %v4027
    %v4324 = vpack.c.b16 %v4032, %v4028
    %v4325 = vpack.c.b16 %v4033, %v4029
    %v4326 = vpack.c.b16 %v4034, %v4030
    %v4327 = vpack.c.b16 %v4039, %v4035
    %v4328 = vpack.c.b16 %v4040, %v4036
    %v4329 = vpack.c.b16 %v4041, %v4037
    %v4330 = vpack.c.b16 %v4042, %v4038
    %v4331 = vpack.c.b16 %v4047, %v4043
    %v4332 = vpack.c.b16 %v4048, %v4044
    %v4333 = vpack.c.b16 %v4049, %v4045
    %v4334 = vpack.c.b16 %v4050, %v4046
    %v4335 = vpack.c.b16 %v4055, %v4051
    %v4336 = vpack.c.b16 %v4056, %v4052
    %v4337 = vpack.c.b16 %v4057, %v4053
    %v4338 = vpack.c.b16 %v4058, %v4054
    %v4339 = vpack.c.b16 %v4063, %v4059
    %v4340 = vpack.c.b16 %v4064, %v4060
    %v4341 = vpack.c.b16 %v4065, %v4061
    %v4342 = vpack.c.b16 %v4066, %v4062
    %v4343 = vpack.c.b16 %v4071, %v4067
    %v4344 = vpack.c.b16 %v4072, %v4068
    %v4345 = vpack.c.b16 %v4073, %v4069
    %v4346 = vpack.c.b16 %v4074, %v4070
    %v4347 = vpack.c.b16 %v4079, %v4075
    %v4348 = vpack.c.b16 %v4080, %v4076
    %v4349 = vpack.c.b16 %v4081, %v4077
    %v4350 = vpack.c.b16 %v4082, %v4078
    %v4351 = vpack.c.b16 %v4087, %v4083
    %v4352 = vpack.c.b16 %v4088, %v4084
    %v4353 = vpack.c.b16 %v4089, %v4085
    %v4354 = vpack.c.b16 %v4090, %v4086
    %v4355 = vpack.c.b16 %v4095, %v4091
    %v4356 = vpack.c.b16 %v4096, %v4092
    %v4357 = vpack.c.b16 %v4097, %v4093
    %v4358 = vpack.c.b16 %v4098, %v4094
    %v4359 = vpack.c.b16 %v4103, %v4099
    %v4360 = vpack.c.b16 %v4104, %v4100
    %v4361 = vpack.c.b16 %v4105, %v4101
    %v4362 = vpack.c.b16 %v4106, %v4102
    %4619 = vmatprep.subr.bf16.mxu0 %v4108
    %4620 = vmatpush1.bf16.msra.mxu0 %v4107
    %4621 = vmatprep.subr.bf16.mxu0 %v4112
    %4622 = vmatpush1.bf16.msra.mxu0 %v4111
    %4623 = vmatprep.subr.bf16.mxu0 %v4116
    %4624 = vmatpush1.bf16.msra.mxu0 %v4115
    %4625 = vmatprep.subr.bf16.mxu0 %v4120
    %4626 = vmatpush1.bf16.msra.mxu0 %v4119
    %4627 = vmatprep.subr.bf16.mxu0 %v4124
    %4628 = vmatpush1.bf16.msra.mxu0 %v4123
    %4629 = vmatprep.subr.bf16.mxu0 %v4128
    %4630 = vmatpush1.bf16.msra.mxu0 %v4127
    %4631 = vmatprep.subr.bf16.mxu0 %v4132
    %4632 = vmatpush1.bf16.msra.mxu0 %v4131
    %4633 = vmatprep.subr.bf16.mxu0 %v4136
    %4634 = vmatpush1.bf16.msra.mxu0 %v4135
    %4635 = vmatprep.subr.bf16.mxu0 %v4140
    %4636 = vmatpush1.bf16.msra.mxu0 %v4139
    %4637 = vmatprep.subr.bf16.mxu0 %v4144
    %4638 = vmatpush1.bf16.msra.mxu0 %v4143
    %4639 = vmatprep.subr.bf16.mxu0 %v4148
    %4640 = vmatpush1.bf16.msra.mxu0 %v4147
    %4641 = vmatprep.subr.bf16.mxu0 %v4152
    %4642 = vmatpush1.bf16.msra.mxu0 %v4151
    %4643 = vmatprep.subr.bf16.mxu0 %v4156
    %4644 = vmatpush1.bf16.msra.mxu0 %v4155
    %4645 = vmatprep.subr.bf16.mxu0 %v4160
    %4646 = vmatpush1.bf16.msra.mxu0 %v4159
    %4647 = vmatprep.subr.bf16.mxu0 %v4164
    %4648 = vmatpush1.bf16.msra.mxu0 %v4163
    %4649 = vmatprep.subr.bf16.mxu0 %v4168
    %4650 = vmatpush1.bf16.msra.mxu0 %v4167
    %4651 = vmatprep.mubr.bf16.mxu0 %v3054
    %4652 = vmatmul.mubr.bf16.gmra.mrb[0].mxu0 %v3053
    %v4653 = vpop.f32.mrb[0].mxu0
    %v4654 = vadd.f32 %v3322, %v4653
    %v4655 = vpop.f32.mrb[0].mxu0
    %v4656 = vadd.f32 %v3326, %v4655
    %v4657 = vpop.f32.mrb[0].mxu0
    %v4658 = vpop.f32.mrb[0].mxu0
    %4659 = vdwg.mxu0
    %4660 = vmatprep.subr.bf16.mxu0 %v4172
    %4661 = vmatpush1.bf16.msra.mxu0 %v4171
    %4662 = vmatprep.subr.bf16.mxu0 %v4176
    %4663 = vmatpush1.bf16.msra.mxu0 %v4175
    %4664 = vmatprep.subr.bf16.mxu0 %v4180
    %4665 = vmatpush1.bf16.msra.mxu0 %v4179
    %4666 = vmatprep.subr.bf16.mxu0 %v4184
    %4667 = vmatpush1.bf16.msra.mxu0 %v4183
    %4668 = vmatprep.subr.bf16.mxu0 %v4188
    %4669 = vmatpush1.bf16.msra.mxu0 %v4187
    %4670 = vmatprep.subr.bf16.mxu0 %v4192
    %4671 = vmatpush1.bf16.msra.mxu0 %v4191
    %4672 = vmatprep.subr.bf16.mxu0 %v4196
    %4673 = vmatpush1.bf16.msra.mxu0 %v4195
    %4674 = vmatprep.subr.bf16.mxu0 %v4200
    %4675 = vmatpush1.bf16.msra.mxu0 %v4199
    %4676 = vmatprep.subr.bf16.mxu0 %v4204
    %4677 = vmatpush1.bf16.msra.mxu0 %v4203
    %4678 = vmatprep.subr.bf16.mxu0 %v4208
    %4679 = vmatpush1.bf16.msra.mxu0 %v4207
    %4680 = vmatprep.subr.bf16.mxu0 %v4212
    %4681 = vmatpush1.bf16.msra.mxu0 %v4211
    %4682 = vmatprep.subr.bf16.mxu0 %v4216
    %4683 = vmatpush1.bf16.msra.mxu0 %v4215
    %4684 = vmatprep.subr.bf16.mxu0 %v4220
    %4685 = vmatpush1.bf16.msra.mxu0 %v4219
    %4686 = vmatprep.subr.bf16.mxu0 %v4224
    %4687 = vmatpush1.bf16.msra.mxu0 %v4223
    %4688 = vmatprep.subr.bf16.mxu0 %v4228
    %4689 = vmatpush1.bf16.msra.mxu0 %v4227
    %4690 = vmatprep.subr.bf16.mxu0 %v4232
    %4691 = vmatpush1.bf16.msra.mxu0 %v4231
    %4692 = vmatprep.mubr.bf16.mxu0 %v3056
    %4693 = vmatmul.mubr.bf16.gmra.mrb[0].mxu0 %v3055
    %v4694 = vpop.f32.mrb[0].mxu0
    %v4695 = vadd.f32 %v4654, %v4694
    %v4696 = vpop.f32.mrb[0].mxu0
    %v4697 = vadd.f32 %v4656, %v4696
    %v4698 = vpop.f32.mrb[0].mxu0
    %v4699 = vpop.f32.mrb[0].mxu0
    %4700 = vdwg.mxu0
    %4701 = vmatprep.subr.bf16.mxu0 %v4236
    %4702 = vmatpush1.bf16.msra.mxu0 %v4235
    %4703 = vmatprep.subr.bf16.mxu0 %v4240
    %4704 = vmatpush1.bf16.msra.mxu0 %v4239
    %4705 = vmatprep.subr.bf16.mxu0 %v4244
    %4706 = vmatpush1.bf16.msra.mxu0 %v4243
    %4707 = vmatprep.subr.bf16.mxu0 %v4248
    %4708 = vmatpush1.bf16.msra.mxu0 %v4247
    %4709 = vmatprep.subr.bf16.mxu0 %v4252
    %4710 = vmatpush1.bf16.msra.mxu0 %v4251
    %4711 = vmatprep.subr.bf16.mxu0 %v4256
    %4712 = vmatpush1.bf16.msra.mxu0 %v4255
    %4713 = vmatprep.subr.bf16.mxu0 %v4260
    %4714 = vmatpush1.bf16.msra.mxu0 %v4259
    %4715 = vmatprep.subr.bf16.mxu0 %v4264
    %4716 = vmatpush1.bf16.msra.mxu0 %v4263
    %4717 = vmatprep.subr.bf16.mxu0 %v4268
    %4718 = vmatpush1.bf16.msra.mxu0 %v4267
    %4719 = vmatprep.subr.bf16.mxu0 %v4272
    %4720 = vmatpush1.bf16.msra.mxu0 %v4271
    %4721 = vmatprep.subr.bf16.mxu0 %v4276
    %4722 = vmatpush1.bf16.msra.mxu0 %v4275
    %4723 = vmatprep.subr.bf16.mxu0 %v4280
    %4724 = vmatpush1.bf16.msra.mxu0 %v4279
    %4725 = vmatprep.subr.bf16.mxu0 %v4284
    %4726 = vmatpush1.bf16.msra.mxu0 %v4283
    %4727 = vmatprep.subr.bf16.mxu0 %v4288
    %4728 = vmatpush1.bf16.msra.mxu0 %v4287
    %4729 = vmatprep.subr.bf16.mxu0 %v4292
    %4730 = vmatpush1.bf16.msra.mxu0 %v4291
    %4731 = vmatprep.subr.bf16.mxu0 %v4296
    %4732 = vmatpush1.bf16.msra.mxu0 %v4295
    %4733 = vmatprep.mubr.bf16.mxu0 %v3058
    %4734 = vmatmul.mubr.bf16.gmra.mrb[0].mxu0 %v3057
    %v4735 = vpop.f32.mrb[0].mxu0
    %v4736 = vadd.f32 %v4695, %v4735
    %v4737 = vpop.f32.mrb[0].mxu0
    %v4738 = vadd.f32 %v4697, %v4737
    %v4739 = vpop.f32.mrb[0].mxu0
    %v4740 = vpop.f32.mrb[0].mxu0
    %4741 = vdwg.mxu0
    %4742 = vmatprep.subr.bf16.mxu0 %v4300
    %4743 = vmatpush1.bf16.msra.mxu0 %v4299
    %4744 = vmatprep.subr.bf16.mxu0 %v4304
    %4745 = vmatpush1.bf16.msra.mxu0 %v4303
    %4746 = vmatprep.subr.bf16.mxu0 %v4308
    %4747 = vmatpush1.bf16.msra.mxu0 %v4307
    %4748 = vmatprep.subr.bf16.mxu0 %v4312
    %4749 = vmatpush1.bf16.msra.mxu0 %v4311
    %4750 = vmatprep.subr.bf16.mxu0 %v4316
    %4751 = vmatpush1.bf16.msra.mxu0 %v4315
    %4752 = vmatprep.subr.bf16.mxu0 %v4320
    %4753 = vmatpush1.bf16.msra.mxu0 %v4319
    %4754 = vmatprep.subr.bf16.mxu0 %v4324
    %4755 = vmatpush1.bf16.msra.mxu0 %v4323
    %4756 = vmatprep.subr.bf16.mxu0 %v4328
    %4757 = vmatpush1.bf16.msra.mxu0 %v4327
    %4758 = vmatprep.subr.bf16.mxu0 %v4332
    %4759 = vmatpush1.bf16.msra.mxu0 %v4331
    %4760 = vmatprep.subr.bf16.mxu0 %v4336
    %4761 = vmatpush1.bf16.msra.mxu0 %v4335
    %4762 = vmatprep.subr.bf16.mxu0 %v4340
    %4763 = vmatpush1.bf16.msra.mxu0 %v4339
    %4764 = vmatprep.subr.bf16.mxu0 %v4344
    %4765 = vmatpush1.bf16.msra.mxu0 %v4343
    %4766 = vmatprep.subr.bf16.mxu0 %v4348
    %4767 = vmatpush1.bf16.msra.mxu0 %v4347
    %4768 = vmatprep.subr.bf16.mxu0 %v4352
    %4769 = vmatpush1.bf16.msra.mxu0 %v4351
    %4770 = vmatprep.subr.bf16.mxu0 %v4356
    %4771 = vmatpush1.bf16.msra.mxu0 %v4355
    %4772 = vmatprep.subr.bf16.mxu0 %v4360
    %4773 = vmatpush1.bf16.msra.mxu0 %v4359
    %4774 = vmatprep.mubr.bf16.mxu0 %v3060
    %4775 = vmatmul.mubr.bf16.gmra.mrb[0].mxu0 %v3059
    %v4776 = vpop.f32.mrb[0].mxu0
    %v4777 = vadd.f32 %v4736, %v4776
    %v4778 = vpop.f32.mrb[0].mxu0
    %v4779 = vadd.f32 %v4738, %v4778
    %v4780 = vpop.f32.mrb[0].mxu0
    %v4781 = vpop.f32.mrb[0].mxu0
    %4782 = vdwg.mxu0
    %4783 = vmatprep.subr.bf16.mxu0 %v4110
    %4784 = vmatpush1.bf16.msra.mxu0 %v4109
    %4785 = vmatprep.subr.bf16.mxu0 %v4114
    %4786 = vmatpush1.bf16.msra.mxu0 %v4113
    %4787 = vmatprep.subr.bf16.mxu0 %v4118
    %4788 = vmatpush1.bf16.msra.mxu0 %v4117
    %4789 = vmatprep.subr.bf16.mxu0 %v4122
    %4790 = vmatpush1.bf16.msra.mxu0 %v4121
    %4791 = vmatprep.subr.bf16.mxu0 %v4126
    %4792 = vmatpush1.bf16.msra.mxu0 %v4125
    %4793 = vmatprep.subr.bf16.mxu0 %v4130
    %4794 = vmatpush1.bf16.msra.mxu0 %v4129
    %4795 = vmatprep.subr.bf16.mxu0 %v4134
    %4796 = vmatpush1.bf16.msra.mxu0 %v4133
    %4797 = vmatprep.subr.bf16.mxu0 %v4138
    %4798 = vmatpush1.bf16.msra.mxu0 %v4137
    %4799 = vmatprep.subr.bf16.mxu0 %v4142
    %4800 = vmatpush1.bf16.msra.mxu0 %v4141
    %4801 = vmatprep.subr.bf16.mxu0 %v4146
    %4802 = vmatpush1.bf16.msra.mxu0 %v4145
    %4803 = vmatprep.subr.bf16.mxu0 %v4150
    %4804 = vmatpush1.bf16.msra.mxu0 %v4149
    %4805 = vmatprep.subr.bf16.mxu0 %v4154
    %4806 = vmatpush1.bf16.msra.mxu0 %v4153
    %4807 = vmatprep.subr.bf16.mxu0 %v4158
    %4808 = vmatpush1.bf16.msra.mxu0 %v4157
    %4809 = vmatprep.subr.bf16.mxu0 %v4162
    %4810 = vmatpush1.bf16.msra.mxu0 %v4161
    %4811 = vmatprep.subr.bf16.mxu0 %v4166
    %4812 = vmatpush1.bf16.msra.mxu0 %v4165
    %4813 = vmatprep.subr.bf16.mxu0 %v4170
    %4814 = vmatpush1.bf16.msra.mxu0 %v4169
    %4815 = vmatprep.mubr.bf16.mxu0 %v3054
    %4816 = vmatmul.mubr.bf16.gmra.mrb[0].mxu0 %v3053
    %v4817 = vpop.f32.mrb[0].mxu0
    %v4818 = vadd.f32 %v3330, %v4817
    %v4819 = vpop.f32.mrb[0].mxu0
    %v4820 = vadd.f32 %v3334, %v4819
    %v4821 = vpop.f32.mrb[0].mxu0
    %v4822 = vpop.f32.mrb[0].mxu0
    %4823 = vdwg.mxu0
    %4824 = vmatprep.subr.bf16.mxu0 %v4174
    %4825 = vmatpush1.bf16.msra.mxu0 %v4173
    %4826 = vmatprep.subr.bf16.mxu0 %v4178
    %4827 = vmatpush1.bf16.msra.mxu0 %v4177
    %4828 = vmatprep.subr.bf16.mxu0 %v4182
    %4829 = vmatpush1.bf16.msra.mxu0 %v4181
    %4830 = vmatprep.subr.bf16.mxu0 %v4186
    %4831 = vmatpush1.bf16.msra.mxu0 %v4185
    %4832 = vmatprep.subr.bf16.mxu0 %v4190
    %4833 = vmatpush1.bf16.msra.mxu0 %v4189
    %4834 = vmatprep.subr.bf16.mxu0 %v4194
    %4835 = vmatpush1.bf16.msra.mxu0 %v4193
    %4836 = vmatprep.subr.bf16.mxu0 %v4198
    %4837 = vmatpush1.bf16.msra.mxu0 %v4197
    %4838 = vmatprep.subr.bf16.mxu0 %v4202
    %4839 = vmatpush1.bf16.msra.mxu0 %v4201
    %4840 = vmatprep.subr.bf16.mxu0 %v4206
    %4841 = vmatpush1.bf16.msra.mxu0 %v4205
    %4842 = vmatprep.subr.bf16.mxu0 %v4210
    %4843 = vmatpush1.bf16.msra.mxu0 %v4209
    %4844 = vmatprep.subr.bf16.mxu0 %v4214
    %4845 = vmatpush1.bf16.msra.mxu0 %v4213
    %4846 = vmatprep.subr.bf16.mxu0 %v4218
    %4847 = vmatpush1.bf16.msra.mxu0 %v4217
    %4848 = vmatprep.subr.bf16.mxu0 %v4222
    %4849 = vmatpush1.bf16.msra.mxu0 %v4221
    %4850 = vmatprep.subr.bf16.mxu0 %v4226
    %4851 = vmatpush1.bf16.msra.mxu0 %v4225
    %4852 = vmatprep.subr.bf16.mxu0 %v4230
    %4853 = vmatpush1.bf16.msra.mxu0 %v4229
    %4854 = vmatprep.subr.bf16.mxu0 %v4234
    %4855 = vmatpush1.bf16.msra.mxu0 %v4233
    %4856 = vmatprep.mubr.bf16.mxu0 %v3056
    %4857 = vmatmul.mubr.bf16.gmra.mrb[0].mxu0 %v3055
    %v4858 = vpop.f32.mrb[0].mxu0
    %v4859 = vadd.f32 %v4818, %v4858
    %v4860 = vpop.f32.mrb[0].mxu0
    %v4861 = vadd.f32 %v4820, %v4860
    %v4862 = vpop.f32.mrb[0].mxu0
    %v4863 = vpop.f32.mrb[0].mxu0
    %4864 = vdwg.mxu0
    %4865 = vmatprep.subr.bf16.mxu0 %v4238
    %4866 = vmatpush1.bf16.msra.mxu0 %v4237
    %4867 = vmatprep.subr.bf16.mxu0 %v4242
    %4868 = vmatpush1.bf16.msra.mxu0 %v4241
    %4869 = vmatprep.subr.bf16.mxu0 %v4246
    %4870 = vmatpush1.bf16.msra.mxu0 %v4245
    %4871 = vmatprep.subr.bf16.mxu0 %v4250
    %4872 = vmatpush1.bf16.msra.mxu0 %v4249
    %4873 = vmatprep.subr.bf16.mxu0 %v4254
    %4874 = vmatpush1.bf16.msra.mxu0 %v4253
    %4875 = vmatprep.subr.bf16.mxu0 %v4258
    %4876 = vmatpush1.bf16.msra.mxu0 %v4257
    %4877 = vmatprep.subr.bf16.mxu0 %v4262
    %4878 = vmatpush1.bf16.msra.mxu0 %v4261
    %4879 = vmatprep.subr.bf16.mxu0 %v4266
    %4880 = vmatpush1.bf16.msra.mxu0 %v4265
    %4881 = vmatprep.subr.bf16.mxu0 %v4270
    %4882 = vmatpush1.bf16.msra.mxu0 %v4269
    %4883 = vmatprep.subr.bf16.mxu0 %v4274
    %4884 = vmatpush1.bf16.msra.mxu0 %v4273
    %4885 = vmatprep.subr.bf16.mxu0 %v4278
    %4886 = vmatpush1.bf16.msra.mxu0 %v4277
    %4887 = vmatprep.subr.bf16.mxu0 %v4282
    %4888 = vmatpush1.bf16.msra.mxu0 %v4281
    %4889 = vmatprep.subr.bf16.mxu0 %v4286
    %4890 = vmatpush1.bf16.msra.mxu0 %v4285
    %4891 = vmatprep.subr.bf16.mxu0 %v4290
    %4892 = vmatpush1.bf16.msra.mxu0 %v4289
    %4893 = vmatprep.subr.bf16.mxu0 %v4294
    %4894 = vmatpush1.bf16.msra.mxu0 %v4293
    %4895 = vmatprep.subr.bf16.mxu0 %v4298
    %4896 = vmatpush1.bf16.msra.mxu0 %v4297
    %4897 = vmatprep.mubr.bf16.mxu0 %v3058
    %4898 = vmatmul.mubr.bf16.gmra.mrb[0].mxu0 %v3057
    %v4899 = vpop.f32.mrb[0].mxu0
    %v4900 = vadd.f32 %v4859, %v4899
    %v4901 = vpop.f32.mrb[0].mxu0
    %v4902 = vadd.f32 %v4861, %v4901
    %v4903 = vpop.f32.mrb[0].mxu0
    %v4904 = vpop.f32.mrb[0].mxu0
    %4905 = vdwg.mxu0
    %4906 = vmatprep.subr.bf16.mxu0 %v4302
    %4907 = vmatpush1.bf16.msra.mxu0 %v4301
    %4908 = vmatprep.subr.bf16.mxu0 %v4306
    %4909 = vmatpush1.bf16.msra.mxu0 %v4305
    %4910 = vmatprep.subr.bf16.mxu0 %v4310
    %4911 = vmatpush1.bf16.msra.mxu0 %v4309
    %4912 = vmatprep.subr.bf16.mxu0 %v4314
    %4913 = vmatpush1.bf16.msra.mxu0 %v4313
    %4914 = vmatprep.subr.bf16.mxu0 %v4318
    %4915 = vmatpush1.bf16.msra.mxu0 %v4317
    %4916 = vmatprep.subr.bf16.mxu0 %v4322
    %4917 = vmatpush1.bf16.msra.mxu0 %v4321
    %4918 = vmatprep.subr.bf16.mxu0 %v4326
    %4919 = vmatpush1.bf16.msra.mxu0 %v4325
    %4920 = vmatprep.subr.bf16.mxu0 %v4330
    %4921 = vmatpush1.bf16.msra.mxu0 %v4329
    %4922 = vmatprep.subr.bf16.mxu0 %v4334
    %4923 = vmatpush1.bf16.msra.mxu0 %v4333
    %4924 = vmatprep.subr.bf16.mxu0 %v4338
    %4925 = vmatpush1.bf16.msra.mxu0 %v4337
    %4926 = vmatprep.subr.bf16.mxu0 %v4342
    %4927 = vmatpush1.bf16.msra.mxu0 %v4341
    %4928 = vmatprep.subr.bf16.mxu0 %v4346
    %4929 = vmatpush1.bf16.msra.mxu0 %v4345
    %4930 = vmatprep.subr.bf16.mxu0 %v4350
    %4931 = vmatpush1.bf16.msra.mxu0 %v4349
    %4932 = vmatprep.subr.bf16.mxu0 %v4354
    %4933 = vmatpush1.bf16.msra.mxu0 %v4353
    %4934 = vmatprep.subr.bf16.mxu0 %v4358
    %4935 = vmatpush1.bf16.msra.mxu0 %v4357
    %4936 = vmatprep.subr.bf16.mxu0 %v4362
    %4937 = vmatpush1.bf16.msra.mxu0 %v4361
    %4938 = vmatprep.mubr.bf16.mxu0 %v3060
    %4939 = vmatmul.mubr.bf16.gmra.mrb[0].mxu0 %v3059
    %v4940 = vpop.f32.mrb[0].mxu0
    %v4941 = vadd.f32 %v4900, %v4940
    %v4942 = vpop.f32.mrb[0].mxu0
    %v4943 = vadd.f32 %v4902, %v4942
    %v4944 = vpop.f32.mrb[0].mxu0
    %v4945 = vpop.f32.mrb[0].mxu0
    %4946 = vdwg.mxu0
    %v4947 = vmul.f32 %v4777, 0.2
    %v4948 = vmul.f32 %v4779, 0.2
    %v4949 = vmul.f32 %v4941, 0.2
    %v4950 = vmul.f32 %v4943, 0.2
    %v4951 = vmax.f32 %v4777, %v4947
    %v4952 = vmax.f32 %v4779, %v4948
    %v4953 = vmax.f32 %v4941, %v4949
    %v4954 = vmax.f32 %v4943, %v4950
    %v4955 = vpack.c.bf16 %v4951, %v4951
    %v4956 = vpack.c.bf16 %v4952, %v4952
    %v4957 = vpack.c.bf16 %v4953, %v4953
    %v4958 = vpack.c.bf16 %v4954, %v4954
    %v4959 = vld [vmem:[#allocation11] sm:$0xf]
    %v4960 = vld [vmem:[#allocation11 + $0x4] sm:$0xf]
    %v4961 = vld [vmem:[#allocation11 + $0x8] sm:$0xf]
    %v4962 = vld [vmem:[#allocation11 + $0xc] sm:$0xf]
    %v4963 = vld [vmem:[#allocation11 + $0x10] sm:$0xf]
    %v4964 = vld [vmem:[#allocation11 + $0x14] sm:$0xf]
    %v4965 = vld [vmem:[#allocation11 + $0x18] sm:$0xf]
    %v4966 = vld [vmem:[#allocation11 + $0x1c] sm:$0xf]
    %v4967 = vld [vmem:[#allocation11 + $0x20] sm:$0xf]
    %v4968 = vld [vmem:[#allocation11 + $0x24] sm:$0xf]
    %v4969 = vld [vmem:[#allocation11 + $0x28] sm:$0xf]
    %v4970 = vld [vmem:[#allocation11 + $0x2c] sm:$0xf]
    %v4971 = vld [vmem:[#allocation11 + $0x30] sm:$0xf]
    %v4972 = vld [vmem:[#allocation11 + $0x34] sm:$0xf]
    %v4973 = vld [vmem:[#allocation11 + $0x38] sm:$0xf]
    %v4974 = vld [vmem:[#allocation11 + $0x3c] sm:$0xf]
    %v4975 = vld [vmem:[#allocation11 + $0x40] sm:$0xf]
    %v4976 = vld [vmem:[#allocation11 + $0x44] sm:$0xf]
    %v4977 = vld [vmem:[#allocation11 + $0x48] sm:$0xf]
    %v4978 = vld [vmem:[#allocation11 + $0x4c] sm:$0xf]
    %v4979 = vld [vmem:[#allocation11 + $0x50] sm:$0xf]
    %v4980 = vld [vmem:[#allocation11 + $0x54] sm:$0xf]
    %v4981 = vld [vmem:[#allocation11 + $0x58] sm:$0xf]
    %v4982 = vld [vmem:[#allocation11 + $0x5c] sm:$0xf]
    %v4983 = vld [vmem:[#allocation11 + $0x60] sm:$0xf]
    %v4984 = vld [vmem:[#allocation11 + $0x64] sm:$0xf]
    %v4985 = vld [vmem:[#allocation11 + $0x68] sm:$0xf]
    %v4986 = vld [vmem:[#allocation11 + $0x6c] sm:$0xf]
    %v4987 = vld [vmem:[#allocation11 + $0x70] sm:$0xf]
    %v4988 = vld [vmem:[#allocation11 + $0x74] sm:$0xf]
    %v4989 = vld [vmem:[#allocation11 + $0x78] sm:$0xf]
    %v4990 = vld [vmem:[#allocation11 + $0x7c] sm:$0xf]
    %v4991 = vld [vmem:[#allocation11 + $0x80] sm:$0xf]
    %v4992 = vld [vmem:[#allocation11 + $0x84] sm:$0xf]
    %v4993 = vld [vmem:[#allocation11 + $0x88] sm:$0xf]
    %v4994 = vld [vmem:[#allocation11 + $0x8c] sm:$0xf]
    %v4995 = vld [vmem:[#allocation11 + $0x90] sm:$0xf]
    %v4996 = vld [vmem:[#allocation11 + $0x94] sm:$0xf]
    %v4997 = vld [vmem:[#allocation11 + $0x98] sm:$0xf]
    %v4998 = vld [vmem:[#allocation11 + $0x9c] sm:$0xf]
    %v4999 = vld [vmem:[#allocation11 + $0xa0] sm:$0xf]
    %v5000 = vld [vmem:[#allocation11 + $0xa4] sm:$0xf]
    %v5001 = vld [vmem:[#allocation11 + $0xa8] sm:$0xf]
    %v5002 = vld [vmem:[#allocation11 + $0xac] sm:$0xf]
    %v5003 = vld [vmem:[#allocation11 + $0xb0] sm:$0xf]
    %v5004 = vld [vmem:[#allocation11 + $0xb4] sm:$0xf]
    %v5005 = vld [vmem:[#allocation11 + $0xb8] sm:$0xf]
    %v5006 = vld [vmem:[#allocation11 + $0xbc] sm:$0xf]
    %v5007 = vld [vmem:[#allocation11 + $0xc0] sm:$0xf]
    %v5008 = vld [vmem:[#allocation11 + $0xc4] sm:$0xf]
    %v5009 = vld [vmem:[#allocation11 + $0xc8] sm:$0xf]
    %v5010 = vld [vmem:[#allocation11 + $0xcc] sm:$0xf]
    %v5011 = vld [vmem:[#allocation11 + $0xd0] sm:$0xf]
    %v5012 = vld [vmem:[#allocation11 + $0xd4] sm:$0xf]
    %v5013 = vld [vmem:[#allocation11 + $0xd8] sm:$0xf]
    %v5014 = vld [vmem:[#allocation11 + $0xdc] sm:$0xf]
    %v5015 = vld [vmem:[#allocation11 + $0xe0] sm:$0xf]
    %v5016 = vld [vmem:[#allocation11 + $0xe4] sm:$0xf]
    %v5017 = vld [vmem:[#allocation11 + $0xe8] sm:$0xf]
    %v5018 = vld [vmem:[#allocation11 + $0xec] sm:$0xf]
    %v5019 = vld [vmem:[#allocation11 + $0xf0] sm:$0xf]
    %v5020 = vld [vmem:[#allocation11 + $0xf4] sm:$0xf]
    %v5021 = vld [vmem:[#allocation11 + $0xf8] sm:$0xf]
    %v5022 = vld [vmem:[#allocation11 + $0xfc] sm:$0xf]
    %v5023 = vld [vmem:[#allocation13] sm:$0x1]
    %v5025 = vlaneseq
    %v5026 = vshrl.u32 %v5025, 7
    %v5027 = vsub.s32 0, %v5026
    %v5028 = vrot.slane %v5023, %v5027
    %v5094 = vunpack.c.l.b16 %v4959
    %v5095 = vunpack.c.l.b16 %v4960
    %v5096 = vunpack.c.l.b16 %v4961
    %v5097 = vunpack.c.l.b16 %v4962
    %v5098 = vunpack.c.l.b16 %v4963
    %v5099 = vunpack.c.l.b16 %v4964
    %v5100 = vunpack.c.l.b16 %v4965
    %v5101 = vunpack.c.l.b16 %v4966
    %v5102 = vunpack.c.l.b16 %v4967
    %v5103 = vunpack.c.l.b16 %v4968
    %v5104 = vunpack.c.l.b16 %v4969
    %v5105 = vunpack.c.l.b16 %v4970
    %v5106 = vunpack.c.l.b16 %v4971
    %v5107 = vunpack.c.l.b16 %v4972
    %v5108 = vunpack.c.l.b16 %v4973
    %v5109 = vunpack.c.l.b16 %v4974
    %v5110 = vunpack.c.l.b16 %v4975
    %v5111 = vunpack.c.l.b16 %v4976
    %v5112 = vunpack.c.l.b16 %v4977
    %v5113 = vunpack.c.l.b16 %v4978
    %v5114 = vunpack.c.l.b16 %v4979
    %v5115 = vunpack.c.l.b16 %v4980
    %v5116 = vunpack.c.l.b16 %v4981
    %v5117 = vunpack.c.l.b16 %v4982
    %v5118 = vunpack.c.l.b16 %v4983
    %v5119 = vunpack.c.l.b16 %v4984
    %v5120 = vunpack.c.l.b16 %v4985
    %v5121 = vunpack.c.l.b16 %v4986
    %v5122 = vunpack.c.l.b16 %v4987
    %v5123 = vunpack.c.l.b16 %v4988
    %v5124 = vunpack.c.l.b16 %v4989
    %v5125 = vunpack.c.l.b16 %v4990
    %v5126 = vunpack.c.l.b16 %v4991
    %v5127 = vunpack.c.l.b16 %v4992
    %v5128 = vunpack.c.l.b16 %v4993
    %v5129 = vunpack.c.l.b16 %v4994
    %v5130 = vunpack.c.l.b16 %v4995
    %v5131 = vunpack.c.l.b16 %v4996
    %v5132 = vunpack.c.l.b16 %v4997
    %v5133 = vunpack.c.l.b16 %v4998
    %v5134 = vunpack.c.l.b16 %v4999
    %v5135 = vunpack.c.l.b16 %v5000
    %v5136 = vunpack.c.l.b16 %v5001
    %v5137 = vunpack.c.l.b16 %v5002
    %v5138 = vunpack.c.l.b16 %v5003
    %v5139 = vunpack.c.l.b16 %v5004
    %v5140 = vunpack.c.l.b16 %v5005
    %v5141 = vunpack.c.l.b16 %v5006
    %v5142 = vunpack.c.l.b16 %v5007
    %v5143 = vunpack.c.l.b16 %v5008
    %v5144 = vunpack.c.l.b16 %v5009
    %v5145 = vunpack.c.l.b16 %v5010
    %v5146 = vunpack.c.l.b16 %v5011
    %v5147 = vunpack.c.l.b16 %v5012
    %v5148 = vunpack.c.l.b16 %v5013
    %v5149 = vunpack.c.l.b16 %v5014
    %v5150 = vunpack.c.l.b16 %v5015
    %v5151 = vunpack.c.l.b16 %v5016
    %v5152 = vunpack.c.l.b16 %v5017
    %v5153 = vunpack.c.l.b16 %v5018
    %v5154 = vunpack.c.l.b16 %v5019
    %v5155 = vunpack.c.l.b16 %v5020
    %v5156 = vunpack.c.l.b16 %v5021
    %v5157 = vunpack.c.l.b16 %v5022
    %v5158 = vpack.c.b16 %v5095, %v5094
    %v5159 = vpack.c.b16 %v5097, %v5096
    %v5160 = vpack.c.b16 %v5099, %v5098
    %v5161 = vpack.c.b16 %v5101, %v5100
    %v5162 = vpack.c.b16 %v5103, %v5102
    %v5163 = vpack.c.b16 %v5105, %v5104
    %v5164 = vpack.c.b16 %v5107, %v5106
    %v5165 = vpack.c.b16 %v5109, %v5108
    %v5166 = vpack.c.b16 %v5111, %v5110
    %v5167 = vpack.c.b16 %v5113, %v5112
    %v5168 = vpack.c.b16 %v5115, %v5114
    %v5169 = vpack.c.b16 %v5117, %v5116
    %v5170 = vpack.c.b16 %v5119, %v5118
    %v5171 = vpack.c.b16 %v5121, %v5120
    %v5172 = vpack.c.b16 %v5123, %v5122
    %v5173 = vpack.c.b16 %v5125, %v5124
    %v5174 = vpack.c.b16 %v5127, %v5126
    %v5175 = vpack.c.b16 %v5129, %v5128
    %v5176 = vpack.c.b16 %v5131, %v5130
    %v5177 = vpack.c.b16 %v5133, %v5132
    %v5178 = vpack.c.b16 %v5135, %v5134
    %v5179 = vpack.c.b16 %v5137, %v5136
    %v5180 = vpack.c.b16 %v5139, %v5138
    %v5181 = vpack.c.b16 %v5141, %v5140
    %v5182 = vpack.c.b16 %v5143, %v5142
    %v5183 = vpack.c.b16 %v5145, %v5144
    %v5184 = vpack.c.b16 %v5147, %v5146
    %v5185 = vpack.c.b16 %v5149, %v5148
    %v5186 = vpack.c.b16 %v5151, %v5150
    %v5187 = vpack.c.b16 %v5153, %v5152
    %v5188 = vpack.c.b16 %v5155, %v5154
    %v5189 = vpack.c.b16 %v5157, %v5156
    %5222 = vmatprep.subr.bf16.mxu0 0
    %5223 = vmatpush1.bf16.msra.mxu0 %v5158
    %5224 = vmatprep.subr.bf16.mxu0 0
    %5225 = vmatpush1.bf16.msra.mxu0 %v5159
    %5226 = vmatprep.subr.bf16.mxu0 0
    %5227 = vmatpush1.bf16.msra.mxu0 %v5160
    %5228 = vmatprep.subr.bf16.mxu0 0
    %5229 = vmatpush1.bf16.msra.mxu0 %v5161
    %5230 = vmatprep.subr.bf16.mxu0 0
    %5231 = vmatpush1.bf16.msra.mxu0 %v5162
    %5232 = vmatprep.subr.bf16.mxu0 0
    %5233 = vmatpush1.bf16.msra.mxu0 %v5163
    %5234 = vmatprep.subr.bf16.mxu0 0
    %5235 = vmatpush1.bf16.msra.mxu0 %v5164
    %5236 = vmatprep.subr.bf16.mxu0 0
    %5237 = vmatpush1.bf16.msra.mxu0 %v5165
    %5238 = vmatprep.subr.bf16.mxu0 0
    %5239 = vmatpush1.bf16.msra.mxu0 %v5166
    %5240 = vmatprep.subr.bf16.mxu0 0
    %5241 = vmatpush1.bf16.msra.mxu0 %v5167
    %5242 = vmatprep.subr.bf16.mxu0 0
    %5243 = vmatpush1.bf16.msra.mxu0 %v5168
    %5244 = vmatprep.subr.bf16.mxu0 0
    %5245 = vmatpush1.bf16.msra.mxu0 %v5169
    %5246 = vmatprep.subr.bf16.mxu0 0
    %5247 = vmatpush1.bf16.msra.mxu0 %v5170
    %5248 = vmatprep.subr.bf16.mxu0 0
    %5249 = vmatpush1.bf16.msra.mxu0 %v5171
    %5250 = vmatprep.subr.bf16.mxu0 0
    %5251 = vmatpush1.bf16.msra.mxu0 %v5172
    %5252 = vmatprep.subr.bf16.mxu0 0
    %5253 = vmatpush1.bf16.msra.mxu0 %v5173
    %5254 = vmatprep.mubr.bf16.mxu0 %v4956
    %5255 = vmatmul.mubr.bf16.gmra.mrb[0].mxu0 %v4955
    %v5256 = vpop.f32.mrb[0].mxu0
    %v5257 = vadd.f32 %v5028, %v5256
    %v5258 = vpop.f32.mrb[0].mxu0
    %v5259 = vpop.f32.mrb[0].mxu0
    %v5260 = vpop.f32.mrb[0].mxu0
    %5261 = vdwg.mxu0
    %5262 = vmatprep.subr.bf16.mxu0 0
    %5263 = vmatpush1.bf16.msra.mxu0 %v5174
    %5264 = vmatprep.subr.bf16.mxu0 0
    %5265 = vmatpush1.bf16.msra.mxu0 %v5175
    %5266 = vmatprep.subr.bf16.mxu0 0
    %5267 = vmatpush1.bf16.msra.mxu0 %v5176
    %5268 = vmatprep.subr.bf16.mxu0 0
    %5269 = vmatpush1.bf16.msra.mxu0 %v5177
    %5270 = vmatprep.subr.bf16.mxu0 0
    %5271 = vmatpush1.bf16.msra.mxu0 %v5178
    %5272 = vmatprep.subr.bf16.mxu0 0
    %5273 = vmatpush1.bf16.msra.mxu0 %v5179
    %5274 = vmatprep.subr.bf16.mxu0 0
    %5275 = vmatpush1.bf16.msra.mxu0 %v5180
    %5276 = vmatprep.subr.bf16.mxu0 0
    %5277 = vmatpush1.bf16.msra.mxu0 %v5181
    %5278 = vmatprep.subr.bf16.mxu0 0
    %5279 = vmatpush1.bf16.msra.mxu0 %v5182
    %5280 = vmatprep.subr.bf16.mxu0 0
    %5281 = vmatpush1.bf16.msra.mxu0 %v5183
    %5282 = vmatprep.subr.bf16.mxu0 0
    %5283 = vmatpush1.bf16.msra.mxu0 %v5184
    %5284 = vmatprep.subr.bf16.mxu0 0
    %5285 = vmatpush1.bf16.msra.mxu0 %v5185
    %5286 = vmatprep.subr.bf16.mxu0 0
    %5287 = vmatpush1.bf16.msra.mxu0 %v5186
    %5288 = vmatprep.subr.bf16.mxu0 0
    %5289 = vmatpush1.bf16.msra.mxu0 %v5187
    %5290 = vmatprep.subr.bf16.mxu0 0
    %5291 = vmatpush1.bf16.msra.mxu0 %v5188
    %5292 = vmatprep.subr.bf16.mxu0 0
    %5293 = vmatpush1.bf16.msra.mxu0 %v5189
    %5294 = vmatprep.mubr.bf16.mxu0 %v4958
    %5295 = vmatmul.mubr.bf16.gmra.mrb[0].mxu0 %v4957
    %v5296 = vpop.f32.mrb[0].mxu0
    %v5297 = vadd.f32 %v5257, %v5296
    %v5298 = vpop.f32.mrb[0].mxu0
    %v5299 = vpop.f32.mrb[0].mxu0
    %v5300 = vpop.f32.mrb[0].mxu0
    %5301 = vdwg.mxu0
    %5302 = vst [vmem:[#allocation14] sm:$0xff] %v5297
    // Predicated region
    $region58: #{tpu_custom_call.1} parent=1 // pred_check
      _
    $region59: #{tpu_custom_call.1} parent=1 // pred_check_branch
      %5304 = sbr.rel (0) target = $region61
    $region60: #{tpu_custom_call.1} parent=1 // pred_region
      %s5306 = ssub.s32 128, 32
      %5307 = vsyncadd [#allocation4], %s5306
      %s5308 = sshll.u32 [#allocation14], 4
      %s5309 = int_to_ptr.vmem [resolvable:$true] %s5308
      %5314 = dma.vmem_to_hbm [thread:$0]  %s5309, 32, %s7, [#allocation4], 32, 32, 2
    $region61: #{tpu_custom_call.1} parent=1 // pred_fallthru
      _
    // Predicated region
    $region62: #{tpu_custom_call.1} parent=1 // pred_check
      _
    $region63: #{tpu_custom_call.1} parent=1 // pred_check_branch
      %5316 = sbr.rel (0) target = $region65
    $region64: #{tpu_custom_call.1} parent=1 // pred_region
      %5317 = dma.done [#allocation4], 128
    $region65: #{tpu_custom_call.1} parent=1 // pred_fallthru
      _
    %5318 = vsyncpa [#allocation3], 1
    %5319 = vsyncpa [#allocation6], 1
    %5320 = vsyncpa [#allocation9], 1
    %5321 = vsyncpa [#allocation12], 1
    %5322 = vsyncpa [#allocation4], 1

</llo_original>
